<compile_context>
chip_gen: v7x
topology: tpu7x:2x2x1
jax: 0.10.0
libtpu: 0.0.40
codegen_flags: <defaults>
</compile_context>

<pallas_src>
import math

import numpy as np

import jax
import jax.numpy as jnp
from jax import lax
from jax.experimental import pallas as pl


# -----------------------------------------------------------------------------
# Fused kernel: full raw_d forward
# -----------------------------------------------------------------------------
def _raw_d_kernel(x_ref, w1_ref, b1_ref, whh1_ref, ctx1_ref, s1f_ref, s1r_ref,
                  w2_ref, b2_ref, whh2_ref, ctx2_ref, sel2_ref,
                  wfc_ref, bfc_ref, out_ref):
    """Shapes (whole arrays resident in VMEM, no grid):

      x    : (B, T, F) f32    raw input (batch, n_bins, n_features)
      w1   : (F, 2*G1) bf16   hoisted level-1 input->gate proj [fwd | rev]
      b1   : (1, 2*G1) f32    level-1 bias (fwd half only; rev half zero)
      whh1 : (FDH, G1) bf16   block-diag level-1 hidden->gate, FDH = 2*F*H
      ctx1 : (FDH, 2F) bf16   zero-padded per-direction attention contexts
      s1f/r: (F, FDH)  f32    0/1 selection matrices broadcasting alphas
      w2   : (FDH, 2*F*G2) bf16  hoisted level-2 input->gate proj [fwd | rev]
      b2   : (1, 2*F*G2) f32  level-2 bias (fwd half only)
      whh2 : (U2, G2)  bf16   block-diag level-2 hidden->gate, U2 = 2*H2p
      ctx2 : (U2, 2)   bf16   zero-padded level-2 attention contexts
      sel2 : (2, U2)   f32    0/1 lane masks for the two level-2 halves
      wfc  : (U2, 1)   f32    fdiff1_1 weight (zero padded), bfc: (1,1) f32
      out  : (B, OUTL) f32    packed [alpha1 (T*F) | alpha2 (F) | pred | 0...]
    """
    f32 = jnp.float32
    bf16 = jnp.bfloat16
    B, T, F = x_ref.shape
    G1 = w1_ref.shape[1] // 2          # 4 * FDH
    FDH = whh1_ref.shape[0]            # 2 * F * H
    U2 = whh2_ref.shape[0]             # 2 * H2p
    G2 = whh2_ref.shape[1]             # 4 * U2
    FG2 = F * G2

    # ---------------- level 1: F bidirectional LSTMs, fully batched ----------
    # Hoisted input->gate projection for every (b, t) row, fwd|rev fused.
    x2d = x_ref[...].reshape(B * T, F).astype(bf16)
    pall = jnp.dot(x2d, w1_ref[...], preferred_element_type=f32) + b1_ref[...]
    pall = pall.reshape(B, T, 2 * G1)          # [:, t, :G1] fwd@t, [G1:] rev@t

    whh1 = whh1_ref[...]                       # (FDH, G1) bf16
    ctx1 = ctx1_ref[...]                       # (FDH, 2F) bf16

    h = jnp.zeros((B, FDH), f32)
    c = jnp.zeros((B, FDH), f32)
    hb = h.astype(bf16)
    hsteps = []
    sfwd = [None] * T                          # fwd score emitted at position t
    srev = [None] * T                          # rev score emitted at position p
    for t in range(T):                         # static unroll
        gin = pall[:, t, :G1] + pall[:, T - 1 - t, G1:]
        gates = gin + jnp.dot(hb, whh1, preferred_element_type=f32)
        i_g = jax.nn.sigmoid(gates[:, 0 * FDH:1 * FDH])
        f_g = jax.nn.sigmoid(gates[:, 1 * FDH:2 * FDH])
        g_g = jnp.tanh(gates[:, 2 * FDH:3 * FDH])
        o_g = jax.nn.sigmoid(gates[:, 3 * FDH:4 * FDH])
        c = f_g * c + i_g * g_g
        h = o_g * jnp.tanh(c)
        hb = h.astype(bf16)
        hsteps.append(h)
        s = jnp.dot(hb, ctx1, preferred_element_type=f32)          # (B, 2F)
        sfwd[t] = s[:, :F]
        srev[T - 1 - t] = s[:, F:]

    # softmax over the T positions -> per-(batch, encoder) attention weights
    sc = [sfwd[p] + srev[p] for p in range(T)]
    m = sc[0]
    for p in range(1, T):
        m = jnp.maximum(m, sc[p])
    ex = [jnp.exp(sc[p] - m) for p in range(T)]
    den = ex[0]
    for p in range(1, T):
        den = den + ex[p]
    inv = 1.0 / den
    alpha1 = [ex[p] * inv for p in range(T)]                       # T x (B, F)

    # attention-weighted rep via full-width per-step gains (no lane slicing)
    a_f = jnp.concatenate(alpha1, axis=0)                          # (T*B, F)
    a_r = jnp.concatenate(alpha1[::-1], axis=0)                    # (T*B, F)
    gains = (jnp.dot(a_f, s1f_ref[...], preferred_element_type=f32)
             + jnp.dot(a_r, s1r_ref[...], preferred_element_type=f32))
    rep1 = gains[0:B, :] * hsteps[0]
    for t in range(1, T):
        rep1 = rep1 + gains[t * B:(t + 1) * B, :] * hsteps[t]      # (B, FDH)

    # ---------------- level 2: one bi-LSTM over the F encoder reps -----------
    rep1b = rep1.astype(bf16)
    p2 = jnp.dot(rep1b, w2_ref[...], preferred_element_type=f32) + b2_ref[...]

    whh2 = whh2_ref[...]                                           # (U2, G2)
    ctx2 = ctx2_ref[...]                                           # (U2, 2)
    h2 = jnp.zeros((B, U2), f32)
    c2 = jnp.zeros((B, U2), f32)
    h2b = h2.astype(bf16)
    h2steps = []
    s2f = [None] * F
    s2r = [None] * F
    for s in range(F):                                             # static unroll
        gin = (p2[:, s * G2:(s + 1) * G2]
               + p2[:, FG2 + (F - 1 - s) * G2:FG2 + (F - s) * G2])
        gates = gin + jnp.dot(h2b, whh2, preferred_element_type=f32)
        i_g = jax.nn.sigmoid(gates[:, 0 * U2:1 * U2])
        f_g = jax.nn.sigmoid(gates[:, 1 * U2:2 * U2])
        g_g = jnp.tanh(gates[:, 2 * U2:3 * U2])
        o_g = jax.nn.sigmoid(gates[:, 3 * U2:4 * U2])
        c2 = f_g * c2 + i_g * g_g
        h2 = o_g * jnp.tanh(c2)
        h2b = h2.astype(bf16)
        h2steps.append(h2)
        sc2 = jnp.dot(h2b, ctx2, preferred_element_type=f32)       # (B, 2)
        s2f[s] = sc2[:, 0:1]
        s2r[F - 1 - s] = sc2[:, 1:2]

    sc2l = [s2f[p] + s2r[p] for p in range(F)]
    m2 = sc2l[0]
    for p in range(1, F):
        m2 = jnp.maximum(m2, sc2l[p])
    ex2 = [jnp.exp(sc2l[p] - m2) for p in range(F)]
    den2 = ex2[0]
    for p in range(1, F):
        den2 = den2 + ex2[p]
    inv2 = 1.0 / den2
    alpha2 = [ex2[p] * inv2 for p in range(F)]                     # F x (B, 1)

    sel2 = sel2_ref[...]                                           # (2, U2)
    mask_f = sel2[0:1, :]
    mask_r = sel2[1:2, :]
    rep2 = (alpha2[0] * mask_f + alpha2[F - 1] * mask_r) * h2steps[0]
    for s in range(1, F):
        rep2 = rep2 + (alpha2[s] * mask_f
                       + alpha2[F - 1 - s] * mask_r) * h2steps[s]  # (B, U2)

    # ---------------- fdiff1_1 linear head (fused epilogue) ------------------
    pred = (jnp.dot(rep2, wfc_ref[...], preferred_element_type=f32)
            + bfc_ref[...])                                        # (B, 1)

    # ---------------- single lane-dense packed output ------------------------
    out_ref[...] = jnp.zeros_like(out_ref)
    for t in range(T):
        out_ref[:, t * F:(t + 1) * F] = alpha1[t]
    for s in range(F):
        out_ref[:, T * F + s:T * F + s + 1] = alpha2[s]
    out_ref[:, T * F + F:T * F + F + 1] = pred


# -----------------------------------------------------------------------------
# Forward wrapper (single fused pallas_call + layout plumbing)
# -----------------------------------------------------------------------------
def raw_d_forward(iput, kp):
    """iput: (batch, n_bins, n_features) float32.

    Returns (prediction_m (B,1), hm_level_attention_1 (B,F), bin_a (B, F*T)),
    matching the PyTorch module outputs.
    """
    B, T, F = iput.shape
    FDH = kp["whh1"].shape[0]
    G1 = kp["w1"].shape[1] // 2
    U2 = kp["whh2"].shape[0]
    G2 = kp["whh2"].shape[1]
    used = T * F + F + 1
    out_lanes = max(128, -(-used // 128) * 128)

    flops = 2 * (B * T * F * 2 * G1                  # hoisted level-1 proj
                 + T * B * FDH * (G1 + 2 * F)        # recurrent + score dots
                 + 2 * T * B * F * FDH               # gain matmuls
                 + B * FDH * 2 * F * G2              # hoisted level-2 proj
                 + F * B * U2 * (G2 + 2)             # level-2 recurrent + score
                 + B * U2)                           # fdiff1_1
    transcendentals = 5 * B * (T * FDH + F * U2) + B * (T * F + F)
    bytes_accessed = int(iput.size * 4 + B * out_lanes * 4
                         + sum(int(v.size) * v.dtype.itemsize
                               for v in kp.values()))

    packed = pl.pallas_call(
        _raw_d_kernel,
        out_shape=jax.ShapeDtypeStruct((B, out_lanes), jnp.float32),
        cost_estimate=pl.CostEstimate(flops=int(flops),
                                      transcendentals=int(transcendentals),
                                      bytes_accessed=bytes_accessed),
    )(iput, kp["w1"], kp["b1"], kp["whh1"], kp["ctx1"], kp["sel1f"],
      kp["sel1r"], kp["w2"], kp["b2"], kp["whh2"], kp["ctx2"], kp["sel2"],
      kp["wfc"], kp["bfc"])

    bin_a = jnp.transpose(packed[:, :T * F].reshape(B, T, F),
                          (0, 2, 1)).reshape(B, F * T)
    hm_level_attention = packed[:, T * F:T * F + F]
    prediction = packed[:, T * F + F:T * F + F + 1]
    return prediction, hm_level_attention, bin_a


# -----------------------------------------------------------------------------
# Raw (PyTorch-like) parameters and the fused/block layout builder
# -----------------------------------------------------------------------------
def init_raw_params(key, n_features, bin_rnn_size):
    F = n_features
    H = bin_rnn_size               # level-1 hidden size (hm=False)
    H2 = bin_rnn_size // 2         # level-2 hidden size (hm=True)
    ks = jax.random.split(key, 12)

    def u(k, shape, bound):
        return jax.random.uniform(k, shape, jnp.float32,
                                  minval=-bound, maxval=bound)

    bd1 = 1.0 / math.sqrt(H)
    bd2 = 1.0 / math.sqrt(H2)
    bdf = 1.0 / math.sqrt(2 * H2)
    return {
        # level-1: F independent bi-LSTM(input=1, hidden=H); index 0=fwd, 1=rev
        "wih1": u(ks[0], (2, F, 4 * H), bd1),       # weight_ih (4H,1) flattened
        "whh1": u(ks[1], (2, F, 4 * H, H), bd1),    # weight_hh
        "b1": u(ks[2], (2, F, 4 * H), bd1),         # b_ih + b_hh (combined)
        "ctx1": u(ks[3], (F, 2 * H), 0.1),          # bin_context_vector
        # level-2: one bi-LSTM(input=2H, hidden=H2)
        "wih2": u(ks[4], (2, 4 * H2, 2 * H), bd2),
        "whh2": u(ks[5], (2, 4 * H2, H2), bd2),
        "b2": u(ks[6], (2, 4 * H2), bd2),
        "ctx2": u(ks[7], (2 * H2,), 0.1),
        # fdiff1_1
        "wfc": u(ks[8], (2 * H2,), bdf),
        "bfc": u(ks[9], (1, 1), bdf),
    }


def build_kernel_params(raw):
    """Repack per-encoder LSTM weights into the fused block layouts used by
    the kernel: block-diagonal hidden->gate matrices, fwd|rev fused hoisted
    input->gate projections, zero-padded per-direction attention contexts and
    0/1 alpha-broadcast selection matrices.  MXU-facing weights are stored in
    bf16; biases / selection masks / head weights stay f32.  The level-2
    hidden size is zero padded to a multiple of 16 lanes (exact: padded lanes
    have zero weights/bias, so they stay identically zero)."""
    wih1 = np.asarray(raw["wih1"], np.float32)   # (2, F, 4H)
    whh1 = np.asarray(raw["whh1"], np.float32)   # (2, F, 4H, H)
    b1 = np.asarray(raw["b1"], np.float32)       # (2, F, 4H)
    ctx1 = np.asarray(raw["ctx1"], np.float32)   # (F, 2H)
    wih2 = np.asarray(raw["wih2"], np.float32)   # (2, 4H2, 2H)
    whh2 = np.asarray(raw["whh2"], np.float32)   # (2, 4H2, H2)
    b2 = np.asarray(raw["b2"], np.float32)       # (2, 4H2)
    ctx2 = np.asarray(raw["ctx2"], np.float32)   # (2H2,)
    wfc = np.asarray(raw["wfc"], np.float32)     # (2H2,)
    bfc = np.asarray(raw["bfc"], np.float32)     # (1, 1)

    _, F, H4 = wih1.shape
    H = H4 // 4
    H2 = whh2.shape[2]
    H2p = ((H2 + 15) // 16) * 16
    FH = F * H
    FDH = 2 * FH
    G1 = 4 * FDH
    U2 = 2 * H2p
    G2 = 4 * U2
    FG2 = F * G2

    # ---- level 1 (unit u = f for forward, u = F + f for reverse) ----
    w1f = np.zeros((F, G1), np.float32)
    w1r = np.zeros((F, G1), np.float32)
    bb1 = np.zeros((1, G1), np.float32)
    whh1_big = np.zeros((FDH, G1), np.float32)
    for f in range(F):
        for g in range(4):
            for d, (w_in, u) in enumerate(((w1f, f), (w1r, F + f))):
                cols = slice(g * FDH + u * H, g * FDH + (u + 1) * H)
                w_in[f, cols] = wih1[d, f, g * H:(g + 1) * H]
                bb1[0, cols] = b1[d, f, g * H:(g + 1) * H]
                whh1_big[u * H:(u + 1) * H, cols] = \
                    whh1[d, f, g * H:(g + 1) * H, :].T
    w1 = np.concatenate([w1f, w1r], axis=1)                  # (F, 2*G1)
    b1c = np.concatenate([bb1, np.zeros_like(bb1)], axis=1)  # (1, 2*G1)

    # zero-padded full-width attention contexts + alpha selection matrices
    ctx1c = np.zeros((FDH, 2 * F), np.float32)
    sel1f = np.zeros((F, FDH), np.float32)
    sel1r = np.zeros((F, FDH), np.float32)
    for f in range(F):
        ctx1c[f * H:(f + 1) * H, f] = ctx1[f, :H]
        ctx1c[FH + f * H:FH + (f + 1) * H, F + f] = ctx1[f, H:]
        sel1f[f, f * H:(f + 1) * H] = 1.0
        sel1r[f, FH + f * H:FH + (f + 1) * H] = 1.0

    # ---- level 2 (du=0 forward, du=1 reverse; hidden padded to H2p) ---------
    w2f = np.zeros((FDH, FG2), np.float32)
    w2r = np.zeros((FDH, FG2), np.float32)
    bb2 = np.zeros((1, FG2), np.float32)
    whh2_big = np.zeros((U2, G2), np.float32)
    for g in range(4):
        for du, w_in in enumerate((w2f, w2r)):
            col0 = g * U2 + du * H2p
            whh2_big[du * H2p:du * H2p + H2, col0:col0 + H2] = \
                whh2[du, g * H2:(g + 1) * H2, :].T
            for s in range(F):
                bb2[0, s * G2 + col0:s * G2 + col0 + H2] = \
                    b2[du, g * H2:(g + 1) * H2]
                for d1 in range(2):
                    rows = slice(d1 * FH + s * H, d1 * FH + (s + 1) * H)
                    w_in[rows, s * G2 + col0:s * G2 + col0 + H2] = \
                        wih2[du, g * H2:(g + 1) * H2, d1 * H:(d1 + 1) * H].T
    w2 = np.concatenate([w2f, w2r], axis=1)                  # (FDH, 2*FG2)
    b2c = np.concatenate([bb2, np.zeros_like(bb2)], axis=1)  # (1, 2*FG2)

    ctx2c = np.zeros((U2, 2), np.float32)
    ctx2c[:H2, 0] = ctx2[:H2]
    ctx2c[H2p:H2p + H2, 1] = ctx2[H2:]
    sel2 = np.zeros((2, U2), np.float32)
    sel2[0, :H2p] = 1.0
    sel2[1, H2p:] = 1.0
    wfc_full = np.zeros((U2, 1), np.float32)
    wfc_full[:H2, 0] = wfc[:H2]
    wfc_full[H2p:H2p + H2, 0] = wfc[H2:]

    bf = jnp.bfloat16
    return {
        "w1": jnp.asarray(w1, bf), "b1": jnp.asarray(b1c),
        "whh1": jnp.asarray(whh1_big, bf),
        "ctx1": jnp.asarray(ctx1c, bf),
        "sel1f": jnp.asarray(sel1f), "sel1r": jnp.asarray(sel1r),
        "w2": jnp.asarray(w2, bf), "b2": jnp.asarray(b2c),
        "whh2": jnp.asarray(whh2_big, bf),
        "ctx2": jnp.asarray(ctx2c, bf), "sel2": jnp.asarray(sel2),
        "wfc": jnp.asarray(wfc_full), "bfc": jnp.asarray(bfc),
    }


# -----------------------------------------------------------------------------
# Pure-JAX reference (mirrors the PyTorch forward) for validation
# -----------------------------------------------------------------------------
def _lstm_scan(x_seq, wih, whh, b, H):
    B = x_seq.shape[1]
    hp = jax.lax.Precision.HIGHEST

    def step(carry, x_t):
        h, c = carry
        gates = (jnp.dot(x_t, wih.T, precision=hp)
                 + jnp.dot(h, whh.T, precision=hp) + b)
        i = jax.nn.sigmoid(gates[:, 0 * H:1 * H])
        f = jax.nn.sigmoid(gates[:, 1 * H:2 * H])
        g = jnp.tanh(gates[:, 2 * H:3 * H])
        o = jax.nn.sigmoid(gates[:, 3 * H:4 * H])
        c = f * c + i * g
        h = o * jnp.tanh(c)
        return (h, c), h

    init = (jnp.zeros((B, H), jnp.float32), jnp.zeros((B, H), jnp.float32))
    _, hs = lax.scan(step, init, x_seq)
    return hs                                            # (T, B, H)


def _bilstm_attn_ref(x_seq, wih_f, whh_f, b_f, wih_r, whh_r, b_r, ctx, H):
    hp = jax.lax.Precision.HIGHEST
    hs_f = _lstm_scan(x_seq, wih_f, whh_f, b_f, H)
    hs_r = _lstm_scan(x_seq[::-1], wih_r, whh_r, b_r, H)[::-1]
    hs = jnp.concatenate([hs_f, hs_r], axis=-1)          # (T, B, 2H)
    scores = jnp.einsum("tbk,k->tb", hs, ctx, precision=hp)
    alpha = jax.nn.softmax(scores, axis=0)               # (T, B)
    rep = jnp.einsum("tb,tbk->bk", alpha, hs, precision=hp)
    return rep, alpha


def raw_d_reference(iput, raw):
    B, T, F = iput.shape
    H = raw["whh1"].shape[3]
    H2 = raw["whh2"].shape[2]
    reps, alphas = [], []
    for f in range(F):
        x_seq = jnp.transpose(iput[:, :, f])[:, :, None]          # (T, B, 1)
        rep, alpha = _bilstm_attn_ref(
            x_seq,
            raw["wih1"][0, f][:, None], raw["whh1"][0, f], raw["b1"][0, f],
            raw["wih1"][1, f][:, None], raw["whh1"][1, f], raw["b1"][1, f],
            raw["ctx1"][f], H)
        reps.append(rep)                                          # (B, 2H)
        alphas.append(alpha.T)                                    # (B, T)
    bin_a = jnp.concatenate(alphas, axis=1)                       # (B, F*T)
    lvl2_in = jnp.stack(reps, axis=0)                             # (F, B, 2H)
    rep2, alpha2 = _bilstm_attn_ref(
        lvl2_in,
        raw["wih2"][0], raw["whh2"][0], raw["b2"][0],
        raw["wih2"][1], raw["whh2"][1], raw["b2"][1],
        raw["ctx2"], H2)
    pred = jnp.dot(rep2, raw["wfc"][:, None],
                   precision=jax.lax.Precision.HIGHEST) + raw["bfc"]
    return pred, alpha2.T, bin_a


# -----------------------------------------------------------------------------
if __name__ == "__main__":
    batch = 2
    n_bins = 8         # args.n_bins   (level-1 sequence length)
    n_features = 4     # args.n_features
    bin_rnn_size = 16  # args.bin_rnn_size

    key = jax.random.PRNGKey(0)
    k_in, k_par = jax.random.split(key)
    iput = jax.random.normal(k_in, (batch, n_bins, n_features), jnp.float32)
    raw = init_raw_params(k_par, n_features, bin_rnn_size)
    kparams = build_kernel_params(raw)

    fwd = jax.jit(raw_d_forward)
    pred, hm_attn, bin_a = fwd(iput, kparams)
    jax.block_until_ready((pred, hm_attn, bin_a))

    assert pred.shape == (batch, 1)
    assert hm_attn.shape == (batch, n_features)
    assert bin_a.shape == (batch, n_bins * n_features)
    assert bool(jnp.all(jnp.isfinite(pred)))
    # attention rows are softmaxes -> each sums to 1
    assert bool(jnp.allclose(jnp.sum(hm_attn, axis=-1), 1.0, atol=1e-4))
    assert bool(jnp.allclose(
        jnp.sum(bin_a.reshape(batch, n_features, n_bins), axis=-1), 1.0,
        atol=1e-4))

    # cross-check the fused bf16 Pallas kernel against the f32 JAX reference
    pred_r, hm_r, bin_r = raw_d_reference(iput, raw)
    np.testing.assert_allclose(np.asarray(pred), np.asarray(pred_r),
                               rtol=5e-2, atol=2e-2)
    np.testing.assert_allclose(np.asarray(hm_attn), np.asarray(hm_r),
                               rtol=5e-2, atol=2e-2)
    np.testing.assert_allclose(np.asarray(bin_a), np.asarray(bin_r),
                               rtol=5e-2, atol=2e-2)

    print("KERNEL_OK")
</pallas_src>

<mosaic_0001>
module attributes {stable_mosaic.version = 11 : i64} {
  func.func @_raw_d_kernel(%arg0: memref<2x8x4xf32, #tpu.memory_space<vmem>>, %arg1: memref<4x1024xbf16, #tpu.memory_space<vmem>>, %arg2: memref<1x1024xf32, #tpu.memory_space<vmem>>, %arg3: memref<128x512xbf16, #tpu.memory_space<vmem>>, %arg4: memref<128x8xbf16, #tpu.memory_space<vmem>>, %arg5: memref<4x128xf32, #tpu.memory_space<vmem>>, %arg6: memref<4x128xf32, #tpu.memory_space<vmem>>, %arg7: memref<128x1024xbf16, #tpu.memory_space<vmem>>, %arg8: memref<1x1024xf32, #tpu.memory_space<vmem>>, %arg9: memref<32x128xbf16, #tpu.memory_space<vmem>>, %arg10: memref<32x2xbf16, #tpu.memory_space<vmem>>, %arg11: memref<2x32xf32, #tpu.memory_space<vmem>>, %arg12: memref<32x1xf32, #tpu.memory_space<vmem>>, %arg13: memref<1x1xf32, #tpu.memory_space<vmem>>, %arg14: memref<2x128xf32, #tpu.memory_space<vmem>>) attributes {dimension_semantics = [], scalar_prefetch = 0 : i64, scratch_operands = 0 : i64, tpu.core_type = #tpu.core_type<tc>} {
    %c0 = arith.constant 0 : index
    %c0_0 = arith.constant 0 : index
    %c0_1 = arith.constant 0 : index
    %0 = vector.load %arg0[%c0, %c0_0, %c0_1] : memref<2x8x4xf32, #tpu.memory_space<vmem>>, vector<2x8x4xf32>
    %1 = vector.shape_cast %0 : vector<2x8x4xf32> to vector<16x4xf32>
    %2 = arith.truncf %1 : vector<16x4xf32> to vector<16x4xbf16>
    %c0_2 = arith.constant 0 : index
    %c0_3 = arith.constant 0 : index
    %3 = vector.load %arg1[%c0_2, %c0_3] : memref<4x1024xbf16, #tpu.memory_space<vmem>>, vector<4x1024xbf16>
    %cst = arith.constant dense<0.000000e+00> : vector<16x1024xf32>
    %4 = tpu.matmul %2, %3, %cst {dimension_numbers = #tpu.dot_dimension_numbers<[1], [0], [0], [1], [0, 0, 1, 1], [], []>} : vector<16x4xbf16>, vector<4x1024xbf16>, vector<16x1024xf32> -> vector<16x1024xf32>
    %c0_4 = arith.constant 0 : index
    %c0_5 = arith.constant 0 : index
    %5 = vector.load %arg2[%c0_4, %c0_5] : memref<1x1024xf32, #tpu.memory_space<vmem>>, vector<1x1024xf32>
    %6 = vector.broadcast %5 : vector<1x1024xf32> to vector<16x1024xf32>
    %7 = arith.addf %4, %6 : vector<16x1024xf32>
    %8 = vector.shape_cast %7 : vector<16x1024xf32> to vector<2x8x1024xf32>
    %c0_6 = arith.constant 0 : index
    %c0_7 = arith.constant 0 : index
    %9 = vector.load %arg3[%c0_6, %c0_7] : memref<128x512xbf16, #tpu.memory_space<vmem>>, vector<128x512xbf16>
    %c0_8 = arith.constant 0 : index
    %c0_9 = arith.constant 0 : index
    %10 = vector.load %arg4[%c0_8, %c0_9] : memref<128x8xbf16, #tpu.memory_space<vmem>>, vector<128x8xbf16>
    %cst_10 = arith.constant 0.000000e+00 : f32
    %11 = vector.broadcast %cst_10 : f32 to vector<2x128xf32>
    %cst_11 = arith.constant 0.000000e+00 : f32
    %12 = vector.broadcast %cst_11 : f32 to vector<2x128xf32>
    %13 = arith.truncf %11 : vector<2x128xf32> to vector<2x128xbf16>
    %14 = vector.extract_strided_slice %8 {offsets = [0, 0, 0], sizes = [2, 1, 512], strides = [1, 1, 1]} : vector<2x8x1024xf32> to vector<2x1x512xf32>
    %15 = vector.shape_cast %14 : vector<2x1x512xf32> to vector<2x512xf32>
    %16 = vector.extract_strided_slice %8 {offsets = [0, 7, 512], sizes = [2, 1, 512], strides = [1, 1, 1]} : vector<2x8x1024xf32> to vector<2x1x512xf32>
    %17 = vector.shape_cast %16 : vector<2x1x512xf32> to vector<2x512xf32>
    %18 = arith.addf %15, %17 : vector<2x512xf32>
    %cst_12 = arith.constant dense<0.000000e+00> : vector<2x512xf32>
    %19 = tpu.matmul %13, %9, %cst_12 {dimension_numbers = #tpu.dot_dimension_numbers<[1], [0], [0], [1], [0, 0, 1, 1], [], []>} : vector<2x128xbf16>, vector<128x512xbf16>, vector<2x512xf32> -> vector<2x512xf32>
    %20 = arith.addf %18, %19 : vector<2x512xf32>
    %21 = vector.extract_strided_slice %20 {offsets = [0, 0], sizes = [2, 128], strides = [1, 1]} : vector<2x512xf32> to vector<2x128xf32>
    %22 = arith.negf %21 : vector<2x128xf32>
    %23 = math.exp %22 : vector<2x128xf32>
    %cst_13 = arith.constant 1.000000e+00 : f32
    %24 = vector.broadcast %cst_13 : f32 to vector<2x128xf32>
    %25 = arith.addf %24, %23 : vector<2x128xf32>
    %26 = arith.divf %24, %25 : vector<2x128xf32>
    %27 = vector.extract_strided_slice %20 {offsets = [0, 128], sizes = [2, 128], strides = [1, 1]} : vector<2x512xf32> to vector<2x128xf32>
    %28 = arith.negf %27 : vector<2x128xf32>
    %29 = math.exp %28 : vector<2x128xf32>
    %cst_14 = arith.constant 1.000000e+00 : f32
    %30 = vector.broadcast %cst_14 : f32 to vector<2x128xf32>
    %31 = arith.addf %30, %29 : vector<2x128xf32>
    %32 = arith.divf %30, %31 : vector<2x128xf32>
    %33 = vector.extract_strided_slice %20 {offsets = [0, 256], sizes = [2, 128], strides = [1, 1]} : vector<2x512xf32> to vector<2x128xf32>
    %34 = math.tanh %33 : vector<2x128xf32>
    %35 = vector.extract_strided_slice %20 {offsets = [0, 384], sizes = [2, 128], strides = [1, 1]} : vector<2x512xf32> to vector<2x128xf32>
    %36 = arith.negf %35 : vector<2x128xf32>
    %37 = math.exp %36 : vector<2x128xf32>
    %cst_15 = arith.constant 1.000000e+00 : f32
    %38 = vector.broadcast %cst_15 : f32 to vector<2x128xf32>
    %39 = arith.addf %38, %37 : vector<2x128xf32>
    %40 = arith.divf %38, %39 : vector<2x128xf32>
    %41 = arith.mulf %32, %12 : vector<2x128xf32>
    %42 = arith.mulf %26, %34 : vector<2x128xf32>
    %43 = arith.addf %41, %42 : vector<2x128xf32>
    %44 = math.tanh %43 : vector<2x128xf32>
    %45 = arith.mulf %40, %44 : vector<2x128xf32>
    %46 = arith.truncf %45 : vector<2x128xf32> to vector<2x128xbf16>
    %cst_16 = arith.constant dense<0.000000e+00> : vector<2x8xf32>
    %47 = tpu.matmul %46, %10, %cst_16 {dimension_numbers = #tpu.dot_dimension_numbers<[1], [0], [0], [1], [0, 0, 1, 1], [], []>} : vector<2x128xbf16>, vector<128x8xbf16>, vector<2x8xf32> -> vector<2x8xf32>
    %48 = vector.extract_strided_slice %47 {offsets = [0, 0], sizes = [2, 4], strides = [1, 1]} : vector<2x8xf32> to vector<2x4xf32>
    %49 = vector.extract_strided_slice %47 {offsets = [0, 4], sizes = [2, 4], strides = [1, 1]} : vector<2x8xf32> to vector<2x4xf32>
    %50 = vector.extract_strided_slice %8 {offsets = [0, 1, 0], sizes = [2, 1, 512], strides = [1, 1, 1]} : vector<2x8x1024xf32> to vector<2x1x512xf32>
    %51 = vector.shape_cast %50 : vector<2x1x512xf32> to vector<2x512xf32>
    %52 = vector.extract_strided_slice %8 {offsets = [0, 6, 512], sizes = [2, 1, 512], strides = [1, 1, 1]} : vector<2x8x1024xf32> to vector<2x1x512xf32>
    %53 = vector.shape_cast %52 : vector<2x1x512xf32> to vector<2x512xf32>
    %54 = arith.addf %51, %53 : vector<2x512xf32>
    %cst_17 = arith.constant dense<0.000000e+00> : vector<2x512xf32>
    %55 = tpu.matmul %46, %9, %cst_17 {dimension_numbers = #tpu.dot_dimension_numbers<[1], [0], [0], [1], [0, 0, 1, 1], [], []>} : vector<2x128xbf16>, vector<128x512xbf16>, vector<2x512xf32> -> vector<2x512xf32>
    %56 = arith.addf %54, %55 : vector<2x512xf32>
    %57 = vector.extract_strided_slice %56 {offsets = [0, 0], sizes = [2, 128], strides = [1, 1]} : vector<2x512xf32> to vector<2x128xf32>
    %58 = arith.negf %57 : vector<2x128xf32>
    %59 = math.exp %58 : vector<2x128xf32>
    %cst_18 = arith.constant 1.000000e+00 : f32
    %60 = vector.broadcast %cst_18 : f32 to vector<2x128xf32>
    %61 = arith.addf %60, %59 : vector<2x128xf32>
    %62 = arith.divf %60, %61 : vector<2x128xf32>
    %63 = vector.extract_strided_slice %56 {offsets = [0, 128], sizes = [2, 128], strides = [1, 1]} : vector<2x512xf32> to vector<2x128xf32>
    %64 = arith.negf %63 : vector<2x128xf32>
    %65 = math.exp %64 : vector<2x128xf32>
    %cst_19 = arith.constant 1.000000e+00 : f32
    %66 = vector.broadcast %cst_19 : f32 to vector<2x128xf32>
    %67 = arith.addf %66, %65 : vector<2x128xf32>
    %68 = arith.divf %66, %67 : vector<2x128xf32>
    %69 = vector.extract_strided_slice %56 {offsets = [0, 256], sizes = [2, 128], strides = [1, 1]} : vector<2x512xf32> to vector<2x128xf32>
    %70 = math.tanh %69 : vector<2x128xf32>
    %71 = vector.extract_strided_slice %56 {offsets = [0, 384], sizes = [2, 128], strides = [1, 1]} : vector<2x512xf32> to vector<2x128xf32>
    %72 = arith.negf %71 : vector<2x128xf32>
    %73 = math.exp %72 : vector<2x128xf32>
    %cst_20 = arith.constant 1.000000e+00 : f32
    %74 = vector.broadcast %cst_20 : f32 to vector<2x128xf32>
    %75 = arith.addf %74, %73 : vector<2x128xf32>
    %76 = arith.divf %74, %75 : vector<2x128xf32>
    %77 = arith.mulf %68, %43 : vector<2x128xf32>
    %78 = arith.mulf %62, %70 : vector<2x128xf32>
    %79 = arith.addf %77, %78 : vector<2x128xf32>
    %80 = math.tanh %79 : vector<2x128xf32>
    %81 = arith.mulf %76, %80 : vector<2x128xf32>
    %82 = arith.truncf %81 : vector<2x128xf32> to vector<2x128xbf16>
    %cst_21 = arith.constant dense<0.000000e+00> : vector<2x8xf32>
    %83 = tpu.matmul %82, %10, %cst_21 {dimension_numbers = #tpu.dot_dimension_numbers<[1], [0], [0], [1], [0, 0, 1, 1], [], []>} : vector<2x128xbf16>, vector<128x8xbf16>, vector<2x8xf32> -> vector<2x8xf32>
    %84 = vector.extract_strided_slice %83 {offsets = [0, 0], sizes = [2, 4], strides = [1, 1]} : vector<2x8xf32> to vector<2x4xf32>
    %85 = vector.extract_strided_slice %83 {offsets = [0, 4], sizes = [2, 4], strides = [1, 1]} : vector<2x8xf32> to vector<2x4xf32>
    %86 = vector.extract_strided_slice %8 {offsets = [0, 2, 0], sizes = [2, 1, 512], strides = [1, 1, 1]} : vector<2x8x1024xf32> to vector<2x1x512xf32>
    %87 = vector.shape_cast %86 : vector<2x1x512xf32> to vector<2x512xf32>
    %88 = vector.extract_strided_slice %8 {offsets = [0, 5, 512], sizes = [2, 1, 512], strides = [1, 1, 1]} : vector<2x8x1024xf32> to vector<2x1x512xf32>
    %89 = vector.shape_cast %88 : vector<2x1x512xf32> to vector<2x512xf32>
    %90 = arith.addf %87, %89 : vector<2x512xf32>
    %cst_22 = arith.constant dense<0.000000e+00> : vector<2x512xf32>
    %91 = tpu.matmul %82, %9, %cst_22 {dimension_numbers = #tpu.dot_dimension_numbers<[1], [0], [0], [1], [0, 0, 1, 1], [], []>} : vector<2x128xbf16>, vector<128x512xbf16>, vector<2x512xf32> -> vector<2x512xf32>
    %92 = arith.addf %90, %91 : vector<2x512xf32>
    %93 = vector.extract_strided_slice %92 {offsets = [0, 0], sizes = [2, 128], strides = [1, 1]} : vector<2x512xf32> to vector<2x128xf32>
    %94 = arith.negf %93 : vector<2x128xf32>
    %95 = math.exp %94 : vector<2x128xf32>
    %cst_23 = arith.constant 1.000000e+00 : f32
    %96 = vector.broadcast %cst_23 : f32 to vector<2x128xf32>
    %97 = arith.addf %96, %95 : vector<2x128xf32>
    %98 = arith.divf %96, %97 : vector<2x128xf32>
    %99 = vector.extract_strided_slice %92 {offsets = [0, 128], sizes = [2, 128], strides = [1, 1]} : vector<2x512xf32> to vector<2x128xf32>
    %100 = arith.negf %99 : vector<2x128xf32>
    %101 = math.exp %100 : vector<2x128xf32>
    %cst_24 = arith.constant 1.000000e+00 : f32
    %102 = vector.broadcast %cst_24 : f32 to vector<2x128xf32>
    %103 = arith.addf %102, %101 : vector<2x128xf32>
    %104 = arith.divf %102, %103 : vector<2x128xf32>
    %105 = vector.extract_strided_slice %92 {offsets = [0, 256], sizes = [2, 128], strides = [1, 1]} : vector<2x512xf32> to vector<2x128xf32>
    %106 = math.tanh %105 : vector<2x128xf32>
    %107 = vector.extract_strided_slice %92 {offsets = [0, 384], sizes = [2, 128], strides = [1, 1]} : vector<2x512xf32> to vector<2x128xf32>
    %108 = arith.negf %107 : vector<2x128xf32>
    %109 = math.exp %108 : vector<2x128xf32>
    %cst_25 = arith.constant 1.000000e+00 : f32
    %110 = vector.broadcast %cst_25 : f32 to vector<2x128xf32>
    %111 = arith.addf %110, %109 : vector<2x128xf32>
    %112 = arith.divf %110, %111 : vector<2x128xf32>
    %113 = arith.mulf %104, %79 : vector<2x128xf32>
    %114 = arith.mulf %98, %106 : vector<2x128xf32>
    %115 = arith.addf %113, %114 : vector<2x128xf32>
    %116 = math.tanh %115 : vector<2x128xf32>
    %117 = arith.mulf %112, %116 : vector<2x128xf32>
    %118 = arith.truncf %117 : vector<2x128xf32> to vector<2x128xbf16>
    %cst_26 = arith.constant dense<0.000000e+00> : vector<2x8xf32>
    %119 = tpu.matmul %118, %10, %cst_26 {dimension_numbers = #tpu.dot_dimension_numbers<[1], [0], [0], [1], [0, 0, 1, 1], [], []>} : vector<2x128xbf16>, vector<128x8xbf16>, vector<2x8xf32> -> vector<2x8xf32>
    %120 = vector.extract_strided_slice %119 {offsets = [0, 0], sizes = [2, 4], strides = [1, 1]} : vector<2x8xf32> to vector<2x4xf32>
    %121 = vector.extract_strided_slice %119 {offsets = [0, 4], sizes = [2, 4], strides = [1, 1]} : vector<2x8xf32> to vector<2x4xf32>
    %122 = vector.extract_strided_slice %8 {offsets = [0, 3, 0], sizes = [2, 1, 512], strides = [1, 1, 1]} : vector<2x8x1024xf32> to vector<2x1x512xf32>
    %123 = vector.shape_cast %122 : vector<2x1x512xf32> to vector<2x512xf32>
    %124 = vector.extract_strided_slice %8 {offsets = [0, 4, 512], sizes = [2, 1, 512], strides = [1, 1, 1]} : vector<2x8x1024xf32> to vector<2x1x512xf32>
    %125 = vector.shape_cast %124 : vector<2x1x512xf32> to vector<2x512xf32>
    %126 = arith.addf %123, %125 : vector<2x512xf32>
    %cst_27 = arith.constant dense<0.000000e+00> : vector<2x512xf32>
    %127 = tpu.matmul %118, %9, %cst_27 {dimension_numbers = #tpu.dot_dimension_numbers<[1], [0], [0], [1], [0, 0, 1, 1], [], []>} : vector<2x128xbf16>, vector<128x512xbf16>, vector<2x512xf32> -> vector<2x512xf32>
    %128 = arith.addf %126, %127 : vector<2x512xf32>
    %129 = vector.extract_strided_slice %128 {offsets = [0, 0], sizes = [2, 128], strides = [1, 1]} : vector<2x512xf32> to vector<2x128xf32>
    %130 = arith.negf %129 : vector<2x128xf32>
    %131 = math.exp %130 : vector<2x128xf32>
    %cst_28 = arith.constant 1.000000e+00 : f32
    %132 = vector.broadcast %cst_28 : f32 to vector<2x128xf32>
    %133 = arith.addf %132, %131 : vector<2x128xf32>
    %134 = arith.divf %132, %133 : vector<2x128xf32>
    %135 = vector.extract_strided_slice %128 {offsets = [0, 128], sizes = [2, 128], strides = [1, 1]} : vector<2x512xf32> to vector<2x128xf32>
    %136 = arith.negf %135 : vector<2x128xf32>
    %137 = math.exp %136 : vector<2x128xf32>
    %cst_29 = arith.constant 1.000000e+00 : f32
    %138 = vector.broadcast %cst_29 : f32 to vector<2x128xf32>
    %139 = arith.addf %138, %137 : vector<2x128xf32>
    %140 = arith.divf %138, %139 : vector<2x128xf32>
    %141 = vector.extract_strided_slice %128 {offsets = [0, 256], sizes = [2, 128], strides = [1, 1]} : vector<2x512xf32> to vector<2x128xf32>
    %142 = math.tanh %141 : vector<2x128xf32>
    %143 = vector.extract_strided_slice %128 {offsets = [0, 384], sizes = [2, 128], strides = [1, 1]} : vector<2x512xf32> to vector<2x128xf32>
    %144 = arith.negf %143 : vector<2x128xf32>
    %145 = math.exp %144 : vector<2x128xf32>
    %cst_30 = arith.constant 1.000000e+00 : f32
    %146 = vector.broadcast %cst_30 : f32 to vector<2x128xf32>
    %147 = arith.addf %146, %145 : vector<2x128xf32>
    %148 = arith.divf %146, %147 : vector<2x128xf32>
    %149 = arith.mulf %140, %115 : vector<2x128xf32>
    %150 = arith.mulf %134, %142 : vector<2x128xf32>
    %151 = arith.addf %149, %150 : vector<2x128xf32>
    %152 = math.tanh %151 : vector<2x128xf32>
    %153 = arith.mulf %148, %152 : vector<2x128xf32>
    %154 = arith.truncf %153 : vector<2x128xf32> to vector<2x128xbf16>
    %cst_31 = arith.constant dense<0.000000e+00> : vector<2x8xf32>
    %155 = tpu.matmul %154, %10, %cst_31 {dimension_numbers = #tpu.dot_dimension_numbers<[1], [0], [0], [1], [0, 0, 1, 1], [], []>} : vector<2x128xbf16>, vector<128x8xbf16>, vector<2x8xf32> -> vector<2x8xf32>
    %156 = vector.extract_strided_slice %155 {offsets = [0, 0], sizes = [2, 4], strides = [1, 1]} : vector<2x8xf32> to vector<2x4xf32>
    %157 = vector.extract_strided_slice %155 {offsets = [0, 4], sizes = [2, 4], strides = [1, 1]} : vector<2x8xf32> to vector<2x4xf32>
    %158 = vector.extract_strided_slice %8 {offsets = [0, 4, 0], sizes = [2, 1, 512], strides = [1, 1, 1]} : vector<2x8x1024xf32> to vector<2x1x512xf32>
    %159 = vector.shape_cast %158 : vector<2x1x512xf32> to vector<2x512xf32>
    %160 = vector.extract_strided_slice %8 {offsets = [0, 3, 512], sizes = [2, 1, 512], strides = [1, 1, 1]} : vector<2x8x1024xf32> to vector<2x1x512xf32>
    %161 = vector.shape_cast %160 : vector<2x1x512xf32> to vector<2x512xf32>
    %162 = arith.addf %159, %161 : vector<2x512xf32>
    %cst_32 = arith.constant dense<0.000000e+00> : vector<2x512xf32>
    %163 = tpu.matmul %154, %9, %cst_32 {dimension_numbers = #tpu.dot_dimension_numbers<[1], [0], [0], [1], [0, 0, 1, 1], [], []>} : vector<2x128xbf16>, vector<128x512xbf16>, vector<2x512xf32> -> vector<2x512xf32>
    %164 = arith.addf %162, %163 : vector<2x512xf32>
    %165 = vector.extract_strided_slice %164 {offsets = [0, 0], sizes = [2, 128], strides = [1, 1]} : vector<2x512xf32> to vector<2x128xf32>
    %166 = arith.negf %165 : vector<2x128xf32>
    %167 = math.exp %166 : vector<2x128xf32>
    %cst_33 = arith.constant 1.000000e+00 : f32
    %168 = vector.broadcast %cst_33 : f32 to vector<2x128xf32>
    %169 = arith.addf %168, %167 : vector<2x128xf32>
    %170 = arith.divf %168, %169 : vector<2x128xf32>
    %171 = vector.extract_strided_slice %164 {offsets = [0, 128], sizes = [2, 128], strides = [1, 1]} : vector<2x512xf32> to vector<2x128xf32>
    %172 = arith.negf %171 : vector<2x128xf32>
    %173 = math.exp %172 : vector<2x128xf32>
    %cst_34 = arith.constant 1.000000e+00 : f32
    %174 = vector.broadcast %cst_34 : f32 to vector<2x128xf32>
    %175 = arith.addf %174, %173 : vector<2x128xf32>
    %176 = arith.divf %174, %175 : vector<2x128xf32>
    %177 = vector.extract_strided_slice %164 {offsets = [0, 256], sizes = [2, 128], strides = [1, 1]} : vector<2x512xf32> to vector<2x128xf32>
    %178 = math.tanh %177 : vector<2x128xf32>
    %179 = vector.extract_strided_slice %164 {offsets = [0, 384], sizes = [2, 128], strides = [1, 1]} : vector<2x512xf32> to vector<2x128xf32>
    %180 = arith.negf %179 : vector<2x128xf32>
    %181 = math.exp %180 : vector<2x128xf32>
    %cst_35 = arith.constant 1.000000e+00 : f32
    %182 = vector.broadcast %cst_35 : f32 to vector<2x128xf32>
    %183 = arith.addf %182, %181 : vector<2x128xf32>
    %184 = arith.divf %182, %183 : vector<2x128xf32>
    %185 = arith.mulf %176, %151 : vector<2x128xf32>
    %186 = arith.mulf %170, %178 : vector<2x128xf32>
    %187 = arith.addf %185, %186 : vector<2x128xf32>
    %188 = math.tanh %187 : vector<2x128xf32>
    %189 = arith.mulf %184, %188 : vector<2x128xf32>
    %190 = arith.truncf %189 : vector<2x128xf32> to vector<2x128xbf16>
    %cst_36 = arith.constant dense<0.000000e+00> : vector<2x8xf32>
    %191 = tpu.matmul %190, %10, %cst_36 {dimension_numbers = #tpu.dot_dimension_numbers<[1], [0], [0], [1], [0, 0, 1, 1], [], []>} : vector<2x128xbf16>, vector<128x8xbf16>, vector<2x8xf32> -> vector<2x8xf32>
    %192 = vector.extract_strided_slice %191 {offsets = [0, 0], sizes = [2, 4], strides = [1, 1]} : vector<2x8xf32> to vector<2x4xf32>
    %193 = vector.extract_strided_slice %191 {offsets = [0, 4], sizes = [2, 4], strides = [1, 1]} : vector<2x8xf32> to vector<2x4xf32>
    %194 = vector.extract_strided_slice %8 {offsets = [0, 5, 0], sizes = [2, 1, 512], strides = [1, 1, 1]} : vector<2x8x1024xf32> to vector<2x1x512xf32>
    %195 = vector.shape_cast %194 : vector<2x1x512xf32> to vector<2x512xf32>
    %196 = vector.extract_strided_slice %8 {offsets = [0, 2, 512], sizes = [2, 1, 512], strides = [1, 1, 1]} : vector<2x8x1024xf32> to vector<2x1x512xf32>
    %197 = vector.shape_cast %196 : vector<2x1x512xf32> to vector<2x512xf32>
    %198 = arith.addf %195, %197 : vector<2x512xf32>
    %cst_37 = arith.constant dense<0.000000e+00> : vector<2x512xf32>
    %199 = tpu.matmul %190, %9, %cst_37 {dimension_numbers = #tpu.dot_dimension_numbers<[1], [0], [0], [1], [0, 0, 1, 1], [], []>} : vector<2x128xbf16>, vector<128x512xbf16>, vector<2x512xf32> -> vector<2x512xf32>
    %200 = arith.addf %198, %199 : vector<2x512xf32>
    %201 = vector.extract_strided_slice %200 {offsets = [0, 0], sizes = [2, 128], strides = [1, 1]} : vector<2x512xf32> to vector<2x128xf32>
    %202 = arith.negf %201 : vector<2x128xf32>
    %203 = math.exp %202 : vector<2x128xf32>
    %cst_38 = arith.constant 1.000000e+00 : f32
    %204 = vector.broadcast %cst_38 : f32 to vector<2x128xf32>
    %205 = arith.addf %204, %203 : vector<2x128xf32>
    %206 = arith.divf %204, %205 : vector<2x128xf32>
    %207 = vector.extract_strided_slice %200 {offsets = [0, 128], sizes = [2, 128], strides = [1, 1]} : vector<2x512xf32> to vector<2x128xf32>
    %208 = arith.negf %207 : vector<2x128xf32>
    %209 = math.exp %208 : vector<2x128xf32>
    %cst_39 = arith.constant 1.000000e+00 : f32
    %210 = vector.broadcast %cst_39 : f32 to vector<2x128xf32>
    %211 = arith.addf %210, %209 : vector<2x128xf32>
    %212 = arith.divf %210, %211 : vector<2x128xf32>
    %213 = vector.extract_strided_slice %200 {offsets = [0, 256], sizes = [2, 128], strides = [1, 1]} : vector<2x512xf32> to vector<2x128xf32>
    %214 = math.tanh %213 : vector<2x128xf32>
    %215 = vector.extract_strided_slice %200 {offsets = [0, 384], sizes = [2, 128], strides = [1, 1]} : vector<2x512xf32> to vector<2x128xf32>
    %216 = arith.negf %215 : vector<2x128xf32>
    %217 = math.exp %216 : vector<2x128xf32>
    %cst_40 = arith.constant 1.000000e+00 : f32
    %218 = vector.broadcast %cst_40 : f32 to vector<2x128xf32>
    %219 = arith.addf %218, %217 : vector<2x128xf32>
    %220 = arith.divf %218, %219 : vector<2x128xf32>
    %221 = arith.mulf %212, %187 : vector<2x128xf32>
    %222 = arith.mulf %206, %214 : vector<2x128xf32>
    %223 = arith.addf %221, %222 : vector<2x128xf32>
    %224 = math.tanh %223 : vector<2x128xf32>
    %225 = arith.mulf %220, %224 : vector<2x128xf32>
    %226 = arith.truncf %225 : vector<2x128xf32> to vector<2x128xbf16>
    %cst_41 = arith.constant dense<0.000000e+00> : vector<2x8xf32>
    %227 = tpu.matmul %226, %10, %cst_41 {dimension_numbers = #tpu.dot_dimension_numbers<[1], [0], [0], [1], [0, 0, 1, 1], [], []>} : vector<2x128xbf16>, vector<128x8xbf16>, vector<2x8xf32> -> vector<2x8xf32>
    %228 = vector.extract_strided_slice %227 {offsets = [0, 0], sizes = [2, 4], strides = [1, 1]} : vector<2x8xf32> to vector<2x4xf32>
    %229 = vector.extract_strided_slice %227 {offsets = [0, 4], sizes = [2, 4], strides = [1, 1]} : vector<2x8xf32> to vector<2x4xf32>
    %230 = vector.extract_strided_slice %8 {offsets = [0, 6, 0], sizes = [2, 1, 512], strides = [1, 1, 1]} : vector<2x8x1024xf32> to vector<2x1x512xf32>
    %231 = vector.shape_cast %230 : vector<2x1x512xf32> to vector<2x512xf32>
    %232 = vector.extract_strided_slice %8 {offsets = [0, 1, 512], sizes = [2, 1, 512], strides = [1, 1, 1]} : vector<2x8x1024xf32> to vector<2x1x512xf32>
    %233 = vector.shape_cast %232 : vector<2x1x512xf32> to vector<2x512xf32>
    %234 = arith.addf %231, %233 : vector<2x512xf32>
    %cst_42 = arith.constant dense<0.000000e+00> : vector<2x512xf32>
    %235 = tpu.matmul %226, %9, %cst_42 {dimension_numbers = #tpu.dot_dimension_numbers<[1], [0], [0], [1], [0, 0, 1, 1], [], []>} : vector<2x128xbf16>, vector<128x512xbf16>, vector<2x512xf32> -> vector<2x512xf32>
    %236 = arith.addf %234, %235 : vector<2x512xf32>
    %237 = vector.extract_strided_slice %236 {offsets = [0, 0], sizes = [2, 128], strides = [1, 1]} : vector<2x512xf32> to vector<2x128xf32>
    %238 = arith.negf %237 : vector<2x128xf32>
    %239 = math.exp %238 : vector<2x128xf32>
    %cst_43 = arith.constant 1.000000e+00 : f32
    %240 = vector.broadcast %cst_43 : f32 to vector<2x128xf32>
    %241 = arith.addf %240, %239 : vector<2x128xf32>
    %242 = arith.divf %240, %241 : vector<2x128xf32>
    %243 = vector.extract_strided_slice %236 {offsets = [0, 128], sizes = [2, 128], strides = [1, 1]} : vector<2x512xf32> to vector<2x128xf32>
    %244 = arith.negf %243 : vector<2x128xf32>
    %245 = math.exp %244 : vector<2x128xf32>
    %cst_44 = arith.constant 1.000000e+00 : f32
    %246 = vector.broadcast %cst_44 : f32 to vector<2x128xf32>
    %247 = arith.addf %246, %245 : vector<2x128xf32>
    %248 = arith.divf %246, %247 : vector<2x128xf32>
    %249 = vector.extract_strided_slice %236 {offsets = [0, 256], sizes = [2, 128], strides = [1, 1]} : vector<2x512xf32> to vector<2x128xf32>
    %250 = math.tanh %249 : vector<2x128xf32>
    %251 = vector.extract_strided_slice %236 {offsets = [0, 384], sizes = [2, 128], strides = [1, 1]} : vector<2x512xf32> to vector<2x128xf32>
    %252 = arith.negf %251 : vector<2x128xf32>
    %253 = math.exp %252 : vector<2x128xf32>
    %cst_45 = arith.constant 1.000000e+00 : f32
    %254 = vector.broadcast %cst_45 : f32 to vector<2x128xf32>
    %255 = arith.addf %254, %253 : vector<2x128xf32>
    %256 = arith.divf %254, %255 : vector<2x128xf32>
    %257 = arith.mulf %248, %223 : vector<2x128xf32>
    %258 = arith.mulf %242, %250 : vector<2x128xf32>
    %259 = arith.addf %257, %258 : vector<2x128xf32>
    %260 = math.tanh %259 : vector<2x128xf32>
    %261 = arith.mulf %256, %260 : vector<2x128xf32>
    %262 = arith.truncf %261 : vector<2x128xf32> to vector<2x128xbf16>
    %cst_46 = arith.constant dense<0.000000e+00> : vector<2x8xf32>
    %263 = tpu.matmul %262, %10, %cst_46 {dimension_numbers = #tpu.dot_dimension_numbers<[1], [0], [0], [1], [0, 0, 1, 1], [], []>} : vector<2x128xbf16>, vector<128x8xbf16>, vector<2x8xf32> -> vector<2x8xf32>
    %264 = vector.extract_strided_slice %263 {offsets = [0, 0], sizes = [2, 4], strides = [1, 1]} : vector<2x8xf32> to vector<2x4xf32>
    %265 = vector.extract_strided_slice %263 {offsets = [0, 4], sizes = [2, 4], strides = [1, 1]} : vector<2x8xf32> to vector<2x4xf32>
    %266 = vector.extract_strided_slice %8 {offsets = [0, 7, 0], sizes = [2, 1, 512], strides = [1, 1, 1]} : vector<2x8x1024xf32> to vector<2x1x512xf32>
    %267 = vector.shape_cast %266 : vector<2x1x512xf32> to vector<2x512xf32>
    %268 = vector.extract_strided_slice %8 {offsets = [0, 0, 512], sizes = [2, 1, 512], strides = [1, 1, 1]} : vector<2x8x1024xf32> to vector<2x1x512xf32>
    %269 = vector.shape_cast %268 : vector<2x1x512xf32> to vector<2x512xf32>
    %270 = arith.addf %267, %269 : vector<2x512xf32>
    %cst_47 = arith.constant dense<0.000000e+00> : vector<2x512xf32>
    %271 = tpu.matmul %262, %9, %cst_47 {dimension_numbers = #tpu.dot_dimension_numbers<[1], [0], [0], [1], [0, 0, 1, 1], [], []>} : vector<2x128xbf16>, vector<128x512xbf16>, vector<2x512xf32> -> vector<2x512xf32>
    %272 = arith.addf %270, %271 : vector<2x512xf32>
    %273 = vector.extract_strided_slice %272 {offsets = [0, 0], sizes = [2, 128], strides = [1, 1]} : vector<2x512xf32> to vector<2x128xf32>
    %274 = arith.negf %273 : vector<2x128xf32>
    %275 = math.exp %274 : vector<2x128xf32>
    %cst_48 = arith.constant 1.000000e+00 : f32
    %276 = vector.broadcast %cst_48 : f32 to vector<2x128xf32>
    %277 = arith.addf %276, %275 : vector<2x128xf32>
    %278 = arith.divf %276, %277 : vector<2x128xf32>
    %279 = vector.extract_strided_slice %272 {offsets = [0, 128], sizes = [2, 128], strides = [1, 1]} : vector<2x512xf32> to vector<2x128xf32>
    %280 = arith.negf %279 : vector<2x128xf32>
    %281 = math.exp %280 : vector<2x128xf32>
    %cst_49 = arith.constant 1.000000e+00 : f32
    %282 = vector.broadcast %cst_49 : f32 to vector<2x128xf32>
    %283 = arith.addf %282, %281 : vector<2x128xf32>
    %284 = arith.divf %282, %283 : vector<2x128xf32>
    %285 = vector.extract_strided_slice %272 {offsets = [0, 256], sizes = [2, 128], strides = [1, 1]} : vector<2x512xf32> to vector<2x128xf32>
    %286 = math.tanh %285 : vector<2x128xf32>
    %287 = vector.extract_strided_slice %272 {offsets = [0, 384], sizes = [2, 128], strides = [1, 1]} : vector<2x512xf32> to vector<2x128xf32>
    %288 = arith.negf %287 : vector<2x128xf32>
    %289 = math.exp %288 : vector<2x128xf32>
    %cst_50 = arith.constant 1.000000e+00 : f32
    %290 = vector.broadcast %cst_50 : f32 to vector<2x128xf32>
    %291 = arith.addf %290, %289 : vector<2x128xf32>
    %292 = arith.divf %290, %291 : vector<2x128xf32>
    %293 = arith.mulf %284, %259 : vector<2x128xf32>
    %294 = arith.mulf %278, %286 : vector<2x128xf32>
    %295 = arith.addf %293, %294 : vector<2x128xf32>
    %296 = math.tanh %295 : vector<2x128xf32>
    %297 = arith.mulf %292, %296 : vector<2x128xf32>
    %298 = arith.truncf %297 : vector<2x128xf32> to vector<2x128xbf16>
    %cst_51 = arith.constant dense<0.000000e+00> : vector<2x8xf32>
    %299 = tpu.matmul %298, %10, %cst_51 {dimension_numbers = #tpu.dot_dimension_numbers<[1], [0], [0], [1], [0, 0, 1, 1], [], []>} : vector<2x128xbf16>, vector<128x8xbf16>, vector<2x8xf32> -> vector<2x8xf32>
    %300 = vector.extract_strided_slice %299 {offsets = [0, 0], sizes = [2, 4], strides = [1, 1]} : vector<2x8xf32> to vector<2x4xf32>
    %301 = vector.extract_strided_slice %299 {offsets = [0, 4], sizes = [2, 4], strides = [1, 1]} : vector<2x8xf32> to vector<2x4xf32>
    %302 = arith.addf %48, %301 : vector<2x4xf32>
    %303 = arith.addf %84, %265 : vector<2x4xf32>
    %304 = arith.addf %120, %229 : vector<2x4xf32>
    %305 = arith.addf %156, %193 : vector<2x4xf32>
    %306 = arith.addf %192, %157 : vector<2x4xf32>
    %307 = arith.addf %228, %121 : vector<2x4xf32>
    %308 = arith.addf %264, %85 : vector<2x4xf32>
    %309 = arith.addf %300, %49 : vector<2x4xf32>
    %310 = arith.maximumf %302, %303 : vector<2x4xf32>
    %311 = arith.maximumf %310, %304 : vector<2x4xf32>
    %312 = arith.maximumf %311, %305 : vector<2x4xf32>
    %313 = arith.maximumf %312, %306 : vector<2x4xf32>
    %314 = arith.maximumf %313, %307 : vector<2x4xf32>
    %315 = arith.maximumf %314, %308 : vector<2x4xf32>
    %316 = arith.maximumf %315, %309 : vector<2x4xf32>
    %317 = arith.subf %302, %316 : vector<2x4xf32>
    %318 = math.exp %317 : vector<2x4xf32>
    %319 = arith.subf %303, %316 : vector<2x4xf32>
    %320 = math.exp %319 : vector<2x4xf32>
    %321 = arith.subf %304, %316 : vector<2x4xf32>
    %322 = math.exp %321 : vector<2x4xf32>
    %323 = arith.subf %305, %316 : vector<2x4xf32>
    %324 = math.exp %323 : vector<2x4xf32>
    %325 = arith.subf %306, %316 : vector<2x4xf32>
    %326 = math.exp %325 : vector<2x4xf32>
    %327 = arith.subf %307, %316 : vector<2x4xf32>
    %328 = math.exp %327 : vector<2x4xf32>
    %329 = arith.subf %308, %316 : vector<2x4xf32>
    %330 = math.exp %329 : vector<2x4xf32>
    %331 = arith.subf %309, %316 : vector<2x4xf32>
    %332 = math.exp %331 : vector<2x4xf32>
    %333 = arith.addf %318, %320 : vector<2x4xf32>
    %334 = arith.addf %333, %322 : vector<2x4xf32>
    %335 = arith.addf %334, %324 : vector<2x4xf32>
    %336 = arith.addf %335, %326 : vector<2x4xf32>
    %337 = arith.addf %336, %328 : vector<2x4xf32>
    %338 = arith.addf %337, %330 : vector<2x4xf32>
    %339 = arith.addf %338, %332 : vector<2x4xf32>
    %cst_52 = arith.constant 1.000000e+00 : f32
    %340 = vector.broadcast %cst_52 : f32 to vector<2x4xf32>
    %341 = arith.divf %340, %339 : vector<2x4xf32>
    %342 = arith.mulf %318, %341 : vector<2x4xf32>
    %343 = arith.mulf %320, %341 : vector<2x4xf32>
    %344 = arith.mulf %322, %341 : vector<2x4xf32>
    %345 = arith.mulf %324, %341 : vector<2x4xf32>
    %346 = arith.mulf %326, %341 : vector<2x4xf32>
    %347 = arith.mulf %328, %341 : vector<2x4xf32>
    %348 = arith.mulf %330, %341 : vector<2x4xf32>
    %349 = arith.mulf %332, %341 : vector<2x4xf32>
    %350 = tpu.concatenate %342, %343, %344, %345, %346, %347, %348, %349 in 0 : vector<2x4xf32>, vector<2x4xf32>, vector<2x4xf32>, vector<2x4xf32>, vector<2x4xf32>, vector<2x4xf32>, vector<2x4xf32>, vector<2x4xf32> -> vector<16x4xf32>
    %351 = tpu.concatenate %349, %348, %347, %346, %345, %344, %343, %342 in 0 : vector<2x4xf32>, vector<2x4xf32>, vector<2x4xf32>, vector<2x4xf32>, vector<2x4xf32>, vector<2x4xf32>, vector<2x4xf32>, vector<2x4xf32> -> vector<16x4xf32>
    %c0_53 = arith.constant 0 : index
    %c0_54 = arith.constant 0 : index
    %352 = vector.load %arg5[%c0_53, %c0_54] : memref<4x128xf32, #tpu.memory_space<vmem>>, vector<4x128xf32>
    %cst_55 = arith.constant dense<0.000000e+00> : vector<16x128xf32>
    %353 = tpu.matmul %350, %352, %cst_55 {dimension_numbers = #tpu.dot_dimension_numbers<[1], [0], [0], [1], [0, 0, 1, 1], [], []>} : vector<16x4xf32>, vector<4x128xf32>, vector<16x128xf32> -> vector<16x128xf32>
    %c0_56 = arith.constant 0 : index
    %c0_57 = arith.constant 0 : index
    %354 = vector.load %arg6[%c0_56, %c0_57] : memref<4x128xf32, #tpu.memory_space<vmem>>, vector<4x128xf32>
    %cst_58 = arith.constant dense<0.000000e+00> : vector<16x128xf32>
    %355 = tpu.matmul %351, %354, %cst_58 {dimension_numbers = #tpu.dot_dimension_numbers<[1], [0], [0], [1], [0, 0, 1, 1], [], []>} : vector<16x4xf32>, vector<4x128xf32>, vector<16x128xf32> -> vector<16x128xf32>
    %356 = arith.addf %353, %355 : vector<16x128xf32>
    %357 = vector.extract_strided_slice %356 {offsets = [0, 0], sizes = [2, 128], strides = [1, 1]} : vector<16x128xf32> to vector<2x128xf32>
    %358 = arith.mulf %357, %45 : vector<2x128xf32>
    %359 = vector.extract_strided_slice %356 {offsets = [2, 0], sizes = [2, 128], strides = [1, 1]} : vector<16x128xf32> to vector<2x128xf32>
    %360 = arith.mulf %359, %81 : vector<2x128xf32>
    %361 = arith.addf %358, %360 : vector<2x128xf32>
    %362 = vector.extract_strided_slice %356 {offsets = [4, 0], sizes = [2, 128], strides = [1, 1]} : vector<16x128xf32> to vector<2x128xf32>
    %363 = arith.mulf %362, %117 : vector<2x128xf32>
    %364 = arith.addf %361, %363 : vector<2x128xf32>
    %365 = vector.extract_strided_slice %356 {offsets = [6, 0], sizes = [2, 128], strides = [1, 1]} : vector<16x128xf32> to vector<2x128xf32>
    %366 = arith.mulf %365, %153 : vector<2x128xf32>
    %367 = arith.addf %364, %366 : vector<2x128xf32>
    %368 = vector.extract_strided_slice %356 {offsets = [8, 0], sizes = [2, 128], strides = [1, 1]} : vector<16x128xf32> to vector<2x128xf32>
    %369 = arith.mulf %368, %189 : vector<2x128xf32>
    %370 = arith.addf %367, %369 : vector<2x128xf32>
    %371 = vector.extract_strided_slice %356 {offsets = [10, 0], sizes = [2, 128], strides = [1, 1]} : vector<16x128xf32> to vector<2x128xf32>
    %372 = arith.mulf %371, %225 : vector<2x128xf32>
    %373 = arith.addf %370, %372 : vector<2x128xf32>
    %374 = vector.extract_strided_slice %356 {offsets = [12, 0], sizes = [2, 128], strides = [1, 1]} : vector<16x128xf32> to vector<2x128xf32>
    %375 = arith.mulf %374, %261 : vector<2x128xf32>
    %376 = arith.addf %373, %375 : vector<2x128xf32>
    %377 = vector.extract_strided_slice %356 {offsets = [14, 0], sizes = [2, 128], strides = [1, 1]} : vector<16x128xf32> to vector<2x128xf32>
    %378 = arith.mulf %377, %297 : vector<2x128xf32>
    %379 = arith.addf %376, %378 : vector<2x128xf32>
    %380 = arith.truncf %379 : vector<2x128xf32> to vector<2x128xbf16>
    %c0_59 = arith.constant 0 : index
    %c0_60 = arith.constant 0 : index
    %381 = vector.load %arg7[%c0_59, %c0_60] : memref<128x1024xbf16, #tpu.memory_space<vmem>>, vector<128x1024xbf16>
    %cst_61 = arith.constant dense<0.000000e+00> : vector<2x1024xf32>
    %382 = tpu.matmul %380, %381, %cst_61 {dimension_numbers = #tpu.dot_dimension_numbers<[1], [0], [0], [1], [0, 0, 1, 1], [], []>} : vector<2x128xbf16>, vector<128x1024xbf16>, vector<2x1024xf32> -> vector<2x1024xf32>
    %c0_62 = arith.constant 0 : index
    %c0_63 = arith.constant 0 : index
    %383 = vector.load %arg8[%c0_62, %c0_63] : memref<1x1024xf32, #tpu.memory_space<vmem>>, vector<1x1024xf32>
    %384 = vector.broadcast %383 : vector<1x1024xf32> to vector<2x1024xf32>
    %385 = arith.addf %382, %384 : vector<2x1024xf32>
    %c0_64 = arith.constant 0 : index
    %c0_65 = arith.constant 0 : index
    %386 = vector.load %arg9[%c0_64, %c0_65] : memref<32x128xbf16, #tpu.memory_space<vmem>>, vector<32x128xbf16>
    %c0_66 = arith.constant 0 : index
    %c0_67 = arith.constant 0 : index
    %387 = vector.load %arg10[%c0_66, %c0_67] : memref<32x2xbf16, #tpu.memory_space<vmem>>, vector<32x2xbf16>
    %cst_68 = arith.constant 0.000000e+00 : f32
    %388 = vector.broadcast %cst_68 : f32 to vector<2x32xf32>
    %cst_69 = arith.constant 0.000000e+00 : f32
    %389 = vector.broadcast %cst_69 : f32 to vector<2x32xf32>
    %390 = arith.truncf %388 : vector<2x32xf32> to vector<2x32xbf16>
    %391 = vector.extract_strided_slice %385 {offsets = [0, 0], sizes = [2, 128], strides = [1, 1]} : vector<2x1024xf32> to vector<2x128xf32>
    %392 = vector.extract_strided_slice %385 {offsets = [0, 896], sizes = [2, 128], strides = [1, 1]} : vector<2x1024xf32> to vector<2x128xf32>
    %393 = arith.addf %391, %392 : vector<2x128xf32>
    %cst_70 = arith.constant dense<0.000000e+00> : vector<2x128xf32>
    %394 = tpu.matmul %390, %386, %cst_70 {dimension_numbers = #tpu.dot_dimension_numbers<[1], [0], [0], [1], [0, 0, 1, 1], [], []>} : vector<2x32xbf16>, vector<32x128xbf16>, vector<2x128xf32> -> vector<2x128xf32>
    %395 = arith.addf %393, %394 : vector<2x128xf32>
    %396 = vector.extract_strided_slice %395 {offsets = [0, 0], sizes = [2, 32], strides = [1, 1]} : vector<2x128xf32> to vector<2x32xf32>
    %397 = arith.negf %396 : vector<2x32xf32>
    %398 = math.exp %397 : vector<2x32xf32>
    %cst_71 = arith.constant 1.000000e+00 : f32
    %399 = vector.broadcast %cst_71 : f32 to vector<2x32xf32>
    %400 = arith.addf %399, %398 : vector<2x32xf32>
    %401 = arith.divf %399, %400 : vector<2x32xf32>
    %402 = vector.extract_strided_slice %395 {offsets = [0, 32], sizes = [2, 32], strides = [1, 1]} : vector<2x128xf32> to vector<2x32xf32>
    %403 = arith.negf %402 : vector<2x32xf32>
    %404 = math.exp %403 : vector<2x32xf32>
    %cst_72 = arith.constant 1.000000e+00 : f32
    %405 = vector.broadcast %cst_72 : f32 to vector<2x32xf32>
    %406 = arith.addf %405, %404 : vector<2x32xf32>
    %407 = arith.divf %405, %406 : vector<2x32xf32>
    %408 = vector.extract_strided_slice %395 {offsets = [0, 64], sizes = [2, 32], strides = [1, 1]} : vector<2x128xf32> to vector<2x32xf32>
    %409 = math.tanh %408 : vector<2x32xf32>
    %410 = vector.extract_strided_slice %395 {offsets = [0, 96], sizes = [2, 32], strides = [1, 1]} : vector<2x128xf32> to vector<2x32xf32>
    %411 = arith.negf %410 : vector<2x32xf32>
    %412 = math.exp %411 : vector<2x32xf32>
    %cst_73 = arith.constant 1.000000e+00 : f32
    %413 = vector.broadcast %cst_73 : f32 to vector<2x32xf32>
    %414 = arith.addf %413, %412 : vector<2x32xf32>
    %415 = arith.divf %413, %414 : vector<2x32xf32>
    %416 = arith.mulf %407, %389 : vector<2x32xf32>
    %417 = arith.mulf %401, %409 : vector<2x32xf32>
    %418 = arith.addf %416, %417 : vector<2x32xf32>
    %419 = math.tanh %418 : vector<2x32xf32>
    %420 = arith.mulf %415, %419 : vector<2x32xf32>
    %421 = arith.truncf %420 : vector<2x32xf32> to vector<2x32xbf16>
    %cst_74 = arith.constant dense<0.000000e+00> : vector<2x2xf32>
    %422 = tpu.matmul %421, %387, %cst_74 {dimension_numbers = #tpu.dot_dimension_numbers<[1], [0], [0], [1], [0, 0, 1, 1], [], []>} : vector<2x32xbf16>, vector<32x2xbf16>, vector<2x2xf32> -> vector<2x2xf32>
    %423 = vector.extract_strided_slice %422 {offsets = [0, 0], sizes = [2, 1], strides = [1, 1]} : vector<2x2xf32> to vector<2x1xf32>
    %424 = vector.extract_strided_slice %422 {offsets = [0, 1], sizes = [2, 1], strides = [1, 1]} : vector<2x2xf32> to vector<2x1xf32>
    %425 = vector.extract_strided_slice %385 {offsets = [0, 128], sizes = [2, 128], strides = [1, 1]} : vector<2x1024xf32> to vector<2x128xf32>
    %426 = vector.extract_strided_slice %385 {offsets = [0, 768], sizes = [2, 128], strides = [1, 1]} : vector<2x1024xf32> to vector<2x128xf32>
    %427 = arith.addf %425, %426 : vector<2x128xf32>
    %cst_75 = arith.constant dense<0.000000e+00> : vector<2x128xf32>
    %428 = tpu.matmul %421, %386, %cst_75 {dimension_numbers = #tpu.dot_dimension_numbers<[1], [0], [0], [1], [0, 0, 1, 1], [], []>} : vector<2x32xbf16>, vector<32x128xbf16>, vector<2x128xf32> -> vector<2x128xf32>
    %429 = arith.addf %427, %428 : vector<2x128xf32>
    %430 = vector.extract_strided_slice %429 {offsets = [0, 0], sizes = [2, 32], strides = [1, 1]} : vector<2x128xf32> to vector<2x32xf32>
    %431 = arith.negf %430 : vector<2x32xf32>
    %432 = math.exp %431 : vector<2x32xf32>
    %cst_76 = arith.constant 1.000000e+00 : f32
    %433 = vector.broadcast %cst_76 : f32 to vector<2x32xf32>
    %434 = arith.addf %433, %432 : vector<2x32xf32>
    %435 = arith.divf %433, %434 : vector<2x32xf32>
    %436 = vector.extract_strided_slice %429 {offsets = [0, 32], sizes = [2, 32], strides = [1, 1]} : vector<2x128xf32> to vector<2x32xf32>
    %437 = arith.negf %436 : vector<2x32xf32>
    %438 = math.exp %437 : vector<2x32xf32>
    %cst_77 = arith.constant 1.000000e+00 : f32
    %439 = vector.broadcast %cst_77 : f32 to vector<2x32xf32>
    %440 = arith.addf %439, %438 : vector<2x32xf32>
    %441 = arith.divf %439, %440 : vector<2x32xf32>
    %442 = vector.extract_strided_slice %429 {offsets = [0, 64], sizes = [2, 32], strides = [1, 1]} : vector<2x128xf32> to vector<2x32xf32>
    %443 = math.tanh %442 : vector<2x32xf32>
    %444 = vector.extract_strided_slice %429 {offsets = [0, 96], sizes = [2, 32], strides = [1, 1]} : vector<2x128xf32> to vector<2x32xf32>
    %445 = arith.negf %444 : vector<2x32xf32>
    %446 = math.exp %445 : vector<2x32xf32>
    %cst_78 = arith.constant 1.000000e+00 : f32
    %447 = vector.broadcast %cst_78 : f32 to vector<2x32xf32>
    %448 = arith.addf %447, %446 : vector<2x32xf32>
    %449 = arith.divf %447, %448 : vector<2x32xf32>
    %450 = arith.mulf %441, %418 : vector<2x32xf32>
    %451 = arith.mulf %435, %443 : vector<2x32xf32>
    %452 = arith.addf %450, %451 : vector<2x32xf32>
    %453 = math.tanh %452 : vector<2x32xf32>
    %454 = arith.mulf %449, %453 : vector<2x32xf32>
    %455 = arith.truncf %454 : vector<2x32xf32> to vector<2x32xbf16>
    %cst_79 = arith.constant dense<0.000000e+00> : vector<2x2xf32>
    %456 = tpu.matmul %455, %387, %cst_79 {dimension_numbers = #tpu.dot_dimension_numbers<[1], [0], [0], [1], [0, 0, 1, 1], [], []>} : vector<2x32xbf16>, vector<32x2xbf16>, vector<2x2xf32> -> vector<2x2xf32>
    %457 = vector.extract_strided_slice %456 {offsets = [0, 0], sizes = [2, 1], strides = [1, 1]} : vector<2x2xf32> to vector<2x1xf32>
    %458 = vector.extract_strided_slice %456 {offsets = [0, 1], sizes = [2, 1], strides = [1, 1]} : vector<2x2xf32> to vector<2x1xf32>
    %459 = vector.extract_strided_slice %385 {offsets = [0, 256], sizes = [2, 128], strides = [1, 1]} : vector<2x1024xf32> to vector<2x128xf32>
    %460 = vector.extract_strided_slice %385 {offsets = [0, 640], sizes = [2, 128], strides = [1, 1]} : vector<2x1024xf32> to vector<2x128xf32>
    %461 = arith.addf %459, %460 : vector<2x128xf32>
    %cst_80 = arith.constant dense<0.000000e+00> : vector<2x128xf32>
    %462 = tpu.matmul %455, %386, %cst_80 {dimension_numbers = #tpu.dot_dimension_numbers<[1], [0], [0], [1], [0, 0, 1, 1], [], []>} : vector<2x32xbf16>, vector<32x128xbf16>, vector<2x128xf32> -> vector<2x128xf32>
    %463 = arith.addf %461, %462 : vector<2x128xf32>
    %464 = vector.extract_strided_slice %463 {offsets = [0, 0], sizes = [2, 32], strides = [1, 1]} : vector<2x128xf32> to vector<2x32xf32>
    %465 = arith.negf %464 : vector<2x32xf32>
    %466 = math.exp %465 : vector<2x32xf32>
    %cst_81 = arith.constant 1.000000e+00 : f32
    %467 = vector.broadcast %cst_81 : f32 to vector<2x32xf32>
    %468 = arith.addf %467, %466 : vector<2x32xf32>
    %469 = arith.divf %467, %468 : vector<2x32xf32>
    %470 = vector.extract_strided_slice %463 {offsets = [0, 32], sizes = [2, 32], strides = [1, 1]} : vector<2x128xf32> to vector<2x32xf32>
    %471 = arith.negf %470 : vector<2x32xf32>
    %472 = math.exp %471 : vector<2x32xf32>
    %cst_82 = arith.constant 1.000000e+00 : f32
    %473 = vector.broadcast %cst_82 : f32 to vector<2x32xf32>
    %474 = arith.addf %473, %472 : vector<2x32xf32>
    %475 = arith.divf %473, %474 : vector<2x32xf32>
    %476 = vector.extract_strided_slice %463 {offsets = [0, 64], sizes = [2, 32], strides = [1, 1]} : vector<2x128xf32> to vector<2x32xf32>
    %477 = math.tanh %476 : vector<2x32xf32>
    %478 = vector.extract_strided_slice %463 {offsets = [0, 96], sizes = [2, 32], strides = [1, 1]} : vector<2x128xf32> to vector<2x32xf32>
    %479 = arith.negf %478 : vector<2x32xf32>
    %480 = math.exp %479 : vector<2x32xf32>
    %cst_83 = arith.constant 1.000000e+00 : f32
    %481 = vector.broadcast %cst_83 : f32 to vector<2x32xf32>
    %482 = arith.addf %481, %480 : vector<2x32xf32>
    %483 = arith.divf %481, %482 : vector<2x32xf32>
    %484 = arith.mulf %475, %452 : vector<2x32xf32>
    %485 = arith.mulf %469, %477 : vector<2x32xf32>
    %486 = arith.addf %484, %485 : vector<2x32xf32>
    %487 = math.tanh %486 : vector<2x32xf32>
    %488 = arith.mulf %483, %487 : vector<2x32xf32>
    %489 = arith.truncf %488 : vector<2x32xf32> to vector<2x32xbf16>
    %cst_84 = arith.constant dense<0.000000e+00> : vector<2x2xf32>
    %490 = tpu.matmul %489, %387, %cst_84 {dimension_numbers = #tpu.dot_dimension_numbers<[1], [0], [0], [1], [0, 0, 1, 1], [], []>} : vector<2x32xbf16>, vector<32x2xbf16>, vector<2x2xf32> -> vector<2x2xf32>
    %491 = vector.extract_strided_slice %490 {offsets = [0, 0], sizes = [2, 1], strides = [1, 1]} : vector<2x2xf32> to vector<2x1xf32>
    %492 = vector.extract_strided_slice %490 {offsets = [0, 1], sizes = [2, 1], strides = [1, 1]} : vector<2x2xf32> to vector<2x1xf32>
    %493 = vector.extract_strided_slice %385 {offsets = [0, 384], sizes = [2, 128], strides = [1, 1]} : vector<2x1024xf32> to vector<2x128xf32>
    %494 = vector.extract_strided_slice %385 {offsets = [0, 512], sizes = [2, 128], strides = [1, 1]} : vector<2x1024xf32> to vector<2x128xf32>
    %495 = arith.addf %493, %494 : vector<2x128xf32>
    %cst_85 = arith.constant dense<0.000000e+00> : vector<2x128xf32>
    %496 = tpu.matmul %489, %386, %cst_85 {dimension_numbers = #tpu.dot_dimension_numbers<[1], [0], [0], [1], [0, 0, 1, 1], [], []>} : vector<2x32xbf16>, vector<32x128xbf16>, vector<2x128xf32> -> vector<2x128xf32>
    %497 = arith.addf %495, %496 : vector<2x128xf32>
    %498 = vector.extract_strided_slice %497 {offsets = [0, 0], sizes = [2, 32], strides = [1, 1]} : vector<2x128xf32> to vector<2x32xf32>
    %499 = arith.negf %498 : vector<2x32xf32>
    %500 = math.exp %499 : vector<2x32xf32>
    %cst_86 = arith.constant 1.000000e+00 : f32
    %501 = vector.broadcast %cst_86 : f32 to vector<2x32xf32>
    %502 = arith.addf %501, %500 : vector<2x32xf32>
    %503 = arith.divf %501, %502 : vector<2x32xf32>
    %504 = vector.extract_strided_slice %497 {offsets = [0, 32], sizes = [2, 32], strides = [1, 1]} : vector<2x128xf32> to vector<2x32xf32>
    %505 = arith.negf %504 : vector<2x32xf32>
    %506 = math.exp %505 : vector<2x32xf32>
    %cst_87 = arith.constant 1.000000e+00 : f32
    %507 = vector.broadcast %cst_87 : f32 to vector<2x32xf32>
    %508 = arith.addf %507, %506 : vector<2x32xf32>
    %509 = arith.divf %507, %508 : vector<2x32xf32>
    %510 = vector.extract_strided_slice %497 {offsets = [0, 64], sizes = [2, 32], strides = [1, 1]} : vector<2x128xf32> to vector<2x32xf32>
    %511 = math.tanh %510 : vector<2x32xf32>
    %512 = vector.extract_strided_slice %497 {offsets = [0, 96], sizes = [2, 32], strides = [1, 1]} : vector<2x128xf32> to vector<2x32xf32>
    %513 = arith.negf %512 : vector<2x32xf32>
    %514 = math.exp %513 : vector<2x32xf32>
    %cst_88 = arith.constant 1.000000e+00 : f32
    %515 = vector.broadcast %cst_88 : f32 to vector<2x32xf32>
    %516 = arith.addf %515, %514 : vector<2x32xf32>
    %517 = arith.divf %515, %516 : vector<2x32xf32>
    %518 = arith.mulf %509, %486 : vector<2x32xf32>
    %519 = arith.mulf %503, %511 : vector<2x32xf32>
    %520 = arith.addf %518, %519 : vector<2x32xf32>
    %521 = math.tanh %520 : vector<2x32xf32>
    %522 = arith.mulf %517, %521 : vector<2x32xf32>
    %523 = arith.truncf %522 : vector<2x32xf32> to vector<2x32xbf16>
    %cst_89 = arith.constant dense<0.000000e+00> : vector<2x2xf32>
    %524 = tpu.matmul %523, %387, %cst_89 {dimension_numbers = #tpu.dot_dimension_numbers<[1], [0], [0], [1], [0, 0, 1, 1], [], []>} : vector<2x32xbf16>, vector<32x2xbf16>, vector<2x2xf32> -> vector<2x2xf32>
    %525 = vector.extract_strided_slice %524 {offsets = [0, 0], sizes = [2, 1], strides = [1, 1]} : vector<2x2xf32> to vector<2x1xf32>
    %526 = vector.extract_strided_slice %524 {offsets = [0, 1], sizes = [2, 1], strides = [1, 1]} : vector<2x2xf32> to vector<2x1xf32>
    %527 = arith.addf %423, %526 : vector<2x1xf32>
    %528 = arith.addf %457, %492 : vector<2x1xf32>
    %529 = arith.addf %491, %458 : vector<2x1xf32>
    %530 = arith.addf %525, %424 : vector<2x1xf32>
    %531 = arith.maximumf %527, %528 : vector<2x1xf32>
    %532 = arith.maximumf %531, %529 : vector<2x1xf32>
    %533 = arith.maximumf %532, %530 : vector<2x1xf32>
    %534 = arith.subf %527, %533 : vector<2x1xf32>
    %535 = math.exp %534 : vector<2x1xf32>
    %536 = arith.subf %528, %533 : vector<2x1xf32>
    %537 = math.exp %536 : vector<2x1xf32>
    %538 = arith.subf %529, %533 : vector<2x1xf32>
    %539 = math.exp %538 : vector<2x1xf32>
    %540 = arith.subf %530, %533 : vector<2x1xf32>
    %541 = math.exp %540 : vector<2x1xf32>
    %542 = arith.addf %535, %537 : vector<2x1xf32>
    %543 = arith.addf %542, %539 : vector<2x1xf32>
    %544 = arith.addf %543, %541 : vector<2x1xf32>
    %cst_90 = arith.constant 1.000000e+00 : f32
    %545 = vector.broadcast %cst_90 : f32 to vector<2x1xf32>
    %546 = arith.divf %545, %544 : vector<2x1xf32>
    %547 = arith.mulf %535, %546 : vector<2x1xf32>
    %548 = arith.mulf %537, %546 : vector<2x1xf32>
    %549 = arith.mulf %539, %546 : vector<2x1xf32>
    %550 = arith.mulf %541, %546 : vector<2x1xf32>
    %c0_91 = arith.constant 0 : index
    %c0_92 = arith.constant 0 : index
    %551 = vector.load %arg11[%c0_91, %c0_92] : memref<2x32xf32, #tpu.memory_space<vmem>>, vector<2x32xf32>
    %552 = vector.extract_strided_slice %551 {offsets = [0, 0], sizes = [1, 32], strides = [1, 1]} : vector<2x32xf32> to vector<1x32xf32>
    %553 = vector.extract_strided_slice %551 {offsets = [1, 0], sizes = [1, 32], strides = [1, 1]} : vector<2x32xf32> to vector<1x32xf32>
    %554 = vector.broadcast %547 : vector<2x1xf32> to vector<2x32xf32>
    %555 = vector.broadcast %552 : vector<1x32xf32> to vector<2x32xf32>
    %556 = arith.mulf %554, %555 : vector<2x32xf32>
    %557 = vector.broadcast %550 : vector<2x1xf32> to vector<2x32xf32>
    %558 = vector.broadcast %553 : vector<1x32xf32> to vector<2x32xf32>
    %559 = arith.mulf %557, %558 : vector<2x32xf32>
    %560 = arith.addf %556, %559 : vector<2x32xf32>
    %561 = arith.mulf %560, %420 : vector<2x32xf32>
    %562 = vector.broadcast %548 : vector<2x1xf32> to vector<2x32xf32>
    %563 = vector.broadcast %552 : vector<1x32xf32> to vector<2x32xf32>
    %564 = arith.mulf %562, %563 : vector<2x32xf32>
    %565 = vector.broadcast %549 : vector<2x1xf32> to vector<2x32xf32>
    %566 = vector.broadcast %553 : vector<1x32xf32> to vector<2x32xf32>
    %567 = arith.mulf %565, %566 : vector<2x32xf32>
    %568 = arith.addf %564, %567 : vector<2x32xf32>
    %569 = arith.mulf %568, %454 : vector<2x32xf32>
    %570 = arith.addf %561, %569 : vector<2x32xf32>
    %571 = vector.broadcast %549 : vector<2x1xf32> to vector<2x32xf32>
    %572 = vector.broadcast %552 : vector<1x32xf32> to vector<2x32xf32>
    %573 = arith.mulf %571, %572 : vector<2x32xf32>
    %574 = vector.broadcast %548 : vector<2x1xf32> to vector<2x32xf32>
    %575 = vector.broadcast %553 : vector<1x32xf32> to vector<2x32xf32>
    %576 = arith.mulf %574, %575 : vector<2x32xf32>
    %577 = arith.addf %573, %576 : vector<2x32xf32>
    %578 = arith.mulf %577, %488 : vector<2x32xf32>
    %579 = arith.addf %570, %578 : vector<2x32xf32>
    %580 = vector.broadcast %550 : vector<2x1xf32> to vector<2x32xf32>
    %581 = vector.broadcast %552 : vector<1x32xf32> to vector<2x32xf32>
    %582 = arith.mulf %580, %581 : vector<2x32xf32>
    %583 = vector.broadcast %547 : vector<2x1xf32> to vector<2x32xf32>
    %584 = vector.broadcast %553 : vector<1x32xf32> to vector<2x32xf32>
    %585 = arith.mulf %583, %584 : vector<2x32xf32>
    %586 = arith.addf %582, %585 : vector<2x32xf32>
    %587 = arith.mulf %586, %522 : vector<2x32xf32>
    %588 = arith.addf %579, %587 : vector<2x32xf32>
    %c0_93 = arith.constant 0 : index
    %c0_94 = arith.constant 0 : index
    %589 = vector.load %arg12[%c0_93, %c0_94] : memref<32x1xf32, #tpu.memory_space<vmem>>, vector<32x1xf32>
    %cst_95 = arith.constant dense<0.000000e+00> : vector<2x1xf32>
    %590 = tpu.matmul %588, %589, %cst_95 {dimension_numbers = #tpu.dot_dimension_numbers<[1], [0], [0], [1], [0, 0, 1, 1], [], []>} : vector<2x32xf32>, vector<32x1xf32>, vector<2x1xf32> -> vector<2x1xf32>
    %c0_96 = arith.constant 0 : index
    %c0_97 = arith.constant 0 : index
    %591 = vector.load %arg13[%c0_96, %c0_97] : memref<1x1xf32, #tpu.memory_space<vmem>>, vector<1x1xf32>
    %592 = vector.broadcast %591 : vector<1x1xf32> to vector<2x1xf32>
    %593 = arith.addf %590, %592 : vector<2x1xf32>
    %cst_98 = arith.constant 0.000000e+00 : f32
    %594 = vector.broadcast %cst_98 : f32 to vector<2x128xf32>
    %c0_99 = arith.constant 0 : index
    %c0_100 = arith.constant 0 : index
    %595 = vector.load %arg14[%c0_99, %c0_100] : memref<2x128xf32, #tpu.memory_space<vmem>>, vector<2x128xf32>
    tpu.vector_store %arg14[%c0_99, %c0_100], %594 {strides = array<i32>} : memref<2x128xf32, #tpu.memory_space<vmem>>, vector<2x128xf32>,
    %c0_101 = arith.constant 0 : index
    %c0_102 = arith.constant 0 : index
    %596 = vector.load %arg14[%c0_101, %c0_102] : memref<2x128xf32, #tpu.memory_space<vmem>>, vector<2x4xf32>
    tpu.vector_store %arg14[%c0_101, %c0_102], %342 {strides = array<i32>} : memref<2x128xf32, #tpu.memory_space<vmem>>, vector<2x4xf32>,
    %c0_103 = arith.constant 0 : index
    %c4 = arith.constant 4 : index
    %597 = vector.load %arg14[%c0_103, %c4] : memref<2x128xf32, #tpu.memory_space<vmem>>, vector<2x4xf32>
    tpu.vector_store %arg14[%c0_103, %c4], %343 {strides = array<i32>} : memref<2x128xf32, #tpu.memory_space<vmem>>, vector<2x4xf32>,
    %c0_104 = arith.constant 0 : index
    %c8 = arith.constant 8 : index
    %598 = vector.load %arg14[%c0_104, %c8] : memref<2x128xf32, #tpu.memory_space<vmem>>, vector<2x4xf32>
    tpu.vector_store %arg14[%c0_104, %c8], %344 {strides = array<i32>} : memref<2x128xf32, #tpu.memory_space<vmem>>, vector<2x4xf32>,
    %c0_105 = arith.constant 0 : index
    %c12 = arith.constant 12 : index
    %599 = vector.load %arg14[%c0_105, %c12] : memref<2x128xf32, #tpu.memory_space<vmem>>, vector<2x4xf32>
    tpu.vector_store %arg14[%c0_105, %c12], %345 {strides = array<i32>} : memref<2x128xf32, #tpu.memory_space<vmem>>, vector<2x4xf32>,
    %c0_106 = arith.constant 0 : index
    %c16 = arith.constant 16 : index
    %600 = vector.load %arg14[%c0_106, %c16] : memref<2x128xf32, #tpu.memory_space<vmem>>, vector<2x4xf32>
    tpu.vector_store %arg14[%c0_106, %c16], %346 {strides = array<i32>} : memref<2x128xf32, #tpu.memory_space<vmem>>, vector<2x4xf32>,
    %c0_107 = arith.constant 0 : index
    %c20 = arith.constant 20 : index
    %601 = vector.load %arg14[%c0_107, %c20] : memref<2x128xf32, #tpu.memory_space<vmem>>, vector<2x4xf32>
    tpu.vector_store %arg14[%c0_107, %c20], %347 {strides = array<i32>} : memref<2x128xf32, #tpu.memory_space<vmem>>, vector<2x4xf32>,
    %c0_108 = arith.constant 0 : index
    %c24 = arith.constant 24 : index
    %602 = vector.load %arg14[%c0_108, %c24] : memref<2x128xf32, #tpu.memory_space<vmem>>, vector<2x4xf32>
    tpu.vector_store %arg14[%c0_108, %c24], %348 {strides = array<i32>} : memref<2x128xf32, #tpu.memory_space<vmem>>, vector<2x4xf32>,
    %c0_109 = arith.constant 0 : index
    %c28 = arith.constant 28 : index
    %603 = vector.load %arg14[%c0_109, %c28] : memref<2x128xf32, #tpu.memory_space<vmem>>, vector<2x4xf32>
    tpu.vector_store %arg14[%c0_109, %c28], %349 {strides = array<i32>} : memref<2x128xf32, #tpu.memory_space<vmem>>, vector<2x4xf32>,
    %c0_110 = arith.constant 0 : index
    %c32 = arith.constant 32 : index
    %604 = vector.load %arg14[%c0_110, %c32] : memref<2x128xf32, #tpu.memory_space<vmem>>, vector<2x1xf32>
    tpu.vector_store %arg14[%c0_110, %c32], %547 {strides = array<i32>} : memref<2x128xf32, #tpu.memory_space<vmem>>, vector<2x1xf32>,
    %c0_111 = arith.constant 0 : index
    %c33 = arith.constant 33 : index
    %605 = vector.load %arg14[%c0_111, %c33] : memref<2x128xf32, #tpu.memory_space<vmem>>, vector<2x1xf32>
    tpu.vector_store %arg14[%c0_111, %c33], %548 {strides = array<i32>} : memref<2x128xf32, #tpu.memory_space<vmem>>, vector<2x1xf32>,
    %c0_112 = arith.constant 0 : index
    %c34 = arith.constant 34 : index
    %606 = vector.load %arg14[%c0_112, %c34] : memref<2x128xf32, #tpu.memory_space<vmem>>, vector<2x1xf32>
    tpu.vector_store %arg14[%c0_112, %c34], %549 {strides = array<i32>} : memref<2x128xf32, #tpu.memory_space<vmem>>, vector<2x1xf32>,
    %c0_113 = arith.constant 0 : index
    %c35 = arith.constant 35 : index
    %607 = vector.load %arg14[%c0_113, %c35] : memref<2x128xf32, #tpu.memory_space<vmem>>, vector<2x1xf32>
    tpu.vector_store %arg14[%c0_113, %c35], %550 {strides = array<i32>} : memref<2x128xf32, #tpu.memory_space<vmem>>, vector<2x1xf32>,
    %c0_114 = arith.constant 0 : index
    %c36 = arith.constant 36 : index
    %608 = vector.load %arg14[%c0_114, %c36] : memref<2x128xf32, #tpu.memory_space<vmem>>, vector<2x1xf32>
    tpu.vector_store %arg14[%c0_114, %c36], %593 {strides = array<i32>} : memref<2x128xf32, #tpu.memory_space<vmem>>, vector<2x1xf32>,
    return
  }
}

</mosaic_0001>

<llo_original>
// kernel: raw_d_forward.1
$region0: #{raw_d_forward.1}
  #allocation0 [shape = 'u32[]', space=smem, size = 0x4, offset = 0x4, fixed_abs, tag = 'smem constant byte address 0x4 - core index']
  #allocation1 [shape = 'u32[144,128]{1,0:T(1,128)}', space=vmem, size = 0x12000, scoped, tag = 'internal scratch']
  #allocation2 [shape = 'f32[1,1]{1,0:T(1,128)S(1)}', space=vmem, size = 0x200, scoped, tag = 'scoped memory for raw_d_forward.1']
  %s0 = inlined_call_operand.vmem [shape: f32[2,8,4], index: 0, kind: input, shape index: {}]
  %s1 = inlined_call_operand.vmem [shape: bf16[4,1024], index: 1, kind: input, shape index: {}]
  %s2 = inlined_call_operand.vmem [shape: f32[1,1024], index: 2, kind: input, shape index: {}]
  %s3 = inlined_call_operand.hbm [shape: bf16[128,512], index: 3, kind: input, shape index: {}]
  %s4 = inlined_call_operand.vmem [shape: bf16[128,8], index: 4, kind: input, shape index: {}]
  %s5 = inlined_call_operand.vmem [shape: f32[4,128], index: 5, kind: input, shape index: {}]
  %s6 = inlined_call_operand.vmem [shape: f32[4,128], index: 6, kind: input, shape index: {}]
  %s7 = inlined_call_operand.hbm [shape: bf16[128,1024], index: 7, kind: input, shape index: {}]
  %s8 = inlined_call_operand.vmem [shape: f32[1,1024], index: 8, kind: input, shape index: {}]
  %s9 = inlined_call_operand.vmem [shape: bf16[32,128], index: 9, kind: input, shape index: {}]
  %s10 = inlined_call_operand.vmem [shape: bf16[32,2], index: 10, kind: input, shape index: {}]
  %s11 = inlined_call_operand.vmem [shape: f32[2,32], index: 11, kind: input, shape index: {}]
  %s12 = inlined_call_operand.vmem [shape: f32[32,1], index: 12, kind: input, shape index: {}]
  %s13 = inlined_call_operand.<no memory space> [shape: f32[1,1], index: 13, kind: input, shape index: {}]
  %s14 = inlined_call_operand.vmem [shape: f32[2,128], index: 14, kind: output, shape index: {}]
  %s15 = sld [smem:[#allocation0]]
  $region74: #{raw_d_forward.1} parent=0
    _
  %s17 = ssub.s32 1, %s15
  %s18 = scalar_select 0, %s17, %s15
  %v19 = vstv %s13
  %20 = vst [vmem:[#allocation2] sm:$0x1] %v19
  $region1: #{raw_d_forward.1} parent=0
    #allocation3 [shape = 'u8[131072]{0}', space=vmem, size = 0x20000, scoped, tag = 'input window, operand 3, single buffered']
    #allocation4 [shape = 's32[1]{0}', space=sflag, size = 0x4, scoped, tag = 'scoped memory for raw_d_forward.1']
    #allocation5 [shape = 'u8[262144]{0}', space=vmem, size = 0x40000, scoped, tag = 'input window, operand 7, single buffered']
    #allocation6 [shape = 's32[1]{0}', space=sflag, size = 0x4, scoped, tag = 'scoped memory for raw_d_forward.1']
    %21 = vsyncpa [#allocation4], 0
    %22 = vsyncpa [#allocation6], 0
    // Predicated region
    $region2: #{raw_d_forward.1} parent=1 // pred_check
      _
    $region3: #{raw_d_forward.1} parent=1 // pred_check_branch
      %24 = sbr.rel (0) target = $region5
    $region4: #{raw_d_forward.1} parent=1 // pred_region
      _
    $region5: #{raw_d_forward.1} parent=1 // pred_fallthru
      _
    // Predicated region
    $region6: #{raw_d_forward.1} parent=1 // pred_check
      _
    $region7: #{raw_d_forward.1} parent=1 // pred_check_branch
      %26 = sbr.rel (0) target = $region9
    $region8: #{raw_d_forward.1} parent=1 // pred_region
      _
    $region9: #{raw_d_forward.1} parent=1 // pred_fallthru
      _
    // Predicated region
    $region10: #{raw_d_forward.1} parent=1 // pred_check
      _
    $region11: #{raw_d_forward.1} parent=1 // pred_check_branch
      %28 = sbr.rel (0) target = $region13
    $region12: #{raw_d_forward.1} parent=1 // pred_region
      _
    $region13: #{raw_d_forward.1} parent=1 // pred_fallthru
      _
    // Predicated region
    $region14: #{raw_d_forward.1} parent=1 // pred_check
      _
    $region15: #{raw_d_forward.1} parent=1 // pred_check_branch
      %30 = sbr.rel (0) target = $region17
    $region16: #{raw_d_forward.1} parent=1 // pred_region
      %s32 = ssub.s32 4096, 4096
      %33 = vsyncadd [#allocation4], %s32
      %s34 = sshll.u32 [#allocation3], 4
      %s35 = int_to_ptr.vmem [resolvable:$true] %s34
      %40 = dma.hbm_to_vmem [thread:$0]  %s3, 4096, %s35, [#allocation4], 256, 256, 16
    $region17: #{raw_d_forward.1} parent=1 // pred_fallthru
      _
    // Predicated region
    $region18: #{raw_d_forward.1} parent=1 // pred_check
      _
    $region19: #{raw_d_forward.1} parent=1 // pred_check_branch
      %42 = sbr.rel (0) target = $region21
    $region20: #{raw_d_forward.1} parent=1 // pred_region
      _
    $region21: #{raw_d_forward.1} parent=1 // pred_fallthru
      _
    // Predicated region
    $region22: #{raw_d_forward.1} parent=1 // pred_check
      _
    $region23: #{raw_d_forward.1} parent=1 // pred_check_branch
      %44 = sbr.rel (0) target = $region25
    $region24: #{raw_d_forward.1} parent=1 // pred_region
      _
    $region25: #{raw_d_forward.1} parent=1 // pred_fallthru
      _
    // Predicated region
    $region26: #{raw_d_forward.1} parent=1 // pred_check
      _
    $region27: #{raw_d_forward.1} parent=1 // pred_check_branch
      %46 = sbr.rel (0) target = $region29
    $region28: #{raw_d_forward.1} parent=1 // pred_region
      _
    $region29: #{raw_d_forward.1} parent=1 // pred_fallthru
      _
    // Predicated region
    $region30: #{raw_d_forward.1} parent=1 // pred_check
      _
    $region31: #{raw_d_forward.1} parent=1 // pred_check_branch
      %48 = sbr.rel (0) target = $region33
    $region32: #{raw_d_forward.1} parent=1 // pred_region
      %s50 = ssub.s32 8192, 8192
      %51 = vsyncadd [#allocation6], %s50
      %s52 = sshll.u32 [#allocation5], 4
      %s53 = int_to_ptr.vmem [resolvable:$true] %s52
      %58 = dma.hbm_to_vmem [thread:$0]  %s7, 8192, %s53, [#allocation6], 512, 512, 32
    $region33: #{raw_d_forward.1} parent=1 // pred_fallthru
      _
    // Predicated region
    $region34: #{raw_d_forward.1} parent=1 // pred_check
      _
    $region35: #{raw_d_forward.1} parent=1 // pred_check_branch
      %60 = sbr.rel (0) target = $region37
    $region36: #{raw_d_forward.1} parent=1 // pred_region
      _
    $region37: #{raw_d_forward.1} parent=1 // pred_fallthru
      _
    // Predicated region
    $region38: #{raw_d_forward.1} parent=1 // pred_check
      _
    $region39: #{raw_d_forward.1} parent=1 // pred_check_branch
      %62 = sbr.rel (0) target = $region41
    $region40: #{raw_d_forward.1} parent=1 // pred_region
      _
    $region41: #{raw_d_forward.1} parent=1 // pred_fallthru
      _
    // Predicated region
    $region42: #{raw_d_forward.1} parent=1 // pred_check
      _
    $region43: #{raw_d_forward.1} parent=1 // pred_check_branch
      %64 = sbr.rel (0) target = $region45
    $region44: #{raw_d_forward.1} parent=1 // pred_region
      _
    $region45: #{raw_d_forward.1} parent=1 // pred_fallthru
      _
    // Predicated region
    $region46: #{raw_d_forward.1} parent=1 // pred_check
      _
    $region47: #{raw_d_forward.1} parent=1 // pred_check_branch
      %66 = sbr.rel (0) target = $region49
    $region48: #{raw_d_forward.1} parent=1 // pred_region
      _
    $region49: #{raw_d_forward.1} parent=1 // pred_fallthru
      _
    // Predicated region
    $region50: #{raw_d_forward.1} parent=1 // pred_check
      _
    $region51: #{raw_d_forward.1} parent=1 // pred_check_branch
      %68 = sbr.rel (0) target = $region53
    $region52: #{raw_d_forward.1} parent=1 // pred_region
      _
    $region53: #{raw_d_forward.1} parent=1 // pred_fallthru
      _
    // Predicated region
    $region54: #{raw_d_forward.1} parent=1 // pred_check
      _
    $region55: #{raw_d_forward.1} parent=1 // pred_check_branch
      %70 = sbr.rel (0) target = $region57
    $region56: #{raw_d_forward.1} parent=1 // pred_region
      _
    $region57: #{raw_d_forward.1} parent=1 // pred_fallthru
      _
    // Predicated region
    $region58: #{raw_d_forward.1} parent=1 // pred_check
      _
    $region59: #{raw_d_forward.1} parent=1 // pred_check_branch
      %72 = sbr.rel (0) target = $region61
    $region60: #{raw_d_forward.1} parent=1 // pred_region
      %73 = dma.done [#allocation4], 4096
    $region61: #{raw_d_forward.1} parent=1 // pred_fallthru
      _
    // Predicated region
    $region62: #{raw_d_forward.1} parent=1 // pred_check
      _
    $region63: #{raw_d_forward.1} parent=1 // pred_check_branch
      %75 = sbr.rel (0) target = $region65
    $region64: #{raw_d_forward.1} parent=1 // pred_region
      %76 = dma.done [#allocation6], 8192
    $region65: #{raw_d_forward.1} parent=1 // pred_fallthru
      _
    %v78 = vld [vmem:[%s0] sm:$0xff]
    %v79 = vld [vmem:[%s0 + $0x8] sm:$0xff]
    %v80 = vpack.c.bf16 %v79, %v78
    %v81 = vld [vmem:[%s1] sm:$0xff]
    %v82 = vld [vmem:[%s1 + $0x8] sm:$0xff]
    %v83 = vld [vmem:[%s2] sm:$0xff]
    %v85 = vlaneseq
    %v86 = vshrl.u32 %v85, 7
    %v87 = vsub.s32 0, %v86
    %v88 = vrot.slane %v83, %v87
    %v89 = vlaneseq
    %v90 = vshrl.u32 %v89, 7
    %v91 = vsub.s32 1, %v90
    %v92 = vrot.slane %v83, %v91
    %v93 = vlaneseq
    %v94 = vshrl.u32 %v93, 7
    %v95 = vsub.s32 2, %v94
    %v96 = vrot.slane %v83, %v95
    %v97 = vlaneseq
    %v98 = vshrl.u32 %v97, 7
    %v99 = vsub.s32 3, %v98
    %v100 = vrot.slane %v83, %v99
    %v101 = vlaneseq
    %v102 = vshrl.u32 %v101, 7
    %v103 = vsub.s32 4, %v102
    %v104 = vrot.slane %v83, %v103
    %v105 = vlaneseq
    %v106 = vshrl.u32 %v105, 7
    %v107 = vsub.s32 5, %v106
    %v108 = vrot.slane %v83, %v107
    %v109 = vlaneseq
    %v110 = vshrl.u32 %v109, 7
    %v111 = vsub.s32 6, %v110
    %v112 = vrot.slane %v83, %v111
    %v113 = vlaneseq
    %v114 = vshrl.u32 %v113, 7
    %v115 = vsub.s32 7, %v114
    %v116 = vrot.slane %v83, %v115
    %v127 = vcombine.high %v81, %v81
    %v129 = vunpack.c.l.s4 1983009808
    %v130 = vunpack.c.0.s8 %v129
    %v131 = vlaneseq
    %v132 = vshrl.u32 %v131, 7
    %v133 = vsub.s32 %v130, %v132
    %v134 = vrot.slane %v81, %v133
    %v136 = vunpack.c.l.s4 1983009808
    %v137 = vunpack.c.0.s8 %v136
    %v138 = vlaneseq
    %v139 = vshrl.u32 %v138, 7
    %v140 = vsub.s32 %v137, %v139
    %v141 = vrot.slane %v127, %v140
    %v142 = vcombine.high %v134, %v134
    %v143 = vcombine.high %v141, %v141
    %v144 = vcombine.high %v82, %v82
    %v146 = vunpack.c.l.s4 1983009808
    %v147 = vunpack.c.0.s8 %v146
    %v148 = vlaneseq
    %v149 = vshrl.u32 %v148, 7
    %v150 = vsub.s32 %v147, %v149
    %v151 = vrot.slane %v82, %v150
    %v153 = vunpack.c.l.s4 1983009808
    %v154 = vunpack.c.0.s8 %v153
    %v155 = vlaneseq
    %v156 = vshrl.u32 %v155, 7
    %v157 = vsub.s32 %v154, %v156
    %v158 = vrot.slane %v144, %v157
    %v159 = vcombine.high %v151, %v151
    %v160 = vcombine.high %v158, %v158
    %vm161 = vcmask 31744
    %v163 = vsel %vm161, %v80, 0
    %vm165 = vcmask 1041408
    %v167 = vsel %vm165, %v134, 0
    %v170 = vsel %vm165, %v142, 0
    %v173 = vsel %vm165, %v141, 0
    %v176 = vsel %vm165, %v143, 0
    %v179 = vsel %vm165, %v151, 0
    %v182 = vsel %vm165, %v159, 0
    %v185 = vsel %vm165, %v158, 0
    %v188 = vsel %vm165, %v160, 0
    %190 = vmatprep.subr.bf16.mxu0 %v170
    %191 = vmatpush1.bf16.msra.mxu0 %v167
    %192 = vmatprep.subr.bf16.mxu0 0
    %193 = vmatpush1.bf16.msra.mxu0 0
    %194 = vmatprep.subr.bf16.mxu0 0
    %195 = vmatpush1.bf16.msra.mxu0 0
    %196 = vmatprep.subr.bf16.mxu0 0
    %197 = vmatpush1.bf16.msra.mxu0 0
    %198 = vmatprep.subr.bf16.mxu0 0
    %199 = vmatpush1.bf16.msra.mxu0 0
    %200 = vmatprep.subr.bf16.mxu0 0
    %201 = vmatpush1.bf16.msra.mxu0 0
    %202 = vmatprep.subr.bf16.mxu0 0
    %203 = vmatpush1.bf16.msra.mxu0 0
    %204 = vmatprep.subr.bf16.mxu0 0
    %205 = vmatpush1.bf16.msra.mxu0 0
    %206 = vmatprep.subr.bf16.mxu0 0
    %207 = vmatpush1.bf16.msra.mxu0 0
    %208 = vmatprep.subr.bf16.mxu0 0
    %209 = vmatpush1.bf16.msra.mxu0 0
    %210 = vmatprep.subr.bf16.mxu0 0
    %211 = vmatpush1.bf16.msra.mxu0 0
    %212 = vmatprep.subr.bf16.mxu0 0
    %213 = vmatpush1.bf16.msra.mxu0 0
    %214 = vmatprep.subr.bf16.mxu0 0
    %215 = vmatpush1.bf16.msra.mxu0 0
    %216 = vmatprep.subr.bf16.mxu0 0
    %217 = vmatpush1.bf16.msra.mxu0 0
    %218 = vmatprep.subr.bf16.mxu0 0
    %219 = vmatpush1.bf16.msra.mxu0 0
    %220 = vmatprep.subr.bf16.mxu0 0
    %221 = vmatpush1.bf16.msra.mxu0 0
    %222 = vmatprep.mubr.bf16.mxu0 0
    %223 = vmatmul.mubr.bf16.gmra.mrb[0].mxu0 %v163
    %v224 = vpop.f32.mrb[0].mxu0
    %v225 = vadd.f32 %v88, %v224
    %v226 = vpop.f32.mrb[0].mxu0
    %v227 = vadd.f32 %v92, %v226
    %v228 = vpop.f32.mrb[0].mxu0
    %v229 = vadd.f32 %v88, %v228
    %v230 = vpop.f32.mrb[0].mxu0
    %v231 = vadd.f32 %v92, %v230
    %232 = vdwg.mxu0
    %233 = vmatprep.subr.bf16.mxu0 %v176
    %234 = vmatpush1.bf16.msra.mxu0 %v173
    %235 = vmatprep.subr.bf16.mxu0 0
    %236 = vmatpush1.bf16.msra.mxu0 0
    %237 = vmatprep.subr.bf16.mxu0 0
    %238 = vmatpush1.bf16.msra.mxu0 0
    %239 = vmatprep.subr.bf16.mxu0 0
    %240 = vmatpush1.bf16.msra.mxu0 0
    %241 = vmatprep.subr.bf16.mxu0 0
    %242 = vmatpush1.bf16.msra.mxu0 0
    %243 = vmatprep.subr.bf16.mxu0 0
    %244 = vmatpush1.bf16.msra.mxu0 0
    %245 = vmatprep.subr.bf16.mxu0 0
    %246 = vmatpush1.bf16.msra.mxu0 0
    %247 = vmatprep.subr.bf16.mxu0 0
    %248 = vmatpush1.bf16.msra.mxu0 0
    %249 = vmatprep.subr.bf16.mxu0 0
    %250 = vmatpush1.bf16.msra.mxu0 0
    %251 = vmatprep.subr.bf16.mxu0 0
    %252 = vmatpush1.bf16.msra.mxu0 0
    %253 = vmatprep.subr.bf16.mxu0 0
    %254 = vmatpush1.bf16.msra.mxu0 0
    %255 = vmatprep.subr.bf16.mxu0 0
    %256 = vmatpush1.bf16.msra.mxu0 0
    %257 = vmatprep.subr.bf16.mxu0 0
    %258 = vmatpush1.bf16.msra.mxu0 0
    %259 = vmatprep.subr.bf16.mxu0 0
    %260 = vmatpush1.bf16.msra.mxu0 0
    %261 = vmatprep.subr.bf16.mxu0 0
    %262 = vmatpush1.bf16.msra.mxu0 0
    %263 = vmatprep.subr.bf16.mxu0 0
    %264 = vmatpush1.bf16.msra.mxu0 0
    %265 = vmatprep.mubr.bf16.mxu0 0
    %266 = vmatmul.mubr.bf16.gmra.mrb[0].mxu0 %v163
    %v267 = vpop.f32.mrb[0].mxu0
    %v268 = vadd.f32 %v96, %v267
    %v269 = vpop.f32.mrb[0].mxu0
    %v270 = vadd.f32 %v100, %v269
    %v271 = vpop.f32.mrb[0].mxu0
    %v272 = vadd.f32 %v96, %v271
    %v273 = vpop.f32.mrb[0].mxu0
    %v274 = vadd.f32 %v100, %v273
    %275 = vdwg.mxu0
    %276 = vmatprep.subr.bf16.mxu0 %v182
    %277 = vmatpush1.bf16.msra.mxu0 %v179
    %278 = vmatprep.subr.bf16.mxu0 0
    %279 = vmatpush1.bf16.msra.mxu0 0
    %280 = vmatprep.subr.bf16.mxu0 0
    %281 = vmatpush1.bf16.msra.mxu0 0
    %282 = vmatprep.subr.bf16.mxu0 0
    %283 = vmatpush1.bf16.msra.mxu0 0
    %284 = vmatprep.subr.bf16.mxu0 0
    %285 = vmatpush1.bf16.msra.mxu0 0
    %286 = vmatprep.subr.bf16.mxu0 0
    %287 = vmatpush1.bf16.msra.mxu0 0
    %288 = vmatprep.subr.bf16.mxu0 0
    %289 = vmatpush1.bf16.msra.mxu0 0
    %290 = vmatprep.subr.bf16.mxu0 0
    %291 = vmatpush1.bf16.msra.mxu0 0
    %292 = vmatprep.subr.bf16.mxu0 0
    %293 = vmatpush1.bf16.msra.mxu0 0
    %294 = vmatprep.subr.bf16.mxu0 0
    %295 = vmatpush1.bf16.msra.mxu0 0
    %296 = vmatprep.subr.bf16.mxu0 0
    %297 = vmatpush1.bf16.msra.mxu0 0
    %298 = vmatprep.subr.bf16.mxu0 0
    %299 = vmatpush1.bf16.msra.mxu0 0
    %300 = vmatprep.subr.bf16.mxu0 0
    %301 = vmatpush1.bf16.msra.mxu0 0
    %302 = vmatprep.subr.bf16.mxu0 0
    %303 = vmatpush1.bf16.msra.mxu0 0
    %304 = vmatprep.subr.bf16.mxu0 0
    %305 = vmatpush1.bf16.msra.mxu0 0
    %306 = vmatprep.subr.bf16.mxu0 0
    %307 = vmatpush1.bf16.msra.mxu0 0
    %308 = vmatprep.mubr.bf16.mxu0 0
    %309 = vmatmul.mubr.bf16.gmra.mrb[0].mxu0 %v163
    %v310 = vpop.f32.mrb[0].mxu0
    %v311 = vadd.f32 %v104, %v310
    %v312 = vpop.f32.mrb[0].mxu0
    %v313 = vadd.f32 %v108, %v312
    %v314 = vpop.f32.mrb[0].mxu0
    %v315 = vadd.f32 %v104, %v314
    %v316 = vpop.f32.mrb[0].mxu0
    %v317 = vadd.f32 %v108, %v316
    %318 = vdwg.mxu0
    %319 = vmatprep.subr.bf16.mxu0 %v188
    %320 = vmatpush1.bf16.msra.mxu0 %v185
    %321 = vmatprep.subr.bf16.mxu0 0
    %322 = vmatpush1.bf16.msra.mxu0 0
    %323 = vmatprep.subr.bf16.mxu0 0
    %324 = vmatpush1.bf16.msra.mxu0 0
    %325 = vmatprep.subr.bf16.mxu0 0
    %326 = vmatpush1.bf16.msra.mxu0 0
    %327 = vmatprep.subr.bf16.mxu0 0
    %328 = vmatpush1.bf16.msra.mxu0 0
    %329 = vmatprep.subr.bf16.mxu0 0
    %330 = vmatpush1.bf16.msra.mxu0 0
    %331 = vmatprep.subr.bf16.mxu0 0
    %332 = vmatpush1.bf16.msra.mxu0 0
    %333 = vmatprep.subr.bf16.mxu0 0
    %334 = vmatpush1.bf16.msra.mxu0 0
    %335 = vmatprep.subr.bf16.mxu0 0
    %336 = vmatpush1.bf16.msra.mxu0 0
    %337 = vmatprep.subr.bf16.mxu0 0
    %338 = vmatpush1.bf16.msra.mxu0 0
    %339 = vmatprep.subr.bf16.mxu0 0
    %340 = vmatpush1.bf16.msra.mxu0 0
    %341 = vmatprep.subr.bf16.mxu0 0
    %342 = vmatpush1.bf16.msra.mxu0 0
    %343 = vmatprep.subr.bf16.mxu0 0
    %344 = vmatpush1.bf16.msra.mxu0 0
    %345 = vmatprep.subr.bf16.mxu0 0
    %346 = vmatpush1.bf16.msra.mxu0 0
    %347 = vmatprep.subr.bf16.mxu0 0
    %348 = vmatpush1.bf16.msra.mxu0 0
    %349 = vmatprep.subr.bf16.mxu0 0
    %350 = vmatpush1.bf16.msra.mxu0 0
    %351 = vmatprep.mubr.bf16.mxu0 0
    %352 = vmatmul.mubr.bf16.gmra.mrb[0].mxu0 %v163
    %v353 = vpop.f32.mrb[0].mxu0
    %v354 = vadd.f32 %v112, %v353
    %v355 = vpop.f32.mrb[0].mxu0
    %v356 = vadd.f32 %v116, %v355
    %v357 = vpop.f32.mrb[0].mxu0
    %v358 = vadd.f32 %v112, %v357
    %v359 = vpop.f32.mrb[0].mxu0
    %v360 = vadd.f32 %v116, %v359
    %361 = vdwg.mxu0
    %v362 = vld [vmem:[#allocation3] sm:$0xff]
    %v363 = vld [vmem:[#allocation3 + $0x8] sm:$0xff]
    %v364 = vld [vmem:[#allocation3 + $0x10] sm:$0xff]
    %v365 = vld [vmem:[#allocation3 + $0x18] sm:$0xff]
    %v366 = vld [vmem:[#allocation3 + $0x20] sm:$0xff]
    %v367 = vld [vmem:[#allocation3 + $0x28] sm:$0xff]
    %v368 = vld [vmem:[#allocation3 + $0x30] sm:$0xff]
    %v369 = vld [vmem:[#allocation3 + $0x38] sm:$0xff]
    %v370 = vld [vmem:[#allocation3 + $0x40] sm:$0xff]
    %v371 = vld [vmem:[#allocation3 + $0x48] sm:$0xff]
    %v372 = vld [vmem:[#allocation3 + $0x50] sm:$0xff]
    %v373 = vld [vmem:[#allocation3 + $0x58] sm:$0xff]
    %v374 = vld [vmem:[#allocation3 + $0x60] sm:$0xff]
    %v375 = vld [vmem:[#allocation3 + $0x68] sm:$0xff]
    %v376 = vld [vmem:[#allocation3 + $0x70] sm:$0xff]
    %v377 = vld [vmem:[#allocation3 + $0x78] sm:$0xff]
    %v378 = vld [vmem:[#allocation3 + $0x80] sm:$0xff]
    %v379 = vld [vmem:[#allocation3 + $0x88] sm:$0xff]
    %v380 = vld [vmem:[#allocation3 + $0x90] sm:$0xff]
    %v381 = vld [vmem:[#allocation3 + $0x98] sm:$0xff]
    %v382 = vld [vmem:[#allocation3 + $0xa0] sm:$0xff]
    %v383 = vld [vmem:[#allocation3 + $0xa8] sm:$0xff]
    %v384 = vld [vmem:[#allocation3 + $0xb0] sm:$0xff]
    %v385 = vld [vmem:[#allocation3 + $0xb8] sm:$0xff]
    %v386 = vld [vmem:[#allocation3 + $0xc0] sm:$0xff]
    %v387 = vld [vmem:[#allocation3 + $0xc8] sm:$0xff]
    %v388 = vld [vmem:[#allocation3 + $0xd0] sm:$0xff]
    %v389 = vld [vmem:[#allocation3 + $0xd8] sm:$0xff]
    %v390 = vld [vmem:[#allocation3 + $0xe0] sm:$0xff]
    %v391 = vld [vmem:[#allocation3 + $0xe8] sm:$0xff]
    %v392 = vld [vmem:[#allocation3 + $0xf0] sm:$0xff]
    %v393 = vld [vmem:[#allocation3 + $0xf8] sm:$0xff]
    %v394 = vld [vmem:[%s4] sm:$0xf]
    %v395 = vld [vmem:[%s4 + $0x4] sm:$0xf]
    %v396 = vld [vmem:[%s4 + $0x8] sm:$0xf]
    %v397 = vld [vmem:[%s4 + $0xc] sm:$0xf]
    %v398 = vld [vmem:[%s4 + $0x10] sm:$0xf]
    %v399 = vld [vmem:[%s4 + $0x14] sm:$0xf]
    %v400 = vld [vmem:[%s4 + $0x18] sm:$0xf]
    %v401 = vld [vmem:[%s4 + $0x1c] sm:$0xf]
    %v402 = vld [vmem:[%s4 + $0x20] sm:$0xf]
    %v403 = vld [vmem:[%s4 + $0x24] sm:$0xf]
    %v404 = vld [vmem:[%s4 + $0x28] sm:$0xf]
    %v405 = vld [vmem:[%s4 + $0x2c] sm:$0xf]
    %v406 = vld [vmem:[%s4 + $0x30] sm:$0xf]
    %v407 = vld [vmem:[%s4 + $0x34] sm:$0xf]
    %v408 = vld [vmem:[%s4 + $0x38] sm:$0xf]
    %v409 = vld [vmem:[%s4 + $0x3c] sm:$0xf]
    %v418 = vrot.slane %v311, 7
    %v419 = vrot.slane %v313, 7
    %v420 = vrot.slane %v354, 7
    %v421 = vrot.slane %v356, 7
    %v422 = vrot.slane %v315, 7
    %v423 = vrot.slane %v317, 7
    %v424 = vrot.slane %v358, 7
    %v425 = vrot.slane %v360, 7
    %v434 = vadd.f32 %v225, %v418
    %v435 = vadd.f32 %v227, %v419
    %v436 = vadd.f32 %v268, %v420
    %v437 = vadd.f32 %v270, %v421
    %v438 = vadd.f32 %v229, %v422
    %v439 = vadd.f32 %v231, %v423
    %v440 = vadd.f32 %v272, %v424
    %v441 = vadd.f32 %v274, %v425
    %v474 = vunpack.c.l.b16 %v362
    %v475 = vunpack.c.h.b16 %v362
    %v476 = vunpack.c.l.b16 %v363
    %v477 = vunpack.c.h.b16 %v363
    %v478 = vunpack.c.l.b16 %v364
    %v479 = vunpack.c.h.b16 %v364
    %v480 = vunpack.c.l.b16 %v365
    %v481 = vunpack.c.h.b16 %v365
    %v482 = vunpack.c.l.b16 %v366
    %v483 = vunpack.c.h.b16 %v366
    %v484 = vunpack.c.l.b16 %v367
    %v485 = vunpack.c.h.b16 %v367
    %v486 = vunpack.c.l.b16 %v368
    %v487 = vunpack.c.h.b16 %v368
    %v488 = vunpack.c.l.b16 %v369
    %v489 = vunpack.c.h.b16 %v369
    %v490 = vunpack.c.l.b16 %v370
    %v491 = vunpack.c.h.b16 %v370
    %v492 = vunpack.c.l.b16 %v371
    %v493 = vunpack.c.h.b16 %v371
    %v494 = vunpack.c.l.b16 %v372
    %v495 = vunpack.c.h.b16 %v372
    %v496 = vunpack.c.l.b16 %v373
    %v497 = vunpack.c.h.b16 %v373
    %v498 = vunpack.c.l.b16 %v374
    %v499 = vunpack.c.h.b16 %v374
    %v500 = vunpack.c.l.b16 %v375
    %v501 = vunpack.c.h.b16 %v375
    %v502 = vunpack.c.l.b16 %v376
    %v503 = vunpack.c.h.b16 %v376
    %v504 = vunpack.c.l.b16 %v377
    %v505 = vunpack.c.h.b16 %v377
    %v506 = vunpack.c.l.b16 %v378
    %v507 = vunpack.c.h.b16 %v378
    %v508 = vunpack.c.l.b16 %v379
    %v509 = vunpack.c.h.b16 %v379
    %v510 = vunpack.c.l.b16 %v380
    %v511 = vunpack.c.h.b16 %v380
    %v512 = vunpack.c.l.b16 %v381
    %v513 = vunpack.c.h.b16 %v381
    %v514 = vunpack.c.l.b16 %v382
    %v515 = vunpack.c.h.b16 %v382
    %v516 = vunpack.c.l.b16 %v383
    %v517 = vunpack.c.h.b16 %v383
    %v518 = vunpack.c.l.b16 %v384
    %v519 = vunpack.c.h.b16 %v384
    %v520 = vunpack.c.l.b16 %v385
    %v521 = vunpack.c.h.b16 %v385
    %v522 = vunpack.c.l.b16 %v386
    %v523 = vunpack.c.h.b16 %v386
    %v524 = vunpack.c.l.b16 %v387
    %v525 = vunpack.c.h.b16 %v387
    %v526 = vunpack.c.l.b16 %v388
    %v527 = vunpack.c.h.b16 %v388
    %v528 = vunpack.c.l.b16 %v389
    %v529 = vunpack.c.h.b16 %v389
    %v530 = vunpack.c.l.b16 %v390
    %v531 = vunpack.c.h.b16 %v390
    %v532 = vunpack.c.l.b16 %v391
    %v533 = vunpack.c.h.b16 %v391
    %v534 = vunpack.c.l.b16 %v392
    %v535 = vunpack.c.h.b16 %v392
    %v536 = vunpack.c.l.b16 %v393
    %v537 = vunpack.c.h.b16 %v393
    %v538 = vpack.c.b16 %v478, %v474
    %v539 = vpack.c.b16 %v479, %v475
    %v540 = vpack.c.b16 %v480, %v476
    %v541 = vpack.c.b16 %v481, %v477
    %v542 = vpack.c.b16 %v486, %v482
    %v543 = vpack.c.b16 %v487, %v483
    %v544 = vpack.c.b16 %v488, %v484
    %v545 = vpack.c.b16 %v489, %v485
    %v546 = vpack.c.b16 %v494, %v490
    %v547 = vpack.c.b16 %v495, %v491
    %v548 = vpack.c.b16 %v496, %v492
    %v549 = vpack.c.b16 %v497, %v493
    %v550 = vpack.c.b16 %v502, %v498
    %v551 = vpack.c.b16 %v503, %v499
    %v552 = vpack.c.b16 %v504, %v500
    %v553 = vpack.c.b16 %v505, %v501
    %v554 = vpack.c.b16 %v510, %v506
    %v555 = vpack.c.b16 %v511, %v507
    %v556 = vpack.c.b16 %v512, %v508
    %v557 = vpack.c.b16 %v513, %v509
    %v558 = vpack.c.b16 %v518, %v514
    %v559 = vpack.c.b16 %v519, %v515
    %v560 = vpack.c.b16 %v520, %v516
    %v561 = vpack.c.b16 %v521, %v517
    %v562 = vpack.c.b16 %v526, %v522
    %v563 = vpack.c.b16 %v527, %v523
    %v564 = vpack.c.b16 %v528, %v524
    %v565 = vpack.c.b16 %v529, %v525
    %v566 = vpack.c.b16 %v534, %v530
    %v567 = vpack.c.b16 %v535, %v531
    %v568 = vpack.c.b16 %v536, %v532
    %v569 = vpack.c.b16 %v537, %v533
    %602 = vmatprep.subr.bf16.mxu0 %v539
    %603 = vmatpush1.bf16.msra.mxu0 %v538
    %604 = vmatprep.subr.bf16.mxu0 %v543
    %605 = vmatpush1.bf16.msra.mxu0 %v542
    %606 = vmatprep.subr.bf16.mxu0 %v547
    %607 = vmatpush1.bf16.msra.mxu0 %v546
    %608 = vmatprep.subr.bf16.mxu0 %v551
    %609 = vmatpush1.bf16.msra.mxu0 %v550
    %610 = vmatprep.subr.bf16.mxu0 %v555
    %611 = vmatpush1.bf16.msra.mxu0 %v554
    %612 = vmatprep.subr.bf16.mxu0 %v559
    %613 = vmatpush1.bf16.msra.mxu0 %v558
    %614 = vmatprep.subr.bf16.mxu0 %v563
    %615 = vmatpush1.bf16.msra.mxu0 %v562
    %616 = vmatprep.subr.bf16.mxu0 %v567
    %617 = vmatpush1.bf16.msra.mxu0 %v566
    %618 = vmatprep.subr.bf16.mxu0 0
    %619 = vmatpush1.bf16.msra.mxu0 0
    %620 = vmatprep.subr.bf16.mxu0 0
    %621 = vmatpush1.bf16.msra.mxu0 0
    %622 = vmatprep.subr.bf16.mxu0 0
    %623 = vmatpush1.bf16.msra.mxu0 0
    %624 = vmatprep.subr.bf16.mxu0 0
    %625 = vmatpush1.bf16.msra.mxu0 0
    %626 = vmatprep.subr.bf16.mxu0 0
    %627 = vmatpush1.bf16.msra.mxu0 0
    %628 = vmatprep.subr.bf16.mxu0 0
    %629 = vmatpush1.bf16.msra.mxu0 0
    %630 = vmatprep.subr.bf16.mxu0 0
    %631 = vmatpush1.bf16.msra.mxu0 0
    %632 = vmatprep.subr.bf16.mxu0 0
    %633 = vmatpush1.bf16.msra.mxu0 0
    %634 = vmatprep.mubr.bf16.mxu0 0
    %635 = vmatmul.mubr.bf16.gmra.mrb[0].mxu0 0
    %v636 = vpop.f32.mrb[0].mxu0
    %v637 = vadd.f32 0.0, %v636
    %v638 = vpop.f32.mrb[0].mxu0
    %v639 = vadd.f32 0.0, %v638
    %v640 = vpop.f32.mrb[0].mxu0
    %v641 = vpop.f32.mrb[0].mxu0
    %642 = vdwg.mxu0
    %643 = vmatprep.subr.bf16.mxu0 %v541
    %644 = vmatpush1.bf16.msra.mxu0 %v540
    %645 = vmatprep.subr.bf16.mxu0 %v545
    %646 = vmatpush1.bf16.msra.mxu0 %v544
    %647 = vmatprep.subr.bf16.mxu0 %v549
    %648 = vmatpush1.bf16.msra.mxu0 %v548
    %649 = vmatprep.subr.bf16.mxu0 %v553
    %650 = vmatpush1.bf16.msra.mxu0 %v552
    %651 = vmatprep.subr.bf16.mxu0 %v557
    %652 = vmatpush1.bf16.msra.mxu0 %v556
    %653 = vmatprep.subr.bf16.mxu0 %v561
    %654 = vmatpush1.bf16.msra.mxu0 %v560
    %655 = vmatprep.subr.bf16.mxu0 %v565
    %656 = vmatpush1.bf16.msra.mxu0 %v564
    %657 = vmatprep.subr.bf16.mxu0 %v569
    %658 = vmatpush1.bf16.msra.mxu0 %v568
    %659 = vmatprep.subr.bf16.mxu0 0
    %660 = vmatpush1.bf16.msra.mxu0 0
    %661 = vmatprep.subr.bf16.mxu0 0
    %662 = vmatpush1.bf16.msra.mxu0 0
    %663 = vmatprep.subr.bf16.mxu0 0
    %664 = vmatpush1.bf16.msra.mxu0 0
    %665 = vmatprep.subr.bf16.mxu0 0
    %666 = vmatpush1.bf16.msra.mxu0 0
    %667 = vmatprep.subr.bf16.mxu0 0
    %668 = vmatpush1.bf16.msra.mxu0 0
    %669 = vmatprep.subr.bf16.mxu0 0
    %670 = vmatpush1.bf16.msra.mxu0 0
    %671 = vmatprep.subr.bf16.mxu0 0
    %672 = vmatpush1.bf16.msra.mxu0 0
    %673 = vmatprep.subr.bf16.mxu0 0
    %674 = vmatpush1.bf16.msra.mxu0 0
    %675 = vmatprep.mubr.bf16.mxu0 0
    %676 = vmatmul.mubr.bf16.gmra.mrb[0].mxu0 0
    %v677 = vpop.f32.mrb[0].mxu0
    %v678 = vadd.f32 0.0, %v677
    %v679 = vpop.f32.mrb[0].mxu0
    %v680 = vadd.f32 0.0, %v679
    %v681 = vpop.f32.mrb[0].mxu0
    %v682 = vpop.f32.mrb[0].mxu0
    %683 = vdwg.mxu0
    %v688 = vrot.slane %v637, 1
    %v689 = vrot.slane %v639, 1
    %v690 = vrot.slane %v678, 1
    %v691 = vrot.slane %v680, 1
    %v700 = vadd.f32 %v434, %v637
    %v701 = vadd.f32 %v435, %v639
    %v702 = vadd.f32 %v436, %v678
    %v703 = vadd.f32 %v437, %v680
    %v704 = vadd.f32 %v438, %v688
    %v705 = vadd.f32 %v439, %v689
    %v706 = vadd.f32 %v440, %v690
    %v707 = vadd.f32 %v441, %v691
    %v708 = vxor.u32 %v700, 2147483648
    %v709 = vxor.u32 %v704, 2147483648
    %v710 = vmul.f32 %v708, 1.442695
    %v711 = vpow.pop %v710
    %v712 = vmul.f32 %v709, 1.442695
    %v713 = vpow.pop %v712
    %v714 = vadd.f32 %v711, 1.0
    %v715 = vadd.f32 %v713, 1.0
    %v716 = vrcp.pop %v714
    %v717 = vmul.f32 1.0, %v716
    %v718 = vrcp.pop %v715
    %v719 = vmul.f32 1.0, %v718
    %v720 = vxor.u32 %v701, 2147483648
    %v721 = vxor.u32 %v705, 2147483648
    %v722 = vmul.f32 %v720, 1.442695
    %v723 = vpow.pop %v722
    %v724 = vmul.f32 %v721, 1.442695
    %v725 = vpow.pop %v724
    %v726 = vadd.f32 %v723, 1.0
    %v727 = vadd.f32 %v725, 1.0
    %v728 = vrcp.pop %v726
    %v729 = vmul.f32 1.0, %v728
    %v730 = vrcp.pop %v727
    %v731 = vmul.f32 1.0, %v730
    %v732 = vtanh.pop %v702
    %v733 = vtanh.pop %v706
    %v734 = vxor.u32 %v703, 2147483648
    %v735 = vxor.u32 %v707, 2147483648
    %v736 = vmul.f32 %v734, 1.442695
    %v737 = vpow.pop %v736
    %v738 = vmul.f32 %v735, 1.442695
    %v739 = vpow.pop %v738
    %v740 = vadd.f32 %v737, 1.0
    %v741 = vadd.f32 %v739, 1.0
    %v742 = vrcp.pop %v740
    %v743 = vmul.f32 1.0, %v742
    %v744 = vrcp.pop %v741
    %v745 = vmul.f32 1.0, %v744
    %v746 = vmul.f32 %v729, 0.0
    %v747 = vmul.f32 %v731, 0.0
    %v748 = vmul.f32 %v717, %v732
    %v749 = vmul.f32 %v719, %v733
    %v750 = vadd.f32 %v746, %v748
    %v751 = vadd.f32 %v747, %v749
    %v752 = vtanh.pop %v750
    %v753 = vtanh.pop %v751
    %v754 = vmul.f32 %v743, %v752
    %v755 = vmul.f32 %v745, %v753
    %v756 = vpack.c.bf16 %v754, %v754
    %v757 = vpack.c.bf16 %v755, %v755
    %v760 = vunpack.c.l.b16 %v756
    %v761 = vunpack.c.l.b16 %v757
    %v762 = vrot.slane %v761, 7
    %vm763 = vcmask 1041409
    %v764 = vsel %vm763, %v762, %v760
    %v765 = vpack.c.b16 %v764, %v764
    %v783 = vunpack.c.l.b16 %v394
    %v784 = vunpack.c.l.b16 %v395
    %v785 = vunpack.c.l.b16 %v396
    %v786 = vunpack.c.l.b16 %v397
    %v787 = vunpack.c.l.b16 %v398
    %v788 = vunpack.c.l.b16 %v399
    %v789 = vunpack.c.l.b16 %v400
    %v790 = vunpack.c.l.b16 %v401
    %v791 = vunpack.c.l.b16 %v402
    %v792 = vunpack.c.l.b16 %v403
    %v793 = vunpack.c.l.b16 %v404
    %v794 = vunpack.c.l.b16 %v405
    %v795 = vunpack.c.l.b16 %v406
    %v796 = vunpack.c.l.b16 %v407
    %v797 = vunpack.c.l.b16 %v408
    %v798 = vunpack.c.l.b16 %v409
    %v799 = vpack.c.b16 %v784, %v783
    %v800 = vpack.c.b16 %v786, %v785
    %v801 = vpack.c.b16 %v788, %v787
    %v802 = vpack.c.b16 %v790, %v789
    %v803 = vpack.c.b16 %v792, %v791
    %v804 = vpack.c.b16 %v794, %v793
    %v805 = vpack.c.b16 %v796, %v795
    %v806 = vpack.c.b16 %v798, %v797
    %815 = vmatprep.subr.bf16.mxu0 0
    %816 = vmatpush1.bf16.msra.mxu0 %v799
    %817 = vmatprep.subr.bf16.mxu0 0
    %818 = vmatpush1.bf16.msra.mxu0 %v800
    %819 = vmatprep.subr.bf16.mxu0 0
    %820 = vmatpush1.bf16.msra.mxu0 %v801
    %821 = vmatprep.subr.bf16.mxu0 0
    %822 = vmatpush1.bf16.msra.mxu0 %v802
    %823 = vmatprep.subr.bf16.mxu0 0
    %824 = vmatpush1.bf16.msra.mxu0 %v803
    %825 = vmatprep.subr.bf16.mxu0 0
    %826 = vmatpush1.bf16.msra.mxu0 %v804
    %827 = vmatprep.subr.bf16.mxu0 0
    %828 = vmatpush1.bf16.msra.mxu0 %v805
    %829 = vmatprep.subr.bf16.mxu0 0
    %830 = vmatpush1.bf16.msra.mxu0 %v806
    %831 = vmatprep.subr.bf16.mxu0 0
    %832 = vmatpush1.bf16.msra.mxu0 0
    %833 = vmatprep.subr.bf16.mxu0 0
    %834 = vmatpush1.bf16.msra.mxu0 0
    %835 = vmatprep.subr.bf16.mxu0 0
    %836 = vmatpush1.bf16.msra.mxu0 0
    %837 = vmatprep.subr.bf16.mxu0 0
    %838 = vmatpush1.bf16.msra.mxu0 0
    %839 = vmatprep.subr.bf16.mxu0 0
    %840 = vmatpush1.bf16.msra.mxu0 0
    %841 = vmatprep.subr.bf16.mxu0 0
    %842 = vmatpush1.bf16.msra.mxu0 0
    %843 = vmatprep.subr.bf16.mxu0 0
    %844 = vmatpush1.bf16.msra.mxu0 0
    %845 = vmatprep.subr.bf16.mxu0 0
    %846 = vmatpush1.bf16.msra.mxu0 0
    %847 = vmatprep.mubr.bf16.mxu0 0
    %848 = vmatmul.mubr.bf16.gmra.mrb[0].mxu0 %v765
    %v849 = vpop.f32.mrb[0].mxu0
    %v850 = vadd.f32 0.0, %v849
    %v851 = vpop.f32.mrb[0].mxu0
    %v852 = vpop.f32.mrb[0].mxu0
    %v853 = vpop.f32.mrb[0].mxu0
    %854 = vdwg.mxu0
    %v855 = vrot.slane %v311, 5
    %v856 = vrot.slane %v313, 5
    %v857 = vrot.slane %v354, 5
    %v858 = vrot.slane %v356, 5
    %v859 = vrot.slane %v315, 5
    %v860 = vrot.slane %v317, 5
    %v861 = vrot.slane %v358, 5
    %v862 = vrot.slane %v360, 5
    %v871 = vadd.f32 %v225, %v855
    %v872 = vadd.f32 %v227, %v856
    %v873 = vadd.f32 %v268, %v857
    %v874 = vadd.f32 %v270, %v858
    %v875 = vadd.f32 %v229, %v859
    %v876 = vadd.f32 %v231, %v860
    %v877 = vadd.f32 %v272, %v861
    %v878 = vadd.f32 %v274, %v862
    %879 = vmatprep.subr.bf16.mxu0 %v539
    %880 = vmatpush1.bf16.msra.mxu0 %v538
    %881 = vmatprep.subr.bf16.mxu0 %v543
    %882 = vmatpush1.bf16.msra.mxu0 %v542
    %883 = vmatprep.subr.bf16.mxu0 %v547
    %884 = vmatpush1.bf16.msra.mxu0 %v546
    %885 = vmatprep.subr.bf16.mxu0 %v551
    %886 = vmatpush1.bf16.msra.mxu0 %v550
    %887 = vmatprep.subr.bf16.mxu0 %v555
    %888 = vmatpush1.bf16.msra.mxu0 %v554
    %889 = vmatprep.subr.bf16.mxu0 %v559
    %890 = vmatpush1.bf16.msra.mxu0 %v558
    %891 = vmatprep.subr.bf16.mxu0 %v563
    %892 = vmatpush1.bf16.msra.mxu0 %v562
    %893 = vmatprep.subr.bf16.mxu0 %v567
    %894 = vmatpush1.bf16.msra.mxu0 %v566
    %895 = vmatprep.subr.bf16.mxu0 0
    %896 = vmatpush1.bf16.msra.mxu0 0
    %897 = vmatprep.subr.bf16.mxu0 0
    %898 = vmatpush1.bf16.msra.mxu0 0
    %899 = vmatprep.subr.bf16.mxu0 0
    %900 = vmatpush1.bf16.msra.mxu0 0
    %901 = vmatprep.subr.bf16.mxu0 0
    %902 = vmatpush1.bf16.msra.mxu0 0
    %903 = vmatprep.subr.bf16.mxu0 0
    %904 = vmatpush1.bf16.msra.mxu0 0
    %905 = vmatprep.subr.bf16.mxu0 0
    %906 = vmatpush1.bf16.msra.mxu0 0
    %907 = vmatprep.subr.bf16.mxu0 0
    %908 = vmatpush1.bf16.msra.mxu0 0
    %909 = vmatprep.subr.bf16.mxu0 0
    %910 = vmatpush1.bf16.msra.mxu0 0
    %911 = vmatprep.mubr.bf16.mxu0 0
    %912 = vmatmul.mubr.bf16.gmra.mrb[0].mxu0 %v765
    %v913 = vpop.f32.mrb[0].mxu0
    %v914 = vadd.f32 0.0, %v913
    %v915 = vpop.f32.mrb[0].mxu0
    %v916 = vadd.f32 0.0, %v915
    %v917 = vpop.f32.mrb[0].mxu0
    %v918 = vpop.f32.mrb[0].mxu0
    %919 = vdwg.mxu0
    %920 = vmatprep.subr.bf16.mxu0 %v541
    %921 = vmatpush1.bf16.msra.mxu0 %v540
    %922 = vmatprep.subr.bf16.mxu0 %v545
    %923 = vmatpush1.bf16.msra.mxu0 %v544
    %924 = vmatprep.subr.bf16.mxu0 %v549
    %925 = vmatpush1.bf16.msra.mxu0 %v548
    %926 = vmatprep.subr.bf16.mxu0 %v553
    %927 = vmatpush1.bf16.msra.mxu0 %v552
    %928 = vmatprep.subr.bf16.mxu0 %v557
    %929 = vmatpush1.bf16.msra.mxu0 %v556
    %930 = vmatprep.subr.bf16.mxu0 %v561
    %931 = vmatpush1.bf16.msra.mxu0 %v560
    %932 = vmatprep.subr.bf16.mxu0 %v565
    %933 = vmatpush1.bf16.msra.mxu0 %v564
    %934 = vmatprep.subr.bf16.mxu0 %v569
    %935 = vmatpush1.bf16.msra.mxu0 %v568
    %936 = vmatprep.subr.bf16.mxu0 0
    %937 = vmatpush1.bf16.msra.mxu0 0
    %938 = vmatprep.subr.bf16.mxu0 0
    %939 = vmatpush1.bf16.msra.mxu0 0
    %940 = vmatprep.subr.bf16.mxu0 0
    %941 = vmatpush1.bf16.msra.mxu0 0
    %942 = vmatprep.subr.bf16.mxu0 0
    %943 = vmatpush1.bf16.msra.mxu0 0
    %944 = vmatprep.subr.bf16.mxu0 0
    %945 = vmatpush1.bf16.msra.mxu0 0
    %946 = vmatprep.subr.bf16.mxu0 0
    %947 = vmatpush1.bf16.msra.mxu0 0
    %948 = vmatprep.subr.bf16.mxu0 0
    %949 = vmatpush1.bf16.msra.mxu0 0
    %950 = vmatprep.subr.bf16.mxu0 0
    %951 = vmatpush1.bf16.msra.mxu0 0
    %952 = vmatprep.mubr.bf16.mxu0 0
    %953 = vmatmul.mubr.bf16.gmra.mrb[0].mxu0 %v765
    %v954 = vpop.f32.mrb[0].mxu0
    %v955 = vadd.f32 0.0, %v954
    %v956 = vpop.f32.mrb[0].mxu0
    %v957 = vadd.f32 0.0, %v956
    %v958 = vpop.f32.mrb[0].mxu0
    %v959 = vpop.f32.mrb[0].mxu0
    %960 = vdwg.mxu0
    %v965 = vrot.slane %v914, 7
    %v966 = vrot.slane %v916, 7
    %v967 = vrot.slane %v955, 7
    %v968 = vrot.slane %v957, 7
    %v977 = vadd.f32 %v871, %v965
    %v978 = vadd.f32 %v872, %v966
    %v979 = vadd.f32 %v873, %v967
    %v980 = vadd.f32 %v874, %v968
    %v981 = vadd.f32 %v875, %v914
    %v982 = vadd.f32 %v876, %v916
    %v983 = vadd.f32 %v877, %v955
    %v984 = vadd.f32 %v878, %v957
    %v985 = vxor.u32 %v977, 2147483648
    %v986 = vxor.u32 %v981, 2147483648
    %v987 = vmul.f32 %v985, 1.442695
    %v988 = vpow.pop %v987
    %v989 = vmul.f32 %v986, 1.442695
    %v990 = vpow.pop %v989
    %v991 = vadd.f32 %v988, 1.0
    %v992 = vadd.f32 %v990, 1.0
    %v993 = vrcp.pop %v991
    %v994 = vmul.f32 1.0, %v993
    %v995 = vrcp.pop %v992
    %v996 = vmul.f32 1.0, %v995
    %v997 = vxor.u32 %v978, 2147483648
    %v998 = vxor.u32 %v982, 2147483648
    %v999 = vmul.f32 %v997, 1.442695
    %v1000 = vpow.pop %v999
    %v1001 = vmul.f32 %v998, 1.442695
    %v1002 = vpow.pop %v1001
    %v1003 = vadd.f32 %v1000, 1.0
    %v1004 = vadd.f32 %v1002, 1.0
    %v1005 = vrcp.pop %v1003
    %v1006 = vmul.f32 1.0, %v1005
    %v1007 = vrcp.pop %v1004
    %v1008 = vmul.f32 1.0, %v1007
    %v1009 = vtanh.pop %v979
    %v1010 = vtanh.pop %v983
    %v1011 = vxor.u32 %v980, 2147483648
    %v1012 = vxor.u32 %v984, 2147483648
    %v1013 = vmul.f32 %v1011, 1.442695
    %v1014 = vpow.pop %v1013
    %v1015 = vmul.f32 %v1012, 1.442695
    %v1016 = vpow.pop %v1015
    %v1017 = vadd.f32 %v1014, 1.0
    %v1018 = vadd.f32 %v1016, 1.0
    %v1019 = vrcp.pop %v1017
    %v1020 = vmul.f32 1.0, %v1019
    %v1021 = vrcp.pop %v1018
    %v1022 = vmul.f32 1.0, %v1021
    %v1025 = vrot.slane %v750, 7
    %v1026 = vrot.slane %v751, 7
    %v1029 = vmul.f32 %v1006, %v1025
    %v1030 = vmul.f32 %v1008, %v1026
    %v1031 = vmul.f32 %v994, %v1009
    %v1032 = vmul.f32 %v996, %v1010
    %v1033 = vadd.f32 %v1029, %v1031
    %v1034 = vadd.f32 %v1030, %v1032
    %v1035 = vtanh.pop %v1033
    %v1036 = vtanh.pop %v1034
    %v1037 = vmul.f32 %v1020, %v1035
    %v1038 = vmul.f32 %v1022, %v1036
    %v1039 = vpack.c.bf16 %v1037, %v1037
    %v1040 = vpack.c.bf16 %v1038, %v1038
    %v1043 = vunpack.c.l.b16 %v1039
    %v1044 = vunpack.c.l.b16 %v1040
    %v1045 = vrot.slane %v1043, 1
    %v1046 = vsel %vm763, %v1044, %v1045
    %v1047 = vpack.c.b16 %v1046, %v1046
    %1049 = vmatprep.subr.bf16.mxu0 0
    %1050 = vmatpush1.bf16.msra.mxu0 %v799
    %1051 = vmatprep.subr.bf16.mxu0 0
    %1052 = vmatpush1.bf16.msra.mxu0 %v800
    %1053 = vmatprep.subr.bf16.mxu0 0
    %1054 = vmatpush1.bf16.msra.mxu0 %v801
    %1055 = vmatprep.subr.bf16.mxu0 0
    %1056 = vmatpush1.bf16.msra.mxu0 %v802
    %1057 = vmatprep.subr.bf16.mxu0 0
    %1058 = vmatpush1.bf16.msra.mxu0 %v803
    %1059 = vmatprep.subr.bf16.mxu0 0
    %1060 = vmatpush1.bf16.msra.mxu0 %v804
    %1061 = vmatprep.subr.bf16.mxu0 0
    %1062 = vmatpush1.bf16.msra.mxu0 %v805
    %1063 = vmatprep.subr.bf16.mxu0 0
    %1064 = vmatpush1.bf16.msra.mxu0 %v806
    %1065 = vmatprep.subr.bf16.mxu0 0
    %1066 = vmatpush1.bf16.msra.mxu0 0
    %1067 = vmatprep.subr.bf16.mxu0 0
    %1068 = vmatpush1.bf16.msra.mxu0 0
    %1069 = vmatprep.subr.bf16.mxu0 0
    %1070 = vmatpush1.bf16.msra.mxu0 0
    %1071 = vmatprep.subr.bf16.mxu0 0
    %1072 = vmatpush1.bf16.msra.mxu0 0
    %1073 = vmatprep.subr.bf16.mxu0 0
    %1074 = vmatpush1.bf16.msra.mxu0 0
    %1075 = vmatprep.subr.bf16.mxu0 0
    %1076 = vmatpush1.bf16.msra.mxu0 0
    %1077 = vmatprep.subr.bf16.mxu0 0
    %1078 = vmatpush1.bf16.msra.mxu0 0
    %1079 = vmatprep.subr.bf16.mxu0 0
    %1080 = vmatpush1.bf16.msra.mxu0 0
    %1081 = vmatprep.mubr.bf16.mxu0 0
    %1082 = vmatmul.mubr.bf16.gmra.mrb[0].mxu0 %v1047
    %v1083 = vpop.f32.mrb[0].mxu0
    %v1084 = vadd.f32 0.0, %v1083
    %v1085 = vpop.f32.mrb[0].mxu0
    %v1086 = vpop.f32.mrb[0].mxu0
    %v1087 = vpop.f32.mrb[0].mxu0
    %1088 = vdwg.mxu0
    %v1089 = vrot.slane %v311, 3
    %v1090 = vrot.slane %v313, 3
    %v1091 = vrot.slane %v354, 3
    %v1092 = vrot.slane %v356, 3
    %v1093 = vrot.slane %v315, 3
    %v1094 = vrot.slane %v317, 3
    %v1095 = vrot.slane %v358, 3
    %v1096 = vrot.slane %v360, 3
    %v1105 = vadd.f32 %v225, %v1089
    %v1106 = vadd.f32 %v227, %v1090
    %v1107 = vadd.f32 %v268, %v1091
    %v1108 = vadd.f32 %v270, %v1092
    %v1109 = vadd.f32 %v229, %v1093
    %v1110 = vadd.f32 %v231, %v1094
    %v1111 = vadd.f32 %v272, %v1095
    %v1112 = vadd.f32 %v274, %v1096
    %1113 = vmatprep.subr.bf16.mxu0 %v539
    %1114 = vmatpush1.bf16.msra.mxu0 %v538
    %1115 = vmatprep.subr.bf16.mxu0 %v543
    %1116 = vmatpush1.bf16.msra.mxu0 %v542
    %1117 = vmatprep.subr.bf16.mxu0 %v547
    %1118 = vmatpush1.bf16.msra.mxu0 %v546
    %1119 = vmatprep.subr.bf16.mxu0 %v551
    %1120 = vmatpush1.bf16.msra.mxu0 %v550
    %1121 = vmatprep.subr.bf16.mxu0 %v555
    %1122 = vmatpush1.bf16.msra.mxu0 %v554
    %1123 = vmatprep.subr.bf16.mxu0 %v559
    %1124 = vmatpush1.bf16.msra.mxu0 %v558
    %1125 = vmatprep.subr.bf16.mxu0 %v563
    %1126 = vmatpush1.bf16.msra.mxu0 %v562
    %1127 = vmatprep.subr.bf16.mxu0 %v567
    %1128 = vmatpush1.bf16.msra.mxu0 %v566
    %1129 = vmatprep.subr.bf16.mxu0 0
    %1130 = vmatpush1.bf16.msra.mxu0 0
    %1131 = vmatprep.subr.bf16.mxu0 0
    %1132 = vmatpush1.bf16.msra.mxu0 0
    %1133 = vmatprep.subr.bf16.mxu0 0
    %1134 = vmatpush1.bf16.msra.mxu0 0
    %1135 = vmatprep.subr.bf16.mxu0 0
    %1136 = vmatpush1.bf16.msra.mxu0 0
    %1137 = vmatprep.subr.bf16.mxu0 0
    %1138 = vmatpush1.bf16.msra.mxu0 0
    %1139 = vmatprep.subr.bf16.mxu0 0
    %1140 = vmatpush1.bf16.msra.mxu0 0
    %1141 = vmatprep.subr.bf16.mxu0 0
    %1142 = vmatpush1.bf16.msra.mxu0 0
    %1143 = vmatprep.subr.bf16.mxu0 0
    %1144 = vmatpush1.bf16.msra.mxu0 0
    %1145 = vmatprep.mubr.bf16.mxu0 0
    %1146 = vmatmul.mubr.bf16.gmra.mrb[0].mxu0 %v1047
    %v1147 = vpop.f32.mrb[0].mxu0
    %v1148 = vadd.f32 0.0, %v1147
    %v1149 = vpop.f32.mrb[0].mxu0
    %v1150 = vadd.f32 0.0, %v1149
    %v1151 = vpop.f32.mrb[0].mxu0
    %v1152 = vpop.f32.mrb[0].mxu0
    %1153 = vdwg.mxu0
    %1154 = vmatprep.subr.bf16.mxu0 %v541
    %1155 = vmatpush1.bf16.msra.mxu0 %v540
    %1156 = vmatprep.subr.bf16.mxu0 %v545
    %1157 = vmatpush1.bf16.msra.mxu0 %v544
    %1158 = vmatprep.subr.bf16.mxu0 %v549
    %1159 = vmatpush1.bf16.msra.mxu0 %v548
    %1160 = vmatprep.subr.bf16.mxu0 %v553
    %1161 = vmatpush1.bf16.msra.mxu0 %v552
    %1162 = vmatprep.subr.bf16.mxu0 %v557
    %1163 = vmatpush1.bf16.msra.mxu0 %v556
    %1164 = vmatprep.subr.bf16.mxu0 %v561
    %1165 = vmatpush1.bf16.msra.mxu0 %v560
    %1166 = vmatprep.subr.bf16.mxu0 %v565
    %1167 = vmatpush1.bf16.msra.mxu0 %v564
    %1168 = vmatprep.subr.bf16.mxu0 %v569
    %1169 = vmatpush1.bf16.msra.mxu0 %v568
    %1170 = vmatprep.subr.bf16.mxu0 0
    %1171 = vmatpush1.bf16.msra.mxu0 0
    %1172 = vmatprep.subr.bf16.mxu0 0
    %1173 = vmatpush1.bf16.msra.mxu0 0
    %1174 = vmatprep.subr.bf16.mxu0 0
    %1175 = vmatpush1.bf16.msra.mxu0 0
    %1176 = vmatprep.subr.bf16.mxu0 0
    %1177 = vmatpush1.bf16.msra.mxu0 0
    %1178 = vmatprep.subr.bf16.mxu0 0
    %1179 = vmatpush1.bf16.msra.mxu0 0
    %1180 = vmatprep.subr.bf16.mxu0 0
    %1181 = vmatpush1.bf16.msra.mxu0 0
    %1182 = vmatprep.subr.bf16.mxu0 0
    %1183 = vmatpush1.bf16.msra.mxu0 0
    %1184 = vmatprep.subr.bf16.mxu0 0
    %1185 = vmatpush1.bf16.msra.mxu0 0
    %1186 = vmatprep.mubr.bf16.mxu0 0
    %1187 = vmatmul.mubr.bf16.gmra.mrb[0].mxu0 %v1047
    %v1188 = vpop.f32.mrb[0].mxu0
    %v1189 = vadd.f32 0.0, %v1188
    %v1190 = vpop.f32.mrb[0].mxu0
    %v1191 = vadd.f32 0.0, %v1190
    %v1192 = vpop.f32.mrb[0].mxu0
    %v1193 = vpop.f32.mrb[0].mxu0
    %1194 = vdwg.mxu0
    %v1199 = vrot.slane %v1148, 6
    %v1200 = vrot.slane %v1150, 6
    %v1201 = vrot.slane %v1189, 6
    %v1202 = vrot.slane %v1191, 6
    %v1203 = vrot.slane %v1148, 7
    %v1204 = vrot.slane %v1150, 7
    %v1205 = vrot.slane %v1189, 7
    %v1206 = vrot.slane %v1191, 7
    %v1215 = vadd.f32 %v1105, %v1199
    %v1216 = vadd.f32 %v1106, %v1200
    %v1217 = vadd.f32 %v1107, %v1201
    %v1218 = vadd.f32 %v1108, %v1202
    %v1219 = vadd.f32 %v1109, %v1203
    %v1220 = vadd.f32 %v1110, %v1204
    %v1221 = vadd.f32 %v1111, %v1205
    %v1222 = vadd.f32 %v1112, %v1206
    %v1223 = vxor.u32 %v1215, 2147483648
    %v1224 = vxor.u32 %v1219, 2147483648
    %v1225 = vmul.f32 %v1223, 1.442695
    %v1226 = vpow.pop %v1225
    %v1227 = vmul.f32 %v1224, 1.442695
    %v1228 = vpow.pop %v1227
    %v1229 = vadd.f32 %v1226, 1.0
    %v1230 = vadd.f32 %v1228, 1.0
    %v1231 = vrcp.pop %v1229
    %v1232 = vmul.f32 1.0, %v1231
    %v1233 = vrcp.pop %v1230
    %v1234 = vmul.f32 1.0, %v1233
    %v1235 = vxor.u32 %v1216, 2147483648
    %v1236 = vxor.u32 %v1220, 2147483648
    %v1237 = vmul.f32 %v1235, 1.442695
    %v1238 = vpow.pop %v1237
    %v1239 = vmul.f32 %v1236, 1.442695
    %v1240 = vpow.pop %v1239
    %v1241 = vadd.f32 %v1238, 1.0
    %v1242 = vadd.f32 %v1240, 1.0
    %v1243 = vrcp.pop %v1241
    %v1244 = vmul.f32 1.0, %v1243
    %v1245 = vrcp.pop %v1242
    %v1246 = vmul.f32 1.0, %v1245
    %v1247 = vtanh.pop %v1217
    %v1248 = vtanh.pop %v1221
    %v1249 = vxor.u32 %v1218, 2147483648
    %v1250 = vxor.u32 %v1222, 2147483648
    %v1251 = vmul.f32 %v1249, 1.442695
    %v1252 = vpow.pop %v1251
    %v1253 = vmul.f32 %v1250, 1.442695
    %v1254 = vpow.pop %v1253
    %v1255 = vadd.f32 %v1252, 1.0
    %v1256 = vadd.f32 %v1254, 1.0
    %v1257 = vrcp.pop %v1255
    %v1258 = vmul.f32 1.0, %v1257
    %v1259 = vrcp.pop %v1256
    %v1260 = vmul.f32 1.0, %v1259
    %v1263 = vrot.slane %v1033, 7
    %v1264 = vrot.slane %v1034, 7
    %v1267 = vmul.f32 %v1244, %v1263
    %v1268 = vmul.f32 %v1246, %v1264
    %v1269 = vmul.f32 %v1232, %v1247
    %v1270 = vmul.f32 %v1234, %v1248
    %v1271 = vadd.f32 %v1267, %v1269
    %v1272 = vadd.f32 %v1268, %v1270
    %v1273 = vtanh.pop %v1271
    %v1274 = vtanh.pop %v1272
    %v1275 = vmul.f32 %v1258, %v1273
    %v1276 = vmul.f32 %v1260, %v1274
    %v1277 = vpack.c.bf16 %v1275, %v1275
    %v1278 = vpack.c.bf16 %v1276, %v1276
    %v1281 = vunpack.c.l.b16 %v1277
    %v1282 = vunpack.c.l.b16 %v1278
    %v1283 = vrot.slane %v1281, 2
    %v1284 = vrot.slane %v1282, 1
    %v1285 = vsel %vm763, %v1284, %v1283
    %v1286 = vpack.c.b16 %v1285, %v1285
    %1288 = vmatprep.subr.bf16.mxu0 0
    %1289 = vmatpush1.bf16.msra.mxu0 %v799
    %1290 = vmatprep.subr.bf16.mxu0 0
    %1291 = vmatpush1.bf16.msra.mxu0 %v800
    %1292 = vmatprep.subr.bf16.mxu0 0
    %1293 = vmatpush1.bf16.msra.mxu0 %v801
    %1294 = vmatprep.subr.bf16.mxu0 0
    %1295 = vmatpush1.bf16.msra.mxu0 %v802
    %1296 = vmatprep.subr.bf16.mxu0 0
    %1297 = vmatpush1.bf16.msra.mxu0 %v803
    %1298 = vmatprep.subr.bf16.mxu0 0
    %1299 = vmatpush1.bf16.msra.mxu0 %v804
    %1300 = vmatprep.subr.bf16.mxu0 0
    %1301 = vmatpush1.bf16.msra.mxu0 %v805
    %1302 = vmatprep.subr.bf16.mxu0 0
    %1303 = vmatpush1.bf16.msra.mxu0 %v806
    %1304 = vmatprep.subr.bf16.mxu0 0
    %1305 = vmatpush1.bf16.msra.mxu0 0
    %1306 = vmatprep.subr.bf16.mxu0 0
    %1307 = vmatpush1.bf16.msra.mxu0 0
    %1308 = vmatprep.subr.bf16.mxu0 0
    %1309 = vmatpush1.bf16.msra.mxu0 0
    %1310 = vmatprep.subr.bf16.mxu0 0
    %1311 = vmatpush1.bf16.msra.mxu0 0
    %1312 = vmatprep.subr.bf16.mxu0 0
    %1313 = vmatpush1.bf16.msra.mxu0 0
    %1314 = vmatprep.subr.bf16.mxu0 0
    %1315 = vmatpush1.bf16.msra.mxu0 0
    %1316 = vmatprep.subr.bf16.mxu0 0
    %1317 = vmatpush1.bf16.msra.mxu0 0
    %1318 = vmatprep.subr.bf16.mxu0 0
    %1319 = vmatpush1.bf16.msra.mxu0 0
    %1320 = vmatprep.mubr.bf16.mxu0 0
    %1321 = vmatmul.mubr.bf16.gmra.mrb[0].mxu0 %v1286
    %v1322 = vpop.f32.mrb[0].mxu0
    %v1323 = vadd.f32 0.0, %v1322
    %v1324 = vpop.f32.mrb[0].mxu0
    %v1325 = vpop.f32.mrb[0].mxu0
    %v1326 = vpop.f32.mrb[0].mxu0
    %1327 = vdwg.mxu0
    %v1328 = vrot.slane %v311, 1
    %v1329 = vrot.slane %v313, 1
    %v1330 = vrot.slane %v354, 1
    %v1331 = vrot.slane %v356, 1
    %v1332 = vrot.slane %v315, 1
    %v1333 = vrot.slane %v317, 1
    %v1334 = vrot.slane %v358, 1
    %v1335 = vrot.slane %v360, 1
    %v1344 = vadd.f32 %v225, %v1328
    %v1345 = vadd.f32 %v227, %v1329
    %v1346 = vadd.f32 %v268, %v1330
    %v1347 = vadd.f32 %v270, %v1331
    %v1348 = vadd.f32 %v229, %v1332
    %v1349 = vadd.f32 %v231, %v1333
    %v1350 = vadd.f32 %v272, %v1334
    %v1351 = vadd.f32 %v274, %v1335
    %1352 = vmatprep.subr.bf16.mxu0 %v539
    %1353 = vmatpush1.bf16.msra.mxu0 %v538
    %1354 = vmatprep.subr.bf16.mxu0 %v543
    %1355 = vmatpush1.bf16.msra.mxu0 %v542
    %1356 = vmatprep.subr.bf16.mxu0 %v547
    %1357 = vmatpush1.bf16.msra.mxu0 %v546
    %1358 = vmatprep.subr.bf16.mxu0 %v551
    %1359 = vmatpush1.bf16.msra.mxu0 %v550
    %1360 = vmatprep.subr.bf16.mxu0 %v555
    %1361 = vmatpush1.bf16.msra.mxu0 %v554
    %1362 = vmatprep.subr.bf16.mxu0 %v559
    %1363 = vmatpush1.bf16.msra.mxu0 %v558
    %1364 = vmatprep.subr.bf16.mxu0 %v563
    %1365 = vmatpush1.bf16.msra.mxu0 %v562
    %1366 = vmatprep.subr.bf16.mxu0 %v567
    %1367 = vmatpush1.bf16.msra.mxu0 %v566
    %1368 = vmatprep.subr.bf16.mxu0 0
    %1369 = vmatpush1.bf16.msra.mxu0 0
    %1370 = vmatprep.subr.bf16.mxu0 0
    %1371 = vmatpush1.bf16.msra.mxu0 0
    %1372 = vmatprep.subr.bf16.mxu0 0
    %1373 = vmatpush1.bf16.msra.mxu0 0
    %1374 = vmatprep.subr.bf16.mxu0 0
    %1375 = vmatpush1.bf16.msra.mxu0 0
    %1376 = vmatprep.subr.bf16.mxu0 0
    %1377 = vmatpush1.bf16.msra.mxu0 0
    %1378 = vmatprep.subr.bf16.mxu0 0
    %1379 = vmatpush1.bf16.msra.mxu0 0
    %1380 = vmatprep.subr.bf16.mxu0 0
    %1381 = vmatpush1.bf16.msra.mxu0 0
    %1382 = vmatprep.subr.bf16.mxu0 0
    %1383 = vmatpush1.bf16.msra.mxu0 0
    %1384 = vmatprep.mubr.bf16.mxu0 0
    %1385 = vmatmul.mubr.bf16.gmra.mrb[0].mxu0 %v1286
    %v1386 = vpop.f32.mrb[0].mxu0
    %v1387 = vadd.f32 0.0, %v1386
    %v1388 = vpop.f32.mrb[0].mxu0
    %v1389 = vadd.f32 0.0, %v1388
    %v1390 = vpop.f32.mrb[0].mxu0
    %v1391 = vpop.f32.mrb[0].mxu0
    %1392 = vdwg.mxu0
    %1393 = vmatprep.subr.bf16.mxu0 %v541
    %1394 = vmatpush1.bf16.msra.mxu0 %v540
    %1395 = vmatprep.subr.bf16.mxu0 %v545
    %1396 = vmatpush1.bf16.msra.mxu0 %v544
    %1397 = vmatprep.subr.bf16.mxu0 %v549
    %1398 = vmatpush1.bf16.msra.mxu0 %v548
    %1399 = vmatprep.subr.bf16.mxu0 %v553
    %1400 = vmatpush1.bf16.msra.mxu0 %v552
    %1401 = vmatprep.subr.bf16.mxu0 %v557
    %1402 = vmatpush1.bf16.msra.mxu0 %v556
    %1403 = vmatprep.subr.bf16.mxu0 %v561
    %1404 = vmatpush1.bf16.msra.mxu0 %v560
    %1405 = vmatprep.subr.bf16.mxu0 %v565
    %1406 = vmatpush1.bf16.msra.mxu0 %v564
    %1407 = vmatprep.subr.bf16.mxu0 %v569
    %1408 = vmatpush1.bf16.msra.mxu0 %v568
    %1409 = vmatprep.subr.bf16.mxu0 0
    %1410 = vmatpush1.bf16.msra.mxu0 0
    %1411 = vmatprep.subr.bf16.mxu0 0
    %1412 = vmatpush1.bf16.msra.mxu0 0
    %1413 = vmatprep.subr.bf16.mxu0 0
    %1414 = vmatpush1.bf16.msra.mxu0 0
    %1415 = vmatprep.subr.bf16.mxu0 0
    %1416 = vmatpush1.bf16.msra.mxu0 0
    %1417 = vmatprep.subr.bf16.mxu0 0
    %1418 = vmatpush1.bf16.msra.mxu0 0
    %1419 = vmatprep.subr.bf16.mxu0 0
    %1420 = vmatpush1.bf16.msra.mxu0 0
    %1421 = vmatprep.subr.bf16.mxu0 0
    %1422 = vmatpush1.bf16.msra.mxu0 0
    %1423 = vmatprep.subr.bf16.mxu0 0
    %1424 = vmatpush1.bf16.msra.mxu0 0
    %1425 = vmatprep.mubr.bf16.mxu0 0
    %1426 = vmatmul.mubr.bf16.gmra.mrb[0].mxu0 %v1286
    %v1427 = vpop.f32.mrb[0].mxu0
    %v1428 = vadd.f32 0.0, %v1427
    %v1429 = vpop.f32.mrb[0].mxu0
    %v1430 = vadd.f32 0.0, %v1429
    %v1431 = vpop.f32.mrb[0].mxu0
    %v1432 = vpop.f32.mrb[0].mxu0
    %1433 = vdwg.mxu0
    %v1438 = vrot.slane %v1387, 5
    %v1439 = vrot.slane %v1389, 5
    %v1440 = vrot.slane %v1428, 5
    %v1441 = vrot.slane %v1430, 5
    %v1442 = vrot.slane %v1387, 6
    %v1443 = vrot.slane %v1389, 6
    %v1444 = vrot.slane %v1428, 6
    %v1445 = vrot.slane %v1430, 6
    %v1454 = vadd.f32 %v1344, %v1438
    %v1455 = vadd.f32 %v1345, %v1439
    %v1456 = vadd.f32 %v1346, %v1440
    %v1457 = vadd.f32 %v1347, %v1441
    %v1458 = vadd.f32 %v1348, %v1442
    %v1459 = vadd.f32 %v1349, %v1443
    %v1460 = vadd.f32 %v1350, %v1444
    %v1461 = vadd.f32 %v1351, %v1445
    %v1462 = vxor.u32 %v1454, 2147483648
    %v1463 = vxor.u32 %v1458, 2147483648
    %v1464 = vmul.f32 %v1462, 1.442695
    %v1465 = vpow.pop %v1464
    %v1466 = vmul.f32 %v1463, 1.442695
    %v1467 = vpow.pop %v1466
    %v1468 = vadd.f32 %v1465, 1.0
    %v1469 = vadd.f32 %v1467, 1.0
    %v1470 = vrcp.pop %v1468
    %v1471 = vmul.f32 1.0, %v1470
    %v1472 = vrcp.pop %v1469
    %v1473 = vmul.f32 1.0, %v1472
    %v1474 = vxor.u32 %v1455, 2147483648
    %v1475 = vxor.u32 %v1459, 2147483648
    %v1476 = vmul.f32 %v1474, 1.442695
    %v1477 = vpow.pop %v1476
    %v1478 = vmul.f32 %v1475, 1.442695
    %v1479 = vpow.pop %v1478
    %v1480 = vadd.f32 %v1477, 1.0
    %v1481 = vadd.f32 %v1479, 1.0
    %v1482 = vrcp.pop %v1480
    %v1483 = vmul.f32 1.0, %v1482
    %v1484 = vrcp.pop %v1481
    %v1485 = vmul.f32 1.0, %v1484
    %v1486 = vtanh.pop %v1456
    %v1487 = vtanh.pop %v1460
    %v1488 = vxor.u32 %v1457, 2147483648
    %v1489 = vxor.u32 %v1461, 2147483648
    %v1490 = vmul.f32 %v1488, 1.442695
    %v1491 = vpow.pop %v1490
    %v1492 = vmul.f32 %v1489, 1.442695
    %v1493 = vpow.pop %v1492
    %v1494 = vadd.f32 %v1491, 1.0
    %v1495 = vadd.f32 %v1493, 1.0
    %v1496 = vrcp.pop %v1494
    %v1497 = vmul.f32 1.0, %v1496
    %v1498 = vrcp.pop %v1495
    %v1499 = vmul.f32 1.0, %v1498
    %v1502 = vrot.slane %v1271, 7
    %v1503 = vrot.slane %v1272, 7
    %v1506 = vmul.f32 %v1483, %v1502
    %v1507 = vmul.f32 %v1485, %v1503
    %v1508 = vmul.f32 %v1471, %v1486
    %v1509 = vmul.f32 %v1473, %v1487
    %v1510 = vadd.f32 %v1506, %v1508
    %v1511 = vadd.f32 %v1507, %v1509
    %v1512 = vtanh.pop %v1510
    %v1513 = vtanh.pop %v1511
    %v1514 = vmul.f32 %v1497, %v1512
    %v1515 = vmul.f32 %v1499, %v1513
    %v1516 = vpack.c.bf16 %v1514, %v1514
    %v1517 = vpack.c.bf16 %v1515, %v1515
    %v1520 = vunpack.c.l.b16 %v1516
    %v1521 = vunpack.c.l.b16 %v1517
    %v1522 = vrot.slane %v1520, 3
    %v1523 = vrot.slane %v1521, 2
    %v1524 = vsel %vm763, %v1523, %v1522
    %v1525 = vpack.c.b16 %v1524, %v1524
    %1527 = vmatprep.subr.bf16.mxu0 0
    %1528 = vmatpush1.bf16.msra.mxu0 %v799
    %1529 = vmatprep.subr.bf16.mxu0 0
    %1530 = vmatpush1.bf16.msra.mxu0 %v800
    %1531 = vmatprep.subr.bf16.mxu0 0
    %1532 = vmatpush1.bf16.msra.mxu0 %v801
    %1533 = vmatprep.subr.bf16.mxu0 0
    %1534 = vmatpush1.bf16.msra.mxu0 %v802
    %1535 = vmatprep.subr.bf16.mxu0 0
    %1536 = vmatpush1.bf16.msra.mxu0 %v803
    %1537 = vmatprep.subr.bf16.mxu0 0
    %1538 = vmatpush1.bf16.msra.mxu0 %v804
    %1539 = vmatprep.subr.bf16.mxu0 0
    %1540 = vmatpush1.bf16.msra.mxu0 %v805
    %1541 = vmatprep.subr.bf16.mxu0 0
    %1542 = vmatpush1.bf16.msra.mxu0 %v806
    %1543 = vmatprep.subr.bf16.mxu0 0
    %1544 = vmatpush1.bf16.msra.mxu0 0
    %1545 = vmatprep.subr.bf16.mxu0 0
    %1546 = vmatpush1.bf16.msra.mxu0 0
    %1547 = vmatprep.subr.bf16.mxu0 0
    %1548 = vmatpush1.bf16.msra.mxu0 0
    %1549 = vmatprep.subr.bf16.mxu0 0
    %1550 = vmatpush1.bf16.msra.mxu0 0
    %1551 = vmatprep.subr.bf16.mxu0 0
    %1552 = vmatpush1.bf16.msra.mxu0 0
    %1553 = vmatprep.subr.bf16.mxu0 0
    %1554 = vmatpush1.bf16.msra.mxu0 0
    %1555 = vmatprep.subr.bf16.mxu0 0
    %1556 = vmatpush1.bf16.msra.mxu0 0
    %1557 = vmatprep.subr.bf16.mxu0 0
    %1558 = vmatpush1.bf16.msra.mxu0 0
    %1559 = vmatprep.mubr.bf16.mxu0 0
    %1560 = vmatmul.mubr.bf16.gmra.mrb[0].mxu0 %v1525
    %v1561 = vpop.f32.mrb[0].mxu0
    %v1562 = vadd.f32 0.0, %v1561
    %v1563 = vpop.f32.mrb[0].mxu0
    %v1564 = vpop.f32.mrb[0].mxu0
    %v1565 = vpop.f32.mrb[0].mxu0
    %1566 = vdwg.mxu0
    %1567 = vmatprep.subr.bf16.mxu0 %v539
    %1568 = vmatpush1.bf16.msra.mxu0 %v538
    %1569 = vmatprep.subr.bf16.mxu0 %v543
    %1570 = vmatpush1.bf16.msra.mxu0 %v542
    %1571 = vmatprep.subr.bf16.mxu0 %v547
    %1572 = vmatpush1.bf16.msra.mxu0 %v546
    %1573 = vmatprep.subr.bf16.mxu0 %v551
    %1574 = vmatpush1.bf16.msra.mxu0 %v550
    %1575 = vmatprep.subr.bf16.mxu0 %v555
    %1576 = vmatpush1.bf16.msra.mxu0 %v554
    %1577 = vmatprep.subr.bf16.mxu0 %v559
    %1578 = vmatpush1.bf16.msra.mxu0 %v558
    %1579 = vmatprep.subr.bf16.mxu0 %v563
    %1580 = vmatpush1.bf16.msra.mxu0 %v562
    %1581 = vmatprep.subr.bf16.mxu0 %v567
    %1582 = vmatpush1.bf16.msra.mxu0 %v566
    %1583 = vmatprep.subr.bf16.mxu0 0
    %1584 = vmatpush1.bf16.msra.mxu0 0
    %1585 = vmatprep.subr.bf16.mxu0 0
    %1586 = vmatpush1.bf16.msra.mxu0 0
    %1587 = vmatprep.subr.bf16.mxu0 0
    %1588 = vmatpush1.bf16.msra.mxu0 0
    %1589 = vmatprep.subr.bf16.mxu0 0
    %1590 = vmatpush1.bf16.msra.mxu0 0
    %1591 = vmatprep.subr.bf16.mxu0 0
    %1592 = vmatpush1.bf16.msra.mxu0 0
    %1593 = vmatprep.subr.bf16.mxu0 0
    %1594 = vmatpush1.bf16.msra.mxu0 0
    %1595 = vmatprep.subr.bf16.mxu0 0
    %1596 = vmatpush1.bf16.msra.mxu0 0
    %1597 = vmatprep.subr.bf16.mxu0 0
    %1598 = vmatpush1.bf16.msra.mxu0 0
    %1599 = vmatprep.mubr.bf16.mxu0 0
    %1600 = vmatmul.mubr.bf16.gmra.mrb[0].mxu0 %v1525
    %v1601 = vpop.f32.mrb[0].mxu0
    %v1602 = vadd.f32 0.0, %v1601
    %v1603 = vpop.f32.mrb[0].mxu0
    %v1604 = vadd.f32 0.0, %v1603
    %v1605 = vpop.f32.mrb[0].mxu0
    %v1606 = vpop.f32.mrb[0].mxu0
    %1607 = vdwg.mxu0
    %1608 = vmatprep.subr.bf16.mxu0 %v541
    %1609 = vmatpush1.bf16.msra.mxu0 %v540
    %1610 = vmatprep.subr.bf16.mxu0 %v545
    %1611 = vmatpush1.bf16.msra.mxu0 %v544
    %1612 = vmatprep.subr.bf16.mxu0 %v549
    %1613 = vmatpush1.bf16.msra.mxu0 %v548
    %1614 = vmatprep.subr.bf16.mxu0 %v553
    %1615 = vmatpush1.bf16.msra.mxu0 %v552
    %1616 = vmatprep.subr.bf16.mxu0 %v557
    %1617 = vmatpush1.bf16.msra.mxu0 %v556
    %1618 = vmatprep.subr.bf16.mxu0 %v561
    %1619 = vmatpush1.bf16.msra.mxu0 %v560
    %1620 = vmatprep.subr.bf16.mxu0 %v565
    %1621 = vmatpush1.bf16.msra.mxu0 %v564
    %1622 = vmatprep.subr.bf16.mxu0 %v569
    %1623 = vmatpush1.bf16.msra.mxu0 %v568
    %1624 = vmatprep.subr.bf16.mxu0 0
    %1625 = vmatpush1.bf16.msra.mxu0 0
    %1626 = vmatprep.subr.bf16.mxu0 0
    %1627 = vmatpush1.bf16.msra.mxu0 0
    %1628 = vmatprep.subr.bf16.mxu0 0
    %1629 = vmatpush1.bf16.msra.mxu0 0
    %1630 = vmatprep.subr.bf16.mxu0 0
    %1631 = vmatpush1.bf16.msra.mxu0 0
    %1632 = vmatprep.subr.bf16.mxu0 0
    %1633 = vmatpush1.bf16.msra.mxu0 0
    %1634 = vmatprep.subr.bf16.mxu0 0
    %1635 = vmatpush1.bf16.msra.mxu0 0
    %1636 = vmatprep.subr.bf16.mxu0 0
    %1637 = vmatpush1.bf16.msra.mxu0 0
    %1638 = vmatprep.subr.bf16.mxu0 0
    %1639 = vmatpush1.bf16.msra.mxu0 0
    %1640 = vmatprep.mubr.bf16.mxu0 0
    %1641 = vmatmul.mubr.bf16.gmra.mrb[0].mxu0 %v1525
    %v1642 = vpop.f32.mrb[0].mxu0
    %v1643 = vadd.f32 0.0, %v1642
    %v1644 = vpop.f32.mrb[0].mxu0
    %v1645 = vadd.f32 0.0, %v1644
    %v1646 = vpop.f32.mrb[0].mxu0
    %v1647 = vpop.f32.mrb[0].mxu0
    %1648 = vdwg.mxu0
    %v1653 = vrot.slane %v1602, 4
    %v1654 = vrot.slane %v1604, 4
    %v1655 = vrot.slane %v1643, 4
    %v1656 = vrot.slane %v1645, 4
    %v1657 = vrot.slane %v1602, 5
    %v1658 = vrot.slane %v1604, 5
    %v1659 = vrot.slane %v1643, 5
    %v1660 = vrot.slane %v1645, 5
    %v1669 = vadd.f32 %v434, %v1653
    %v1670 = vadd.f32 %v435, %v1654
    %v1671 = vadd.f32 %v436, %v1655
    %v1672 = vadd.f32 %v437, %v1656
    %v1673 = vadd.f32 %v438, %v1657
    %v1674 = vadd.f32 %v439, %v1658
    %v1675 = vadd.f32 %v440, %v1659
    %v1676 = vadd.f32 %v441, %v1660
    %v1677 = vxor.u32 %v1669, 2147483648
    %v1678 = vxor.u32 %v1673, 2147483648
    %v1679 = vmul.f32 %v1677, 1.442695
    %v1680 = vpow.pop %v1679
    %v1681 = vmul.f32 %v1678, 1.442695
    %v1682 = vpow.pop %v1681
    %v1683 = vadd.f32 %v1680, 1.0
    %v1684 = vadd.f32 %v1682, 1.0
    %v1685 = vrcp.pop %v1683
    %v1686 = vmul.f32 1.0, %v1685
    %v1687 = vrcp.pop %v1684
    %v1688 = vmul.f32 1.0, %v1687
    %v1689 = vxor.u32 %v1670, 2147483648
    %v1690 = vxor.u32 %v1674, 2147483648
    %v1691 = vmul.f32 %v1689, 1.442695
    %v1692 = vpow.pop %v1691
    %v1693 = vmul.f32 %v1690, 1.442695
    %v1694 = vpow.pop %v1693
    %v1695 = vadd.f32 %v1692, 1.0
    %v1696 = vadd.f32 %v1694, 1.0
    %v1697 = vrcp.pop %v1695
    %v1698 = vmul.f32 1.0, %v1697
    %v1699 = vrcp.pop %v1696
    %v1700 = vmul.f32 1.0, %v1699
    %v1701 = vtanh.pop %v1671
    %v1702 = vtanh.pop %v1675
    %v1703 = vxor.u32 %v1672, 2147483648
    %v1704 = vxor.u32 %v1676, 2147483648
    %v1705 = vmul.f32 %v1703, 1.442695
    %v1706 = vpow.pop %v1705
    %v1707 = vmul.f32 %v1704, 1.442695
    %v1708 = vpow.pop %v1707
    %v1709 = vadd.f32 %v1706, 1.0
    %v1710 = vadd.f32 %v1708, 1.0
    %v1711 = vrcp.pop %v1709
    %v1712 = vmul.f32 1.0, %v1711
    %v1713 = vrcp.pop %v1710
    %v1714 = vmul.f32 1.0, %v1713
    %v1717 = vrot.slane %v1510, 7
    %v1718 = vrot.slane %v1511, 7
    %v1721 = vmul.f32 %v1698, %v1717
    %v1722 = vmul.f32 %v1700, %v1718
    %v1723 = vmul.f32 %v1686, %v1701
    %v1724 = vmul.f32 %v1688, %v1702
    %v1725 = vadd.f32 %v1721, %v1723
    %v1726 = vadd.f32 %v1722, %v1724
    %v1727 = vtanh.pop %v1725
    %v1728 = vtanh.pop %v1726
    %v1729 = vmul.f32 %v1712, %v1727
    %v1730 = vmul.f32 %v1714, %v1728
    %v1731 = vpack.c.bf16 %v1729, %v1729
    %v1732 = vpack.c.bf16 %v1730, %v1730
    %v1735 = vunpack.c.l.b16 %v1731
    %v1736 = vunpack.c.l.b16 %v1732
    %v1737 = vrot.slane %v1735, 4
    %v1738 = vrot.slane %v1736, 3
    %v1739 = vsel %vm763, %v1738, %v1737
    %v1740 = vpack.c.b16 %v1739, %v1739
    %1742 = vmatprep.subr.bf16.mxu0 0
    %1743 = vmatpush1.bf16.msra.mxu0 %v799
    %1744 = vmatprep.subr.bf16.mxu0 0
    %1745 = vmatpush1.bf16.msra.mxu0 %v800
    %1746 = vmatprep.subr.bf16.mxu0 0
    %1747 = vmatpush1.bf16.msra.mxu0 %v801
    %1748 = vmatprep.subr.bf16.mxu0 0
    %1749 = vmatpush1.bf16.msra.mxu0 %v802
    %1750 = vmatprep.subr.bf16.mxu0 0
    %1751 = vmatpush1.bf16.msra.mxu0 %v803
    %1752 = vmatprep.subr.bf16.mxu0 0
    %1753 = vmatpush1.bf16.msra.mxu0 %v804
    %1754 = vmatprep.subr.bf16.mxu0 0
    %1755 = vmatpush1.bf16.msra.mxu0 %v805
    %1756 = vmatprep.subr.bf16.mxu0 0
    %1757 = vmatpush1.bf16.msra.mxu0 %v806
    %1758 = vmatprep.subr.bf16.mxu0 0
    %1759 = vmatpush1.bf16.msra.mxu0 0
    %1760 = vmatprep.subr.bf16.mxu0 0
    %1761 = vmatpush1.bf16.msra.mxu0 0
    %1762 = vmatprep.subr.bf16.mxu0 0
    %1763 = vmatpush1.bf16.msra.mxu0 0
    %1764 = vmatprep.subr.bf16.mxu0 0
    %1765 = vmatpush1.bf16.msra.mxu0 0
    %1766 = vmatprep.subr.bf16.mxu0 0
    %1767 = vmatpush1.bf16.msra.mxu0 0
    %1768 = vmatprep.subr.bf16.mxu0 0
    %1769 = vmatpush1.bf16.msra.mxu0 0
    %1770 = vmatprep.subr.bf16.mxu0 0
    %1771 = vmatpush1.bf16.msra.mxu0 0
    %1772 = vmatprep.subr.bf16.mxu0 0
    %1773 = vmatpush1.bf16.msra.mxu0 0
    %1774 = vmatprep.mubr.bf16.mxu0 0
    %1775 = vmatmul.mubr.bf16.gmra.mrb[0].mxu0 %v1740
    %v1776 = vpop.f32.mrb[0].mxu0
    %v1777 = vadd.f32 0.0, %v1776
    %v1778 = vpop.f32.mrb[0].mxu0
    %v1779 = vpop.f32.mrb[0].mxu0
    %v1780 = vpop.f32.mrb[0].mxu0
    %1781 = vdwg.mxu0
    %1782 = vmatprep.subr.bf16.mxu0 %v539
    %1783 = vmatpush1.bf16.msra.mxu0 %v538
    %1784 = vmatprep.subr.bf16.mxu0 %v543
    %1785 = vmatpush1.bf16.msra.mxu0 %v542
    %1786 = vmatprep.subr.bf16.mxu0 %v547
    %1787 = vmatpush1.bf16.msra.mxu0 %v546
    %1788 = vmatprep.subr.bf16.mxu0 %v551
    %1789 = vmatpush1.bf16.msra.mxu0 %v550
    %1790 = vmatprep.subr.bf16.mxu0 %v555
    %1791 = vmatpush1.bf16.msra.mxu0 %v554
    %1792 = vmatprep.subr.bf16.mxu0 %v559
    %1793 = vmatpush1.bf16.msra.mxu0 %v558
    %1794 = vmatprep.subr.bf16.mxu0 %v563
    %1795 = vmatpush1.bf16.msra.mxu0 %v562
    %1796 = vmatprep.subr.bf16.mxu0 %v567
    %1797 = vmatpush1.bf16.msra.mxu0 %v566
    %1798 = vmatprep.subr.bf16.mxu0 0
    %1799 = vmatpush1.bf16.msra.mxu0 0
    %1800 = vmatprep.subr.bf16.mxu0 0
    %1801 = vmatpush1.bf16.msra.mxu0 0
    %1802 = vmatprep.subr.bf16.mxu0 0
    %1803 = vmatpush1.bf16.msra.mxu0 0
    %1804 = vmatprep.subr.bf16.mxu0 0
    %1805 = vmatpush1.bf16.msra.mxu0 0
    %1806 = vmatprep.subr.bf16.mxu0 0
    %1807 = vmatpush1.bf16.msra.mxu0 0
    %1808 = vmatprep.subr.bf16.mxu0 0
    %1809 = vmatpush1.bf16.msra.mxu0 0
    %1810 = vmatprep.subr.bf16.mxu0 0
    %1811 = vmatpush1.bf16.msra.mxu0 0
    %1812 = vmatprep.subr.bf16.mxu0 0
    %1813 = vmatpush1.bf16.msra.mxu0 0
    %1814 = vmatprep.mubr.bf16.mxu0 0
    %1815 = vmatmul.mubr.bf16.gmra.mrb[0].mxu0 %v1740
    %v1816 = vpop.f32.mrb[0].mxu0
    %v1817 = vadd.f32 0.0, %v1816
    %v1818 = vpop.f32.mrb[0].mxu0
    %v1819 = vadd.f32 0.0, %v1818
    %v1820 = vpop.f32.mrb[0].mxu0
    %v1821 = vpop.f32.mrb[0].mxu0
    %1822 = vdwg.mxu0
    %1823 = vmatprep.subr.bf16.mxu0 %v541
    %1824 = vmatpush1.bf16.msra.mxu0 %v540
    %1825 = vmatprep.subr.bf16.mxu0 %v545
    %1826 = vmatpush1.bf16.msra.mxu0 %v544
    %1827 = vmatprep.subr.bf16.mxu0 %v549
    %1828 = vmatpush1.bf16.msra.mxu0 %v548
    %1829 = vmatprep.subr.bf16.mxu0 %v553
    %1830 = vmatpush1.bf16.msra.mxu0 %v552
    %1831 = vmatprep.subr.bf16.mxu0 %v557
    %1832 = vmatpush1.bf16.msra.mxu0 %v556
    %1833 = vmatprep.subr.bf16.mxu0 %v561
    %1834 = vmatpush1.bf16.msra.mxu0 %v560
    %1835 = vmatprep.subr.bf16.mxu0 %v565
    %1836 = vmatpush1.bf16.msra.mxu0 %v564
    %1837 = vmatprep.subr.bf16.mxu0 %v569
    %1838 = vmatpush1.bf16.msra.mxu0 %v568
    %1839 = vmatprep.subr.bf16.mxu0 0
    %1840 = vmatpush1.bf16.msra.mxu0 0
    %1841 = vmatprep.subr.bf16.mxu0 0
    %1842 = vmatpush1.bf16.msra.mxu0 0
    %1843 = vmatprep.subr.bf16.mxu0 0
    %1844 = vmatpush1.bf16.msra.mxu0 0
    %1845 = vmatprep.subr.bf16.mxu0 0
    %1846 = vmatpush1.bf16.msra.mxu0 0
    %1847 = vmatprep.subr.bf16.mxu0 0
    %1848 = vmatpush1.bf16.msra.mxu0 0
    %1849 = vmatprep.subr.bf16.mxu0 0
    %1850 = vmatpush1.bf16.msra.mxu0 0
    %1851 = vmatprep.subr.bf16.mxu0 0
    %1852 = vmatpush1.bf16.msra.mxu0 0
    %1853 = vmatprep.subr.bf16.mxu0 0
    %1854 = vmatpush1.bf16.msra.mxu0 0
    %1855 = vmatprep.mubr.bf16.mxu0 0
    %1856 = vmatmul.mubr.bf16.gmra.mrb[0].mxu0 %v1740
    %v1857 = vpop.f32.mrb[0].mxu0
    %v1858 = vadd.f32 0.0, %v1857
    %v1859 = vpop.f32.mrb[0].mxu0
    %v1860 = vadd.f32 0.0, %v1859
    %v1861 = vpop.f32.mrb[0].mxu0
    %v1862 = vpop.f32.mrb[0].mxu0
    %1863 = vdwg.mxu0
    %v1868 = vrot.slane %v1817, 3
    %v1869 = vrot.slane %v1819, 3
    %v1870 = vrot.slane %v1858, 3
    %v1871 = vrot.slane %v1860, 3
    %v1872 = vrot.slane %v1817, 4
    %v1873 = vrot.slane %v1819, 4
    %v1874 = vrot.slane %v1858, 4
    %v1875 = vrot.slane %v1860, 4
    %v1884 = vadd.f32 %v871, %v1868
    %v1885 = vadd.f32 %v872, %v1869
    %v1886 = vadd.f32 %v873, %v1870
    %v1887 = vadd.f32 %v874, %v1871
    %v1888 = vadd.f32 %v875, %v1872
    %v1889 = vadd.f32 %v876, %v1873
    %v1890 = vadd.f32 %v877, %v1874
    %v1891 = vadd.f32 %v878, %v1875
    %v1892 = vxor.u32 %v1884, 2147483648
    %v1893 = vxor.u32 %v1888, 2147483648
    %v1894 = vmul.f32 %v1892, 1.442695
    %v1895 = vpow.pop %v1894
    %v1896 = vmul.f32 %v1893, 1.442695
    %v1897 = vpow.pop %v1896
    %v1898 = vadd.f32 %v1895, 1.0
    %v1899 = vadd.f32 %v1897, 1.0
    %v1900 = vrcp.pop %v1898
    %v1901 = vmul.f32 1.0, %v1900
    %v1902 = vrcp.pop %v1899
    %v1903 = vmul.f32 1.0, %v1902
    %v1904 = vxor.u32 %v1885, 2147483648
    %v1905 = vxor.u32 %v1889, 2147483648
    %v1906 = vmul.f32 %v1904, 1.442695
    %v1907 = vpow.pop %v1906
    %v1908 = vmul.f32 %v1905, 1.442695
    %v1909 = vpow.pop %v1908
    %v1910 = vadd.f32 %v1907, 1.0
    %v1911 = vadd.f32 %v1909, 1.0
    %v1912 = vrcp.pop %v1910
    %v1913 = vmul.f32 1.0, %v1912
    %v1914 = vrcp.pop %v1911
    %v1915 = vmul.f32 1.0, %v1914
    %v1916 = vtanh.pop %v1886
    %v1917 = vtanh.pop %v1890
    %v1918 = vxor.u32 %v1887, 2147483648
    %v1919 = vxor.u32 %v1891, 2147483648
    %v1920 = vmul.f32 %v1918, 1.442695
    %v1921 = vpow.pop %v1920
    %v1922 = vmul.f32 %v1919, 1.442695
    %v1923 = vpow.pop %v1922
    %v1924 = vadd.f32 %v1921, 1.0
    %v1925 = vadd.f32 %v1923, 1.0
    %v1926 = vrcp.pop %v1924
    %v1927 = vmul.f32 1.0, %v1926
    %v1928 = vrcp.pop %v1925
    %v1929 = vmul.f32 1.0, %v1928
    %v1932 = vrot.slane %v1725, 7
    %v1933 = vrot.slane %v1726, 7
    %v1936 = vmul.f32 %v1913, %v1932
    %v1937 = vmul.f32 %v1915, %v1933
    %v1938 = vmul.f32 %v1901, %v1916
    %v1939 = vmul.f32 %v1903, %v1917
    %v1940 = vadd.f32 %v1936, %v1938
    %v1941 = vadd.f32 %v1937, %v1939
    %v1942 = vtanh.pop %v1940
    %v1943 = vtanh.pop %v1941
    %v1944 = vmul.f32 %v1927, %v1942
    %v1945 = vmul.f32 %v1929, %v1943
    %v1946 = vpack.c.bf16 %v1944, %v1944
    %v1947 = vpack.c.bf16 %v1945, %v1945
    %v1950 = vunpack.c.l.b16 %v1946
    %v1951 = vunpack.c.l.b16 %v1947
    %v1952 = vrot.slane %v1950, 5
    %v1953 = vrot.slane %v1951, 4
    %v1954 = vsel %vm763, %v1953, %v1952
    %v1955 = vpack.c.b16 %v1954, %v1954
    %1957 = vmatprep.subr.bf16.mxu0 0
    %1958 = vmatpush1.bf16.msra.mxu0 %v799
    %1959 = vmatprep.subr.bf16.mxu0 0
    %1960 = vmatpush1.bf16.msra.mxu0 %v800
    %1961 = vmatprep.subr.bf16.mxu0 0
    %1962 = vmatpush1.bf16.msra.mxu0 %v801
    %1963 = vmatprep.subr.bf16.mxu0 0
    %1964 = vmatpush1.bf16.msra.mxu0 %v802
    %1965 = vmatprep.subr.bf16.mxu0 0
    %1966 = vmatpush1.bf16.msra.mxu0 %v803
    %1967 = vmatprep.subr.bf16.mxu0 0
    %1968 = vmatpush1.bf16.msra.mxu0 %v804
    %1969 = vmatprep.subr.bf16.mxu0 0
    %1970 = vmatpush1.bf16.msra.mxu0 %v805
    %1971 = vmatprep.subr.bf16.mxu0 0
    %1972 = vmatpush1.bf16.msra.mxu0 %v806
    %1973 = vmatprep.subr.bf16.mxu0 0
    %1974 = vmatpush1.bf16.msra.mxu0 0
    %1975 = vmatprep.subr.bf16.mxu0 0
    %1976 = vmatpush1.bf16.msra.mxu0 0
    %1977 = vmatprep.subr.bf16.mxu0 0
    %1978 = vmatpush1.bf16.msra.mxu0 0
    %1979 = vmatprep.subr.bf16.mxu0 0
    %1980 = vmatpush1.bf16.msra.mxu0 0
    %1981 = vmatprep.subr.bf16.mxu0 0
    %1982 = vmatpush1.bf16.msra.mxu0 0
    %1983 = vmatprep.subr.bf16.mxu0 0
    %1984 = vmatpush1.bf16.msra.mxu0 0
    %1985 = vmatprep.subr.bf16.mxu0 0
    %1986 = vmatpush1.bf16.msra.mxu0 0
    %1987 = vmatprep.subr.bf16.mxu0 0
    %1988 = vmatpush1.bf16.msra.mxu0 0
    %1989 = vmatprep.mubr.bf16.mxu0 0
    %1990 = vmatmul.mubr.bf16.gmra.mrb[0].mxu0 %v1955
    %v1991 = vpop.f32.mrb[0].mxu0
    %v1992 = vadd.f32 0.0, %v1991
    %v1993 = vpop.f32.mrb[0].mxu0
    %v1994 = vpop.f32.mrb[0].mxu0
    %v1995 = vpop.f32.mrb[0].mxu0
    %1996 = vdwg.mxu0
    %1997 = vmatprep.subr.bf16.mxu0 %v539
    %1998 = vmatpush1.bf16.msra.mxu0 %v538
    %1999 = vmatprep.subr.bf16.mxu0 %v543
    %2000 = vmatpush1.bf16.msra.mxu0 %v542
    %2001 = vmatprep.subr.bf16.mxu0 %v547
    %2002 = vmatpush1.bf16.msra.mxu0 %v546
    %2003 = vmatprep.subr.bf16.mxu0 %v551
    %2004 = vmatpush1.bf16.msra.mxu0 %v550
    %2005 = vmatprep.subr.bf16.mxu0 %v555
    %2006 = vmatpush1.bf16.msra.mxu0 %v554
    %2007 = vmatprep.subr.bf16.mxu0 %v559
    %2008 = vmatpush1.bf16.msra.mxu0 %v558
    %2009 = vmatprep.subr.bf16.mxu0 %v563
    %2010 = vmatpush1.bf16.msra.mxu0 %v562
    %2011 = vmatprep.subr.bf16.mxu0 %v567
    %2012 = vmatpush1.bf16.msra.mxu0 %v566
    %2013 = vmatprep.subr.bf16.mxu0 0
    %2014 = vmatpush1.bf16.msra.mxu0 0
    %2015 = vmatprep.subr.bf16.mxu0 0
    %2016 = vmatpush1.bf16.msra.mxu0 0
    %2017 = vmatprep.subr.bf16.mxu0 0
    %2018 = vmatpush1.bf16.msra.mxu0 0
    %2019 = vmatprep.subr.bf16.mxu0 0
    %2020 = vmatpush1.bf16.msra.mxu0 0
    %2021 = vmatprep.subr.bf16.mxu0 0
    %2022 = vmatpush1.bf16.msra.mxu0 0
    %2023 = vmatprep.subr.bf16.mxu0 0
    %2024 = vmatpush1.bf16.msra.mxu0 0
    %2025 = vmatprep.subr.bf16.mxu0 0
    %2026 = vmatpush1.bf16.msra.mxu0 0
    %2027 = vmatprep.subr.bf16.mxu0 0
    %2028 = vmatpush1.bf16.msra.mxu0 0
    %2029 = vmatprep.mubr.bf16.mxu0 0
    %2030 = vmatmul.mubr.bf16.gmra.mrb[0].mxu0 %v1955
    %v2031 = vpop.f32.mrb[0].mxu0
    %v2032 = vadd.f32 0.0, %v2031
    %v2033 = vpop.f32.mrb[0].mxu0
    %v2034 = vadd.f32 0.0, %v2033
    %v2035 = vpop.f32.mrb[0].mxu0
    %v2036 = vpop.f32.mrb[0].mxu0
    %2037 = vdwg.mxu0
    %2038 = vmatprep.subr.bf16.mxu0 %v541
    %2039 = vmatpush1.bf16.msra.mxu0 %v540
    %2040 = vmatprep.subr.bf16.mxu0 %v545
    %2041 = vmatpush1.bf16.msra.mxu0 %v544
    %2042 = vmatprep.subr.bf16.mxu0 %v549
    %2043 = vmatpush1.bf16.msra.mxu0 %v548
    %2044 = vmatprep.subr.bf16.mxu0 %v553
    %2045 = vmatpush1.bf16.msra.mxu0 %v552
    %2046 = vmatprep.subr.bf16.mxu0 %v557
    %2047 = vmatpush1.bf16.msra.mxu0 %v556
    %2048 = vmatprep.subr.bf16.mxu0 %v561
    %2049 = vmatpush1.bf16.msra.mxu0 %v560
    %2050 = vmatprep.subr.bf16.mxu0 %v565
    %2051 = vmatpush1.bf16.msra.mxu0 %v564
    %2052 = vmatprep.subr.bf16.mxu0 %v569
    %2053 = vmatpush1.bf16.msra.mxu0 %v568
    %2054 = vmatprep.subr.bf16.mxu0 0
    %2055 = vmatpush1.bf16.msra.mxu0 0
    %2056 = vmatprep.subr.bf16.mxu0 0
    %2057 = vmatpush1.bf16.msra.mxu0 0
    %2058 = vmatprep.subr.bf16.mxu0 0
    %2059 = vmatpush1.bf16.msra.mxu0 0
    %2060 = vmatprep.subr.bf16.mxu0 0
    %2061 = vmatpush1.bf16.msra.mxu0 0
    %2062 = vmatprep.subr.bf16.mxu0 0
    %2063 = vmatpush1.bf16.msra.mxu0 0
    %2064 = vmatprep.subr.bf16.mxu0 0
    %2065 = vmatpush1.bf16.msra.mxu0 0
    %2066 = vmatprep.subr.bf16.mxu0 0
    %2067 = vmatpush1.bf16.msra.mxu0 0
    %2068 = vmatprep.subr.bf16.mxu0 0
    %2069 = vmatpush1.bf16.msra.mxu0 0
    %2070 = vmatprep.mubr.bf16.mxu0 0
    %2071 = vmatmul.mubr.bf16.gmra.mrb[0].mxu0 %v1955
    %v2072 = vpop.f32.mrb[0].mxu0
    %v2073 = vadd.f32 0.0, %v2072
    %v2074 = vpop.f32.mrb[0].mxu0
    %v2075 = vadd.f32 0.0, %v2074
    %v2076 = vpop.f32.mrb[0].mxu0
    %v2077 = vpop.f32.mrb[0].mxu0
    %2078 = vdwg.mxu0
    %v2083 = vrot.slane %v2032, 2
    %v2084 = vrot.slane %v2034, 2
    %v2085 = vrot.slane %v2073, 2
    %v2086 = vrot.slane %v2075, 2
    %v2087 = vrot.slane %v2032, 3
    %v2088 = vrot.slane %v2034, 3
    %v2089 = vrot.slane %v2073, 3
    %v2090 = vrot.slane %v2075, 3
    %v2099 = vadd.f32 %v1105, %v2083
    %v2100 = vadd.f32 %v1106, %v2084
    %v2101 = vadd.f32 %v1107, %v2085
    %v2102 = vadd.f32 %v1108, %v2086
    %v2103 = vadd.f32 %v1109, %v2087
    %v2104 = vadd.f32 %v1110, %v2088
    %v2105 = vadd.f32 %v1111, %v2089
    %v2106 = vadd.f32 %v1112, %v2090
    %v2107 = vxor.u32 %v2099, 2147483648
    %v2108 = vxor.u32 %v2103, 2147483648
    %v2109 = vmul.f32 %v2107, 1.442695
    %v2110 = vpow.pop %v2109
    %v2111 = vmul.f32 %v2108, 1.442695
    %v2112 = vpow.pop %v2111
    %v2113 = vadd.f32 %v2110, 1.0
    %v2114 = vadd.f32 %v2112, 1.0
    %v2115 = vrcp.pop %v2113
    %v2116 = vmul.f32 1.0, %v2115
    %v2117 = vrcp.pop %v2114
    %v2118 = vmul.f32 1.0, %v2117
    %v2119 = vxor.u32 %v2100, 2147483648
    %v2120 = vxor.u32 %v2104, 2147483648
    %v2121 = vmul.f32 %v2119, 1.442695
    %v2122 = vpow.pop %v2121
    %v2123 = vmul.f32 %v2120, 1.442695
    %v2124 = vpow.pop %v2123
    %v2125 = vadd.f32 %v2122, 1.0
    %v2126 = vadd.f32 %v2124, 1.0
    %v2127 = vrcp.pop %v2125
    %v2128 = vmul.f32 1.0, %v2127
    %v2129 = vrcp.pop %v2126
    %v2130 = vmul.f32 1.0, %v2129
    %v2131 = vtanh.pop %v2101
    %v2132 = vtanh.pop %v2105
    %v2133 = vxor.u32 %v2102, 2147483648
    %v2134 = vxor.u32 %v2106, 2147483648
    %v2135 = vmul.f32 %v2133, 1.442695
    %v2136 = vpow.pop %v2135
    %v2137 = vmul.f32 %v2134, 1.442695
    %v2138 = vpow.pop %v2137
    %v2139 = vadd.f32 %v2136, 1.0
    %v2140 = vadd.f32 %v2138, 1.0
    %v2141 = vrcp.pop %v2139
    %v2142 = vmul.f32 1.0, %v2141
    %v2143 = vrcp.pop %v2140
    %v2144 = vmul.f32 1.0, %v2143
    %v2147 = vrot.slane %v1940, 7
    %v2148 = vrot.slane %v1941, 7
    %v2151 = vmul.f32 %v2128, %v2147
    %v2152 = vmul.f32 %v2130, %v2148
    %v2153 = vmul.f32 %v2116, %v2131
    %v2154 = vmul.f32 %v2118, %v2132
    %v2155 = vadd.f32 %v2151, %v2153
    %v2156 = vadd.f32 %v2152, %v2154
    %v2157 = vtanh.pop %v2155
    %v2158 = vtanh.pop %v2156
    %v2159 = vmul.f32 %v2142, %v2157
    %v2160 = vmul.f32 %v2144, %v2158
    %v2161 = vpack.c.bf16 %v2159, %v2159
    %v2162 = vpack.c.bf16 %v2160, %v2160
    %v2165 = vunpack.c.l.b16 %v2161
    %v2166 = vunpack.c.l.b16 %v2162
    %v2167 = vrot.slane %v2165, 6
    %v2168 = vrot.slane %v2166, 5
    %v2169 = vsel %vm763, %v2168, %v2167
    %v2170 = vpack.c.b16 %v2169, %v2169
    %2172 = vmatprep.subr.bf16.mxu0 0
    %2173 = vmatpush1.bf16.msra.mxu0 %v799
    %2174 = vmatprep.subr.bf16.mxu0 0
    %2175 = vmatpush1.bf16.msra.mxu0 %v800
    %2176 = vmatprep.subr.bf16.mxu0 0
    %2177 = vmatpush1.bf16.msra.mxu0 %v801
    %2178 = vmatprep.subr.bf16.mxu0 0
    %2179 = vmatpush1.bf16.msra.mxu0 %v802
    %2180 = vmatprep.subr.bf16.mxu0 0
    %2181 = vmatpush1.bf16.msra.mxu0 %v803
    %2182 = vmatprep.subr.bf16.mxu0 0
    %2183 = vmatpush1.bf16.msra.mxu0 %v804
    %2184 = vmatprep.subr.bf16.mxu0 0
    %2185 = vmatpush1.bf16.msra.mxu0 %v805
    %2186 = vmatprep.subr.bf16.mxu0 0
    %2187 = vmatpush1.bf16.msra.mxu0 %v806
    %2188 = vmatprep.subr.bf16.mxu0 0
    %2189 = vmatpush1.bf16.msra.mxu0 0
    %2190 = vmatprep.subr.bf16.mxu0 0
    %2191 = vmatpush1.bf16.msra.mxu0 0
    %2192 = vmatprep.subr.bf16.mxu0 0
    %2193 = vmatpush1.bf16.msra.mxu0 0
    %2194 = vmatprep.subr.bf16.mxu0 0
    %2195 = vmatpush1.bf16.msra.mxu0 0
    %2196 = vmatprep.subr.bf16.mxu0 0
    %2197 = vmatpush1.bf16.msra.mxu0 0
    %2198 = vmatprep.subr.bf16.mxu0 0
    %2199 = vmatpush1.bf16.msra.mxu0 0
    %2200 = vmatprep.subr.bf16.mxu0 0
    %2201 = vmatpush1.bf16.msra.mxu0 0
    %2202 = vmatprep.subr.bf16.mxu0 0
    %2203 = vmatpush1.bf16.msra.mxu0 0
    %2204 = vmatprep.mubr.bf16.mxu0 0
    %2205 = vmatmul.mubr.bf16.gmra.mrb[0].mxu0 %v2170
    %v2206 = vpop.f32.mrb[0].mxu0
    %v2207 = vadd.f32 0.0, %v2206
    %v2208 = vpop.f32.mrb[0].mxu0
    %v2209 = vpop.f32.mrb[0].mxu0
    %v2210 = vpop.f32.mrb[0].mxu0
    %2211 = vdwg.mxu0
    %2212 = vmatprep.subr.bf16.mxu0 %v539
    %2213 = vmatpush1.bf16.msra.mxu0 %v538
    %2214 = vmatprep.subr.bf16.mxu0 %v543
    %2215 = vmatpush1.bf16.msra.mxu0 %v542
    %2216 = vmatprep.subr.bf16.mxu0 %v547
    %2217 = vmatpush1.bf16.msra.mxu0 %v546
    %2218 = vmatprep.subr.bf16.mxu0 %v551
    %2219 = vmatpush1.bf16.msra.mxu0 %v550
    %2220 = vmatprep.subr.bf16.mxu0 %v555
    %2221 = vmatpush1.bf16.msra.mxu0 %v554
    %2222 = vmatprep.subr.bf16.mxu0 %v559
    %2223 = vmatpush1.bf16.msra.mxu0 %v558
    %2224 = vmatprep.subr.bf16.mxu0 %v563
    %2225 = vmatpush1.bf16.msra.mxu0 %v562
    %2226 = vmatprep.subr.bf16.mxu0 %v567
    %2227 = vmatpush1.bf16.msra.mxu0 %v566
    %2228 = vmatprep.subr.bf16.mxu0 0
    %2229 = vmatpush1.bf16.msra.mxu0 0
    %2230 = vmatprep.subr.bf16.mxu0 0
    %2231 = vmatpush1.bf16.msra.mxu0 0
    %2232 = vmatprep.subr.bf16.mxu0 0
    %2233 = vmatpush1.bf16.msra.mxu0 0
    %2234 = vmatprep.subr.bf16.mxu0 0
    %2235 = vmatpush1.bf16.msra.mxu0 0
    %2236 = vmatprep.subr.bf16.mxu0 0
    %2237 = vmatpush1.bf16.msra.mxu0 0
    %2238 = vmatprep.subr.bf16.mxu0 0
    %2239 = vmatpush1.bf16.msra.mxu0 0
    %2240 = vmatprep.subr.bf16.mxu0 0
    %2241 = vmatpush1.bf16.msra.mxu0 0
    %2242 = vmatprep.subr.bf16.mxu0 0
    %2243 = vmatpush1.bf16.msra.mxu0 0
    %2244 = vmatprep.mubr.bf16.mxu0 0
    %2245 = vmatmul.mubr.bf16.gmra.mrb[0].mxu0 %v2170
    %v2246 = vpop.f32.mrb[0].mxu0
    %v2247 = vadd.f32 0.0, %v2246
    %v2248 = vpop.f32.mrb[0].mxu0
    %v2249 = vadd.f32 0.0, %v2248
    %v2250 = vpop.f32.mrb[0].mxu0
    %v2251 = vpop.f32.mrb[0].mxu0
    %2252 = vdwg.mxu0
    %2253 = vmatprep.subr.bf16.mxu0 %v541
    %2254 = vmatpush1.bf16.msra.mxu0 %v540
    %2255 = vmatprep.subr.bf16.mxu0 %v545
    %2256 = vmatpush1.bf16.msra.mxu0 %v544
    %2257 = vmatprep.subr.bf16.mxu0 %v549
    %2258 = vmatpush1.bf16.msra.mxu0 %v548
    %2259 = vmatprep.subr.bf16.mxu0 %v553
    %2260 = vmatpush1.bf16.msra.mxu0 %v552
    %2261 = vmatprep.subr.bf16.mxu0 %v557
    %2262 = vmatpush1.bf16.msra.mxu0 %v556
    %2263 = vmatprep.subr.bf16.mxu0 %v561
    %2264 = vmatpush1.bf16.msra.mxu0 %v560
    %2265 = vmatprep.subr.bf16.mxu0 %v565
    %2266 = vmatpush1.bf16.msra.mxu0 %v564
    %2267 = vmatprep.subr.bf16.mxu0 %v569
    %2268 = vmatpush1.bf16.msra.mxu0 %v568
    %2269 = vmatprep.subr.bf16.mxu0 0
    %2270 = vmatpush1.bf16.msra.mxu0 0
    %2271 = vmatprep.subr.bf16.mxu0 0
    %2272 = vmatpush1.bf16.msra.mxu0 0
    %2273 = vmatprep.subr.bf16.mxu0 0
    %2274 = vmatpush1.bf16.msra.mxu0 0
    %2275 = vmatprep.subr.bf16.mxu0 0
    %2276 = vmatpush1.bf16.msra.mxu0 0
    %2277 = vmatprep.subr.bf16.mxu0 0
    %2278 = vmatpush1.bf16.msra.mxu0 0
    %2279 = vmatprep.subr.bf16.mxu0 0
    %2280 = vmatpush1.bf16.msra.mxu0 0
    %2281 = vmatprep.subr.bf16.mxu0 0
    %2282 = vmatpush1.bf16.msra.mxu0 0
    %2283 = vmatprep.subr.bf16.mxu0 0
    %2284 = vmatpush1.bf16.msra.mxu0 0
    %2285 = vmatprep.mubr.bf16.mxu0 0
    %2286 = vmatmul.mubr.bf16.gmra.mrb[0].mxu0 %v2170
    %v2287 = vpop.f32.mrb[0].mxu0
    %v2288 = vadd.f32 0.0, %v2287
    %v2289 = vpop.f32.mrb[0].mxu0
    %v2290 = vadd.f32 0.0, %v2289
    %v2291 = vpop.f32.mrb[0].mxu0
    %v2292 = vpop.f32.mrb[0].mxu0
    %2293 = vdwg.mxu0
    %v2298 = vrot.slane %v2247, 1
    %v2299 = vrot.slane %v2249, 1
    %v2300 = vrot.slane %v2288, 1
    %v2301 = vrot.slane %v2290, 1
    %v2302 = vrot.slane %v2247, 2
    %v2303 = vrot.slane %v2249, 2
    %v2304 = vrot.slane %v2288, 2
    %v2305 = vrot.slane %v2290, 2
    %v2314 = vadd.f32 %v1344, %v2298
    %v2315 = vadd.f32 %v1345, %v2299
    %v2316 = vadd.f32 %v1346, %v2300
    %v2317 = vadd.f32 %v1347, %v2301
    %v2318 = vadd.f32 %v1348, %v2302
    %v2319 = vadd.f32 %v1349, %v2303
    %v2320 = vadd.f32 %v1350, %v2304
    %v2321 = vadd.f32 %v1351, %v2305
    %v2322 = vxor.u32 %v2314, 2147483648
    %v2323 = vxor.u32 %v2318, 2147483648
    %v2324 = vmul.f32 %v2322, 1.442695
    %v2325 = vpow.pop %v2324
    %v2326 = vmul.f32 %v2323, 1.442695
    %v2327 = vpow.pop %v2326
    %v2328 = vadd.f32 %v2325, 1.0
    %v2329 = vadd.f32 %v2327, 1.0
    %v2330 = vrcp.pop %v2328
    %v2331 = vmul.f32 1.0, %v2330
    %v2332 = vrcp.pop %v2329
    %v2333 = vmul.f32 1.0, %v2332
    %v2334 = vxor.u32 %v2315, 2147483648
    %v2335 = vxor.u32 %v2319, 2147483648
    %v2336 = vmul.f32 %v2334, 1.442695
    %v2337 = vpow.pop %v2336
    %v2338 = vmul.f32 %v2335, 1.442695
    %v2339 = vpow.pop %v2338
    %v2340 = vadd.f32 %v2337, 1.0
    %v2341 = vadd.f32 %v2339, 1.0
    %v2342 = vrcp.pop %v2340
    %v2343 = vmul.f32 1.0, %v2342
    %v2344 = vrcp.pop %v2341
    %v2345 = vmul.f32 1.0, %v2344
    %v2346 = vtanh.pop %v2316
    %v2347 = vtanh.pop %v2320
    %v2348 = vxor.u32 %v2317, 2147483648
    %v2349 = vxor.u32 %v2321, 2147483648
    %v2350 = vmul.f32 %v2348, 1.442695
    %v2351 = vpow.pop %v2350
    %v2352 = vmul.f32 %v2349, 1.442695
    %v2353 = vpow.pop %v2352
    %v2354 = vadd.f32 %v2351, 1.0
    %v2355 = vadd.f32 %v2353, 1.0
    %v2356 = vrcp.pop %v2354
    %v2357 = vmul.f32 1.0, %v2356
    %v2358 = vrcp.pop %v2355
    %v2359 = vmul.f32 1.0, %v2358
    %v2362 = vrot.slane %v2155, 7
    %v2363 = vrot.slane %v2156, 7
    %v2366 = vmul.f32 %v2343, %v2362
    %v2367 = vmul.f32 %v2345, %v2363
    %v2368 = vmul.f32 %v2331, %v2346
    %v2369 = vmul.f32 %v2333, %v2347
    %v2370 = vadd.f32 %v2366, %v2368
    %v2371 = vadd.f32 %v2367, %v2369
    %v2372 = vtanh.pop %v2370
    %v2373 = vtanh.pop %v2371
    %v2374 = vmul.f32 %v2357, %v2372
    %v2375 = vmul.f32 %v2359, %v2373
    %v2376 = vpack.c.bf16 %v2374, %v2374
    %v2377 = vpack.c.bf16 %v2375, %v2375
    %v2380 = vunpack.c.l.b16 %v2376
    %v2381 = vunpack.c.l.b16 %v2377
    %v2382 = vrot.slane %v2380, 7
    %v2383 = vrot.slane %v2381, 6
    %v2384 = vsel %vm763, %v2383, %v2382
    %v2385 = vpack.c.b16 %v2384, %v2384
    %2387 = vmatprep.subr.bf16.mxu0 0
    %2388 = vmatpush1.bf16.msra.mxu0 %v799
    %2389 = vmatprep.subr.bf16.mxu0 0
    %2390 = vmatpush1.bf16.msra.mxu0 %v800
    %2391 = vmatprep.subr.bf16.mxu0 0
    %2392 = vmatpush1.bf16.msra.mxu0 %v801
    %2393 = vmatprep.subr.bf16.mxu0 0
    %2394 = vmatpush1.bf16.msra.mxu0 %v802
    %2395 = vmatprep.subr.bf16.mxu0 0
    %2396 = vmatpush1.bf16.msra.mxu0 %v803
    %2397 = vmatprep.subr.bf16.mxu0 0
    %2398 = vmatpush1.bf16.msra.mxu0 %v804
    %2399 = vmatprep.subr.bf16.mxu0 0
    %2400 = vmatpush1.bf16.msra.mxu0 %v805
    %2401 = vmatprep.subr.bf16.mxu0 0
    %2402 = vmatpush1.bf16.msra.mxu0 %v806
    %2403 = vmatprep.subr.bf16.mxu0 0
    %2404 = vmatpush1.bf16.msra.mxu0 0
    %2405 = vmatprep.subr.bf16.mxu0 0
    %2406 = vmatpush1.bf16.msra.mxu0 0
    %2407 = vmatprep.subr.bf16.mxu0 0
    %2408 = vmatpush1.bf16.msra.mxu0 0
    %2409 = vmatprep.subr.bf16.mxu0 0
    %2410 = vmatpush1.bf16.msra.mxu0 0
    %2411 = vmatprep.subr.bf16.mxu0 0
    %2412 = vmatpush1.bf16.msra.mxu0 0
    %2413 = vmatprep.subr.bf16.mxu0 0
    %2414 = vmatpush1.bf16.msra.mxu0 0
    %2415 = vmatprep.subr.bf16.mxu0 0
    %2416 = vmatpush1.bf16.msra.mxu0 0
    %2417 = vmatprep.subr.bf16.mxu0 0
    %2418 = vmatpush1.bf16.msra.mxu0 0
    %2419 = vmatprep.mubr.bf16.mxu0 0
    %2420 = vmatmul.mubr.bf16.gmra.mrb[0].mxu0 %v2385
    %v2421 = vpop.f32.mrb[0].mxu0
    %v2422 = vadd.f32 0.0, %v2421
    %v2423 = vpop.f32.mrb[0].mxu0
    %v2424 = vpop.f32.mrb[0].mxu0
    %v2425 = vpop.f32.mrb[0].mxu0
    %2426 = vdwg.mxu0
    %2428 = vrot.lane.b32.xlu0 %v2422, 124
    %v2429 = vpop.permute.xlu0 %2428
    %v2431 = vadd.f32 %v850, %v2429
    %2433 = vrot.lane.b32.xlu0 %v2207, 124
    %v2434 = vpop.permute.xlu0 %2433
    %v2436 = vadd.f32 %v1084, %v2434
    %2438 = vrot.lane.b32.xlu0 %v1992, 124
    %v2439 = vpop.permute.xlu0 %2438
    %v2441 = vadd.f32 %v1323, %v2439
    %2443 = vrot.lane.b32.xlu0 %v1777, 124
    %v2444 = vpop.permute.xlu0 %2443
    %v2446 = vadd.f32 %v1562, %v2444
    %2448 = vrot.lane.b32.xlu0 %v1562, 124
    %v2449 = vpop.permute.xlu0 %2448
    %v2451 = vadd.f32 %v1777, %v2449
    %2453 = vrot.lane.b32.xlu0 %v1323, 124
    %v2454 = vpop.permute.xlu0 %2453
    %v2456 = vadd.f32 %v1992, %v2454
    %2458 = vrot.lane.b32.xlu0 %v1084, 124
    %v2459 = vpop.permute.xlu0 %2458
    %v2461 = vadd.f32 %v2207, %v2459
    %2463 = vrot.lane.b32.xlu0 %v850, 124
    %v2464 = vpop.permute.xlu0 %2463
    %v2466 = vadd.f32 %v2422, %v2464
    %v2467 = vmax.f32 %v2431, %v2436
    %v2468 = vmax.f32 %v2467, %v2441
    %v2469 = vmax.f32 %v2468, %v2446
    %v2470 = vmax.f32 %v2469, %v2451
    %v2471 = vmax.f32 %v2470, %v2456
    %v2472 = vmax.f32 %v2471, %v2461
    %v2473 = vmax.f32 %v2472, %v2466
    %v2474 = vsub.f32 %v2431, %v2473
    %v2475 = vmul.f32 %v2474, 1.442695
    %v2476 = vpow.pop %v2475
    %v2477 = vsub.f32 %v2436, %v2473
    %v2478 = vmul.f32 %v2477, 1.442695
    %v2479 = vpow.pop %v2478
    %v2480 = vsub.f32 %v2441, %v2473
    %v2481 = vmul.f32 %v2480, 1.442695
    %v2482 = vpow.pop %v2481
    %v2483 = vsub.f32 %v2446, %v2473
    %v2484 = vmul.f32 %v2483, 1.442695
    %v2485 = vpow.pop %v2484
    %v2486 = vsub.f32 %v2451, %v2473
    %v2487 = vmul.f32 %v2486, 1.442695
    %v2488 = vpow.pop %v2487
    %v2489 = vsub.f32 %v2456, %v2473
    %v2490 = vmul.f32 %v2489, 1.442695
    %v2491 = vpow.pop %v2490
    %v2492 = vsub.f32 %v2461, %v2473
    %v2493 = vmul.f32 %v2492, 1.442695
    %v2494 = vpow.pop %v2493
    %v2495 = vsub.f32 %v2466, %v2473
    %v2496 = vmul.f32 %v2495, 1.442695
    %v2497 = vpow.pop %v2496
    %v2498 = vadd.f32 %v2476, %v2479
    %v2499 = vadd.f32 %v2498, %v2482
    %v2500 = vadd.f32 %v2499, %v2485
    %v2501 = vadd.f32 %v2500, %v2488
    %v2502 = vadd.f32 %v2501, %v2491
    %v2503 = vadd.f32 %v2502, %v2494
    %v2504 = vadd.f32 %v2503, %v2497
    %v2505 = vrcp.pop %v2504
    %v2506 = vmul.f32 1.0, %v2505
    %v2507 = vmul.f32 %v2476, %v2506
    %v2508 = vmul.f32 %v2479, %v2506
    %v2509 = vmul.f32 %v2482, %v2506
    %v2510 = vmul.f32 %v2485, %v2506
    %v2511 = vmul.f32 %v2488, %v2506
    %v2512 = vmul.f32 %v2491, %v2506
    %v2513 = vmul.f32 %v2494, %v2506
    %v2514 = vmul.f32 %v2497, %v2506
    %v2516 = vrot.slane %v2508, 6
    %v2519 = vrot.slane %v2509, 4
    %v2522 = vrot.slane %v2510, 2
    %v2525 = vrot.slane %v2512, 6
    %v2528 = vrot.slane %v2513, 4
    %v2531 = vrot.slane %v2514, 2
    %v2533 = vsel %vm165, %v2507, %v2516
    %vm2534 = vcmask 1043456
    %v2535 = vsel %vm2534, %v2533, %v2519
    %vm2536 = vcmask 1045504
    %v2537 = vsel %vm2536, %v2535, %v2522
    %v2538 = vsel %vm165, %v2511, %v2525
    %v2539 = vsel %vm2534, %v2538, %v2528
    %v2540 = vsel %vm2536, %v2539, %v2531
    %v2541 = vrot.slane %v2513, 6
    %v2543 = vrot.slane %v2512, 4
    %v2546 = vrot.slane %v2511, 2
    %v2548 = vrot.slane %v2509, 6
    %v2550 = vrot.slane %v2508, 4
    %v2553 = vrot.slane %v2507, 2
    %v2555 = vsel %vm165, %v2514, %v2541
    %v2556 = vsel %vm2534, %v2555, %v2543
    %v2557 = vsel %vm2536, %v2556, %v2546
    %v2558 = vsel %vm165, %v2510, %v2548
    %v2559 = vsel %vm2534, %v2558, %v2550
    %v2560 = vsel %vm2536, %v2559, %v2553
    %v2561 = vld [vmem:[%s5] sm:$0xf]
    %v2562 = vld [vmem:[%s6] sm:$0xf]
    %v2564 = vsel %vm161, %v2557, 0
    %v2567 = vsel %vm161, %v2560, 0
    %v2570 = vsel %vm2534, %v2562, 0
    %2572 = vmatprep.subr.mxu0 0.0
    %2573 = vmatpush1.msra.mxu0 %v2570
    %2574 = vmatprep.subr.mxu0 0.0
    %2575 = vmatpush1.msra.mxu0 0.0
    %2576 = vmatprep.subr.mxu0 0.0
    %2577 = vmatpush1.msra.mxu0 0.0
    %2578 = vmatprep.subr.mxu0 0.0
    %2579 = vmatpush1.msra.mxu0 0.0
    %2580 = vmatprep.subr.mxu0 0.0
    %2581 = vmatpush1.msra.mxu0 0.0
    %2582 = vmatprep.subr.mxu0 0.0
    %2583 = vmatpush1.msra.mxu0 0.0
    %2584 = vmatprep.subr.mxu0 0.0
    %2585 = vmatpush1.msra.mxu0 0.0
    %2586 = vmatprep.subr.mxu0 0.0
    %2587 = vmatpush1.msra.mxu0 0.0
    %2588 = vmatprep.subr.mxu0 0.0
    %2589 = vmatpush1.msra.mxu0 0.0
    %2590 = vmatprep.subr.mxu0 0.0
    %2591 = vmatpush1.msra.mxu0 0.0
    %2592 = vmatprep.subr.mxu0 0.0
    %2593 = vmatpush1.msra.mxu0 0.0
    %2594 = vmatprep.subr.mxu0 0.0
    %2595 = vmatpush1.msra.mxu0 0.0
    %2596 = vmatprep.subr.mxu0 0.0
    %2597 = vmatpush1.msra.mxu0 0.0
    %2598 = vmatprep.subr.mxu0 0.0
    %2599 = vmatpush1.msra.mxu0 0.0
    %2600 = vmatprep.subr.mxu0 0.0
    %2601 = vmatpush1.msra.mxu0 0.0
    %2602 = vmatprep.subr.mxu0 0.0
    %2603 = vmatpush1.msra.mxu0 0.0
    %2604 = vmatprep.subr.mxu0 0.0
    %2605 = vmatpush1.msra.mxu0 0.0
    %2606 = vmatprep.subr.mxu0 0.0
    %2607 = vmatpush1.msra.mxu0 0.0
    %2608 = vmatprep.subr.mxu0 0.0
    %2609 = vmatpush1.msra.mxu0 0.0
    %2610 = vmatprep.subr.mxu0 0.0
    %2611 = vmatpush1.msra.mxu0 0.0
    %2612 = vmatprep.subr.mxu0 0.0
    %2613 = vmatpush1.msra.mxu0 0.0
    %2614 = vmatprep.subr.mxu0 0.0
    %2615 = vmatpush1.msra.mxu0 0.0
    %2616 = vmatprep.subr.mxu0 0.0
    %2617 = vmatpush1.msra.mxu0 0.0
    %2618 = vmatprep.subr.mxu0 0.0
    %2619 = vmatpush1.msra.mxu0 0.0
    %2620 = vmatprep.subr.mxu0 0.0
    %2621 = vmatpush1.msra.mxu0 0.0
    %2622 = vmatprep.subr.mxu0 0.0
    %2623 = vmatpush1.msra.mxu0 0.0
    %2624 = vmatprep.subr.mxu0 0.0
    %2625 = vmatpush1.msra.mxu0 0.0
    %2626 = vmatprep.subr.mxu0 0.0
    %2627 = vmatpush1.msra.mxu0 0.0
    %2628 = vmatprep.subr.mxu0 0.0
    %2629 = vmatpush1.msra.mxu0 0.0
    %2630 = vmatprep.subr.mxu0 0.0
    %2631 = vmatpush1.msra.mxu0 0.0
    %2632 = vmatprep.subr.mxu0 0.0
    %2633 = vmatpush1.msra.mxu0 0.0
    %2634 = vmatprep.subr.mxu0 0.0
    %2635 = vmatpush1.msra.mxu0 0.0
    %2636 = vmatprep.mubr.f32.mxu0 0.0
    %2637 = vmatmul.mubr.f32.gmra.mrb[0].mxu0 %v2564
    %v2638 = vpop.f32.mrb[0].mxu0
    %v2639 = vadd.f32 0.0, %v2638
    %v2640 = vpop.f32.mrb[0].mxu0
    %2641 = vmatprep.mubr.f32.mxu0 0.0
    %2642 = vmatmul.mubr.f32.gmra.mrb[0].mxu0 %v2567
    %v2643 = vpop.f32.mrb[0].mxu0
    %v2644 = vadd.f32 0.0, %v2643
    %v2645 = vpop.f32.mrb[0].mxu0
    %2646 = vdwg.mxu0
    %v2648 = vsel %vm161, %v2537, 0
    %v2651 = vsel %vm161, %v2540, 0
    %v2654 = vsel %vm2534, %v2561, 0
    %2656 = vmatprep.subr.mxu0 0.0
    %2657 = vmatpush1.msra.mxu0 %v2654
    %2658 = vmatprep.subr.mxu0 0.0
    %2659 = vmatpush1.msra.mxu0 0.0
    %2660 = vmatprep.subr.mxu0 0.0
    %2661 = vmatpush1.msra.mxu0 0.0
    %2662 = vmatprep.subr.mxu0 0.0
    %2663 = vmatpush1.msra.mxu0 0.0
    %2664 = vmatprep.subr.mxu0 0.0
    %2665 = vmatpush1.msra.mxu0 0.0
    %2666 = vmatprep.subr.mxu0 0.0
    %2667 = vmatpush1.msra.mxu0 0.0
    %2668 = vmatprep.subr.mxu0 0.0
    %2669 = vmatpush1.msra.mxu0 0.0
    %2670 = vmatprep.subr.mxu0 0.0
    %2671 = vmatpush1.msra.mxu0 0.0
    %2672 = vmatprep.subr.mxu0 0.0
    %2673 = vmatpush1.msra.mxu0 0.0
    %2674 = vmatprep.subr.mxu0 0.0
    %2675 = vmatpush1.msra.mxu0 0.0
    %2676 = vmatprep.subr.mxu0 0.0
    %2677 = vmatpush1.msra.mxu0 0.0
    %2678 = vmatprep.subr.mxu0 0.0
    %2679 = vmatpush1.msra.mxu0 0.0
    %2680 = vmatprep.subr.mxu0 0.0
    %2681 = vmatpush1.msra.mxu0 0.0
    %2682 = vmatprep.subr.mxu0 0.0
    %2683 = vmatpush1.msra.mxu0 0.0
    %2684 = vmatprep.subr.mxu0 0.0
    %2685 = vmatpush1.msra.mxu0 0.0
    %2686 = vmatprep.subr.mxu0 0.0
    %2687 = vmatpush1.msra.mxu0 0.0
    %2688 = vmatprep.subr.mxu0 0.0
    %2689 = vmatpush1.msra.mxu0 0.0
    %2690 = vmatprep.subr.mxu0 0.0
    %2691 = vmatpush1.msra.mxu0 0.0
    %2692 = vmatprep.subr.mxu0 0.0
    %2693 = vmatpush1.msra.mxu0 0.0
    %2694 = vmatprep.subr.mxu0 0.0
    %2695 = vmatpush1.msra.mxu0 0.0
    %2696 = vmatprep.subr.mxu0 0.0
    %2697 = vmatpush1.msra.mxu0 0.0
    %2698 = vmatprep.subr.mxu0 0.0
    %2699 = vmatpush1.msra.mxu0 0.0
    %2700 = vmatprep.subr.mxu0 0.0
    %2701 = vmatpush1.msra.mxu0 0.0
    %2702 = vmatprep.subr.mxu0 0.0
    %2703 = vmatpush1.msra.mxu0 0.0
    %2704 = vmatprep.subr.mxu0 0.0
    %2705 = vmatpush1.msra.mxu0 0.0
    %2706 = vmatprep.subr.mxu0 0.0
    %2707 = vmatpush1.msra.mxu0 0.0
    %2708 = vmatprep.subr.mxu0 0.0
    %2709 = vmatpush1.msra.mxu0 0.0
    %2710 = vmatprep.subr.mxu0 0.0
    %2711 = vmatpush1.msra.mxu0 0.0
    %2712 = vmatprep.subr.mxu0 0.0
    %2713 = vmatpush1.msra.mxu0 0.0
    %2714 = vmatprep.subr.mxu0 0.0
    %2715 = vmatpush1.msra.mxu0 0.0
    %2716 = vmatprep.subr.mxu0 0.0
    %2717 = vmatpush1.msra.mxu0 0.0
    %2718 = vmatprep.subr.mxu0 0.0
    %2719 = vmatpush1.msra.mxu0 0.0
    %2720 = vmatprep.mubr.f32.mxu0 0.0
    %2721 = vmatmul.mubr.f32.gmra.mrb[0].mxu0 %v2648
    %v2722 = vpop.f32.mrb[0].mxu0
    %v2723 = vadd.f32 %v2639, %v2722
    %v2724 = vpop.f32.mrb[0].mxu0
    %2725 = vmatprep.mubr.f32.mxu0 0.0
    %2726 = vmatmul.mubr.f32.gmra.mrb[0].mxu0 %v2651
    %v2727 = vpop.f32.mrb[0].mxu0
    %v2728 = vadd.f32 %v2644, %v2727
    %v2729 = vpop.f32.mrb[0].mxu0
    %2730 = vdwg.mxu0
    %v2733 = vrot.slane %v755, 7
    %v2734 = vsel %vm763, %v2733, %v754
    %v2736 = vmul.f32 %v2723, %v2734
    %v2739 = vrot.slane %v1037, 7
    %v2740 = vrot.slane %v1038, 6
    %vm2741 = vcmask 1043459
    %v2742 = vsel %vm2741, %v2740, %v2739
    %v2744 = vmul.f32 %v2723, %v2742
    %v2746 = vrot.slane %v2744, 2
    %v2748 = vadd.f32 %v2736, %v2746
    %v2751 = vrot.slane %v1275, 6
    %v2752 = vrot.slane %v1276, 5
    %vm2753 = vcmask 1045509
    %v2754 = vsel %vm2753, %v2752, %v2751
    %v2756 = vmul.f32 %v2723, %v2754
    %v2758 = vrot.slane %v2756, 4
    %v2760 = vadd.f32 %v2748, %v2758
    %v2763 = vrot.slane %v1514, 5
    %v2764 = vrot.slane %v1515, 4
    %vm2765 = vcmask 1047559
    %v2766 = vsel %vm2765, %v2764, %v2763
    %v2768 = vmul.f32 %v2723, %v2766
    %v2770 = vrot.slane %v2768, 6
    %v2772 = vadd.f32 %v2760, %v2770
    %v2775 = vrot.slane %v1729, 4
    %v2776 = vrot.slane %v1730, 3
    %v2777 = vsel %vm763, %v2776, %v2775
    %v2779 = vmul.f32 %v2728, %v2777
    %v2780 = vadd.f32 %v2772, %v2779
    %v2783 = vrot.slane %v1944, 3
    %v2784 = vrot.slane %v1945, 2
    %v2785 = vsel %vm2741, %v2784, %v2783
    %v2787 = vmul.f32 %v2728, %v2785
    %v2789 = vrot.slane %v2787, 2
    %v2791 = vadd.f32 %v2780, %v2789
    %v2794 = vrot.slane %v2159, 2
    %v2795 = vrot.slane %v2160, 1
    %v2796 = vsel %vm2753, %v2795, %v2794
    %v2798 = vmul.f32 %v2728, %v2796
    %v2800 = vrot.slane %v2798, 4
    %v2802 = vadd.f32 %v2791, %v2800
    %v2805 = vrot.slane %v2374, 1
    %v2806 = vsel %vm2765, %v2375, %v2805
    %v2808 = vmul.f32 %v2728, %v2806
    %v2810 = vrot.slane %v2808, 6
    %v2812 = vadd.f32 %v2802, %v2810
    %v2813 = vpack.c.bf16 %v2812, %v2812
    %v2814 = vld [vmem:[#allocation5] sm:$0xff]
    %v2815 = vld [vmem:[#allocation5 + $0x8] sm:$0xff]
    %v2816 = vld [vmem:[#allocation5 + $0x10] sm:$0xff]
    %v2817 = vld [vmem:[#allocation5 + $0x18] sm:$0xff]
    %v2818 = vld [vmem:[#allocation5 + $0x20] sm:$0xff]
    %v2819 = vld [vmem:[#allocation5 + $0x28] sm:$0xff]
    %v2820 = vld [vmem:[#allocation5 + $0x30] sm:$0xff]
    %v2821 = vld [vmem:[#allocation5 + $0x38] sm:$0xff]
    %v2822 = vld [vmem:[#allocation5 + $0x40] sm:$0xff]
    %v2823 = vld [vmem:[#allocation5 + $0x48] sm:$0xff]
    %v2824 = vld [vmem:[#allocation5 + $0x50] sm:$0xff]
    %v2825 = vld [vmem:[#allocation5 + $0x58] sm:$0xff]
    %v2826 = vld [vmem:[#allocation5 + $0x60] sm:$0xff]
    %v2827 = vld [vmem:[#allocation5 + $0x68] sm:$0xff]
    %v2828 = vld [vmem:[#allocation5 + $0x70] sm:$0xff]
    %v2829 = vld [vmem:[#allocation5 + $0x78] sm:$0xff]
    %v2830 = vld [vmem:[#allocation5 + $0x80] sm:$0xff]
    %v2831 = vld [vmem:[#allocation5 + $0x88] sm:$0xff]
    %v2832 = vld [vmem:[#allocation5 + $0x90] sm:$0xff]
    %v2833 = vld [vmem:[#allocation5 + $0x98] sm:$0xff]
    %v2834 = vld [vmem:[#allocation5 + $0xa0] sm:$0xff]
    %v2835 = vld [vmem:[#allocation5 + $0xa8] sm:$0xff]
    %v2836 = vld [vmem:[#allocation5 + $0xb0] sm:$0xff]
    %v2837 = vld [vmem:[#allocation5 + $0xb8] sm:$0xff]
    %v2838 = vld [vmem:[#allocation5 + $0xc0] sm:$0xff]
    %v2839 = vld [vmem:[#allocation5 + $0xc8] sm:$0xff]
    %v2840 = vld [vmem:[#allocation5 + $0xd0] sm:$0xff]
    %v2841 = vld [vmem:[#allocation5 + $0xd8] sm:$0xff]
    %v2842 = vld [vmem:[#allocation5 + $0xe0] sm:$0xff]
    %v2843 = vld [vmem:[#allocation5 + $0xe8] sm:$0xff]
    %v2844 = vld [vmem:[#allocation5 + $0xf0] sm:$0xff]
    %v2845 = vld [vmem:[#allocation5 + $0xf8] sm:$0xff]
    %v2846 = vld [vmem:[#allocation5 + $0x100] sm:$0xff]
    %v2847 = vld [vmem:[#allocation5 + $0x108] sm:$0xff]
    %v2848 = vld [vmem:[#allocation5 + $0x110] sm:$0xff]
    %v2849 = vld [vmem:[#allocation5 + $0x118] sm:$0xff]
    %v2850 = vld [vmem:[#allocation5 + $0x120] sm:$0xff]
    %v2851 = vld [vmem:[#allocation5 + $0x128] sm:$0xff]
    %v2852 = vld [vmem:[#allocation5 + $0x130] sm:$0xff]
    %v2853 = vld [vmem:[#allocation5 + $0x138] sm:$0xff]
    %v2854 = vld [vmem:[#allocation5 + $0x140] sm:$0xff]
    %v2855 = vld [vmem:[#allocation5 + $0x148] sm:$0xff]
    %v2856 = vld [vmem:[#allocation5 + $0x150] sm:$0xff]
    %v2857 = vld [vmem:[#allocation5 + $0x158] sm:$0xff]
    %v2858 = vld [vmem:[#allocation5 + $0x160] sm:$0xff]
    %v2859 = vld [vmem:[#allocation5 + $0x168] sm:$0xff]
    %v2860 = vld [vmem:[#allocation5 + $0x170] sm:$0xff]
    %v2861 = vld [vmem:[#allocation5 + $0x178] sm:$0xff]
    %v2862 = vld [vmem:[#allocation5 + $0x180] sm:$0xff]
    %v2863 = vld [vmem:[#allocation5 + $0x188] sm:$0xff]
    %v2864 = vld [vmem:[#allocation5 + $0x190] sm:$0xff]
    %v2865 = vld [vmem:[#allocation5 + $0x198] sm:$0xff]
    %v2866 = vld [vmem:[#allocation5 + $0x1a0] sm:$0xff]
    %v2867 = vld [vmem:[#allocation5 + $0x1a8] sm:$0xff]
    %v2868 = vld [vmem:[#allocation5 + $0x1b0] sm:$0xff]
    %v2869 = vld [vmem:[#allocation5 + $0x1b8] sm:$0xff]
    %v2870 = vld [vmem:[#allocation5 + $0x1c0] sm:$0xff]
    %v2871 = vld [vmem:[#allocation5 + $0x1c8] sm:$0xff]
    %v2872 = vld [vmem:[#allocation5 + $0x1d0] sm:$0xff]
    %v2873 = vld [vmem:[#allocation5 + $0x1d8] sm:$0xff]
    %v2874 = vld [vmem:[#allocation5 + $0x1e0] sm:$0xff]
    %v2875 = vld [vmem:[#allocation5 + $0x1e8] sm:$0xff]
    %v2876 = vld [vmem:[#allocation5 + $0x1f0] sm:$0xff]
    %v2877 = vld [vmem:[#allocation5 + $0x1f8] sm:$0xff]
    %v2878 = vld [vmem:[%s8] sm:$0xff]
    %v2880 = vlaneseq
    %v2881 = vshrl.u32 %v2880, 7
    %v2882 = vsub.s32 0, %v2881
    %v2883 = vrot.slane %v2878, %v2882
    %v2884 = vlaneseq
    %v2885 = vshrl.u32 %v2884, 7
    %v2886 = vsub.s32 1, %v2885
    %v2887 = vrot.slane %v2878, %v2886
    %v2888 = vlaneseq
    %v2889 = vshrl.u32 %v2888, 7
    %v2890 = vsub.s32 2, %v2889
    %v2891 = vrot.slane %v2878, %v2890
    %v2892 = vlaneseq
    %v2893 = vshrl.u32 %v2892, 7
    %v2894 = vsub.s32 3, %v2893
    %v2895 = vrot.slane %v2878, %v2894
    %v2896 = vlaneseq
    %v2897 = vshrl.u32 %v2896, 7
    %v2898 = vsub.s32 4, %v2897
    %v2899 = vrot.slane %v2878, %v2898
    %v2900 = vlaneseq
    %v2901 = vshrl.u32 %v2900, 7
    %v2902 = vsub.s32 5, %v2901
    %v2903 = vrot.slane %v2878, %v2902
    %v2904 = vlaneseq
    %v2905 = vshrl.u32 %v2904, 7
    %v2906 = vsub.s32 6, %v2905
    %v2907 = vrot.slane %v2878, %v2906
    %v2908 = vlaneseq
    %v2909 = vshrl.u32 %v2908, 7
    %v2910 = vsub.s32 7, %v2909
    %v2911 = vrot.slane %v2878, %v2910
    %v2984 = vunpack.c.l.b16 %v2814
    %v2985 = vunpack.c.h.b16 %v2814
    %v2986 = vunpack.c.l.b16 %v2815
    %v2987 = vunpack.c.h.b16 %v2815
    %v2988 = vunpack.c.l.b16 %v2816
    %v2989 = vunpack.c.h.b16 %v2816
    %v2990 = vunpack.c.l.b16 %v2817
    %v2991 = vunpack.c.h.b16 %v2817
    %v2992 = vunpack.c.l.b16 %v2818
    %v2993 = vunpack.c.h.b16 %v2818
    %v2994 = vunpack.c.l.b16 %v2819
    %v2995 = vunpack.c.h.b16 %v2819
    %v2996 = vunpack.c.l.b16 %v2820
    %v2997 = vunpack.c.h.b16 %v2820
    %v2998 = vunpack.c.l.b16 %v2821
    %v2999 = vunpack.c.h.b16 %v2821
    %v3000 = vunpack.c.l.b16 %v2822
    %v3001 = vunpack.c.h.b16 %v2822
    %v3002 = vunpack.c.l.b16 %v2823
    %v3003 = vunpack.c.h.b16 %v2823
    %v3004 = vunpack.c.l.b16 %v2824
    %v3005 = vunpack.c.h.b16 %v2824
    %v3006 = vunpack.c.l.b16 %v2825
    %v3007 = vunpack.c.h.b16 %v2825
    %v3008 = vunpack.c.l.b16 %v2826
    %v3009 = vunpack.c.h.b16 %v2826
    %v3010 = vunpack.c.l.b16 %v2827
    %v3011 = vunpack.c.h.b16 %v2827
    %v3012 = vunpack.c.l.b16 %v2828
    %v3013 = vunpack.c.h.b16 %v2828
    %v3014 = vunpack.c.l.b16 %v2829
    %v3015 = vunpack.c.h.b16 %v2829
    %v3016 = vunpack.c.l.b16 %v2830
    %v3017 = vunpack.c.h.b16 %v2830
    %v3018 = vunpack.c.l.b16 %v2831
    %v3019 = vunpack.c.h.b16 %v2831
    %v3020 = vunpack.c.l.b16 %v2832
    %v3021 = vunpack.c.h.b16 %v2832
    %v3022 = vunpack.c.l.b16 %v2833
    %v3023 = vunpack.c.h.b16 %v2833
    %v3024 = vunpack.c.l.b16 %v2834
    %v3025 = vunpack.c.h.b16 %v2834
    %v3026 = vunpack.c.l.b16 %v2835
    %v3027 = vunpack.c.h.b16 %v2835
    %v3028 = vunpack.c.l.b16 %v2836
    %v3029 = vunpack.c.h.b16 %v2836
    %v3030 = vunpack.c.l.b16 %v2837
    %v3031 = vunpack.c.h.b16 %v2837
    %v3032 = vunpack.c.l.b16 %v2838
    %v3033 = vunpack.c.h.b16 %v2838
    %v3034 = vunpack.c.l.b16 %v2839
    %v3035 = vunpack.c.h.b16 %v2839
    %v3036 = vunpack.c.l.b16 %v2840
    %v3037 = vunpack.c.h.b16 %v2840
    %v3038 = vunpack.c.l.b16 %v2841
    %v3039 = vunpack.c.h.b16 %v2841
    %v3040 = vunpack.c.l.b16 %v2842
    %v3041 = vunpack.c.h.b16 %v2842
    %v3042 = vunpack.c.l.b16 %v2843
    %v3043 = vunpack.c.h.b16 %v2843
    %v3044 = vunpack.c.l.b16 %v2844
    %v3045 = vunpack.c.h.b16 %v2844
    %v3046 = vunpack.c.l.b16 %v2845
    %v3047 = vunpack.c.h.b16 %v2845
    %v3048 = vunpack.c.l.b16 %v2846
    %v3049 = vunpack.c.h.b16 %v2846
    %v3050 = vunpack.c.l.b16 %v2847
    %v3051 = vunpack.c.h.b16 %v2847
    %v3052 = vunpack.c.l.b16 %v2848
    %v3053 = vunpack.c.h.b16 %v2848
    %v3054 = vunpack.c.l.b16 %v2849
    %v3055 = vunpack.c.h.b16 %v2849
    %v3056 = vunpack.c.l.b16 %v2850
    %v3057 = vunpack.c.h.b16 %v2850
    %v3058 = vunpack.c.l.b16 %v2851
    %v3059 = vunpack.c.h.b16 %v2851
    %v3060 = vunpack.c.l.b16 %v2852
    %v3061 = vunpack.c.h.b16 %v2852
    %v3062 = vunpack.c.l.b16 %v2853
    %v3063 = vunpack.c.h.b16 %v2853
    %v3064 = vunpack.c.l.b16 %v2854
    %v3065 = vunpack.c.h.b16 %v2854
    %v3066 = vunpack.c.l.b16 %v2855
    %v3067 = vunpack.c.h.b16 %v2855
    %v3068 = vunpack.c.l.b16 %v2856
    %v3069 = vunpack.c.h.b16 %v2856
    %v3070 = vunpack.c.l.b16 %v2857
    %v3071 = vunpack.c.h.b16 %v2857
    %v3072 = vunpack.c.l.b16 %v2858
    %v3073 = vunpack.c.h.b16 %v2858
    %v3074 = vunpack.c.l.b16 %v2859
    %v3075 = vunpack.c.h.b16 %v2859
    %v3076 = vunpack.c.l.b16 %v2860
    %v3077 = vunpack.c.h.b16 %v2860
    %v3078 = vunpack.c.l.b16 %v2861
    %v3079 = vunpack.c.h.b16 %v2861
    %v3080 = vunpack.c.l.b16 %v2862
    %v3081 = vunpack.c.h.b16 %v2862
    %v3082 = vunpack.c.l.b16 %v2863
    %v3083 = vunpack.c.h.b16 %v2863
    %v3084 = vunpack.c.l.b16 %v2864
    %v3085 = vunpack.c.h.b16 %v2864
    %v3086 = vunpack.c.l.b16 %v2865
    %v3087 = vunpack.c.h.b16 %v2865
    %v3088 = vunpack.c.l.b16 %v2866
    %v3089 = vunpack.c.h.b16 %v2866
    %v3090 = vunpack.c.l.b16 %v2867
    %v3091 = vunpack.c.h.b16 %v2867
    %v3092 = vunpack.c.l.b16 %v2868
    %v3093 = vunpack.c.h.b16 %v2868
    %v3094 = vunpack.c.l.b16 %v2869
    %v3095 = vunpack.c.h.b16 %v2869
    %v3096 = vunpack.c.l.b16 %v2870
    %v3097 = vunpack.c.h.b16 %v2870
    %v3098 = vunpack.c.l.b16 %v2871
    %v3099 = vunpack.c.h.b16 %v2871
    %v3100 = vunpack.c.l.b16 %v2872
    %v3101 = vunpack.c.h.b16 %v2872
    %v3102 = vunpack.c.l.b16 %v2873
    %v3103 = vunpack.c.h.b16 %v2873
    %v3104 = vunpack.c.l.b16 %v2874
    %v3105 = vunpack.c.h.b16 %v2874
    %v3106 = vunpack.c.l.b16 %v2875
    %v3107 = vunpack.c.h.b16 %v2875
    %v3108 = vunpack.c.l.b16 %v2876
    %v3109 = vunpack.c.h.b16 %v2876
    %v3110 = vunpack.c.l.b16 %v2877
    %v3111 = vunpack.c.h.b16 %v2877
    %v3112 = vpack.c.b16 %v2992, %v2984
    %v3113 = vpack.c.b16 %v2993, %v2985
    %v3114 = vpack.c.b16 %v2994, %v2986
    %v3115 = vpack.c.b16 %v2995, %v2987
    %v3116 = vpack.c.b16 %v2996, %v2988
    %v3117 = vpack.c.b16 %v2997, %v2989
    %v3118 = vpack.c.b16 %v2998, %v2990
    %v3119 = vpack.c.b16 %v2999, %v2991
    %v3120 = vpack.c.b16 %v3008, %v3000
    %v3121 = vpack.c.b16 %v3009, %v3001
    %v3122 = vpack.c.b16 %v3010, %v3002
    %v3123 = vpack.c.b16 %v3011, %v3003
    %v3124 = vpack.c.b16 %v3012, %v3004
    %v3125 = vpack.c.b16 %v3013, %v3005
    %v3126 = vpack.c.b16 %v3014, %v3006
    %v3127 = vpack.c.b16 %v3015, %v3007
    %v3128 = vpack.c.b16 %v3024, %v3016
    %v3129 = vpack.c.b16 %v3025, %v3017
    %v3130 = vpack.c.b16 %v3026, %v3018
    %v3131 = vpack.c.b16 %v3027, %v3019
    %v3132 = vpack.c.b16 %v3028, %v3020
    %v3133 = vpack.c.b16 %v3029, %v3021
    %v3134 = vpack.c.b16 %v3030, %v3022
    %v3135 = vpack.c.b16 %v3031, %v3023
    %v3136 = vpack.c.b16 %v3040, %v3032
    %v3137 = vpack.c.b16 %v3041, %v3033
    %v3138 = vpack.c.b16 %v3042, %v3034
    %v3139 = vpack.c.b16 %v3043, %v3035
    %v3140 = vpack.c.b16 %v3044, %v3036
    %v3141 = vpack.c.b16 %v3045, %v3037
    %v3142 = vpack.c.b16 %v3046, %v3038
    %v3143 = vpack.c.b16 %v3047, %v3039
    %v3144 = vpack.c.b16 %v3056, %v3048
    %v3145 = vpack.c.b16 %v3057, %v3049
    %v3146 = vpack.c.b16 %v3058, %v3050
    %v3147 = vpack.c.b16 %v3059, %v3051
    %v3148 = vpack.c.b16 %v3060, %v3052
    %v3149 = vpack.c.b16 %v3061, %v3053
    %v3150 = vpack.c.b16 %v3062, %v3054
    %v3151 = vpack.c.b16 %v3063, %v3055
    %v3152 = vpack.c.b16 %v3072, %v3064
    %v3153 = vpack.c.b16 %v3073, %v3065
    %v3154 = vpack.c.b16 %v3074, %v3066
    %v3155 = vpack.c.b16 %v3075, %v3067
    %v3156 = vpack.c.b16 %v3076, %v3068
    %v3157 = vpack.c.b16 %v3077, %v3069
    %v3158 = vpack.c.b16 %v3078, %v3070
    %v3159 = vpack.c.b16 %v3079, %v3071
    %v3160 = vpack.c.b16 %v3088, %v3080
    %v3161 = vpack.c.b16 %v3089, %v3081
    %v3162 = vpack.c.b16 %v3090, %v3082
    %v3163 = vpack.c.b16 %v3091, %v3083
    %v3164 = vpack.c.b16 %v3092, %v3084
    %v3165 = vpack.c.b16 %v3093, %v3085
    %v3166 = vpack.c.b16 %v3094, %v3086
    %v3167 = vpack.c.b16 %v3095, %v3087
    %v3168 = vpack.c.b16 %v3104, %v3096
    %v3169 = vpack.c.b16 %v3105, %v3097
    %v3170 = vpack.c.b16 %v3106, %v3098
    %v3171 = vpack.c.b16 %v3107, %v3099
    %v3172 = vpack.c.b16 %v3108, %v3100
    %v3173 = vpack.c.b16 %v3109, %v3101
    %v3174 = vpack.c.b16 %v3110, %v3102
    %v3175 = vpack.c.b16 %v3111, %v3103
    %3240 = vmatprep.subr.bf16.mxu0 %v3113
    %3241 = vmatpush1.bf16.msra.mxu0 %v3112
    %3242 = vmatprep.subr.bf16.mxu0 %v3121
    %3243 = vmatpush1.bf16.msra.mxu0 %v3120
    %3244 = vmatprep.subr.bf16.mxu0 %v3129
    %3245 = vmatpush1.bf16.msra.mxu0 %v3128
    %3246 = vmatprep.subr.bf16.mxu0 %v3137
    %3247 = vmatpush1.bf16.msra.mxu0 %v3136
    %3248 = vmatprep.subr.bf16.mxu0 %v3145
    %3249 = vmatpush1.bf16.msra.mxu0 %v3144
    %3250 = vmatprep.subr.bf16.mxu0 %v3153
    %3251 = vmatpush1.bf16.msra.mxu0 %v3152
    %3252 = vmatprep.subr.bf16.mxu0 %v3161
    %3253 = vmatpush1.bf16.msra.mxu0 %v3160
    %3254 = vmatprep.subr.bf16.mxu0 %v3169
    %3255 = vmatpush1.bf16.msra.mxu0 %v3168
    %3256 = vmatprep.subr.bf16.mxu0 0
    %3257 = vmatpush1.bf16.msra.mxu0 0
    %3258 = vmatprep.subr.bf16.mxu0 0
    %3259 = vmatpush1.bf16.msra.mxu0 0
    %3260 = vmatprep.subr.bf16.mxu0 0
    %3261 = vmatpush1.bf16.msra.mxu0 0
    %3262 = vmatprep.subr.bf16.mxu0 0
    %3263 = vmatpush1.bf16.msra.mxu0 0
    %3264 = vmatprep.subr.bf16.mxu0 0
    %3265 = vmatpush1.bf16.msra.mxu0 0
    %3266 = vmatprep.subr.bf16.mxu0 0
    %3267 = vmatpush1.bf16.msra.mxu0 0
    %3268 = vmatprep.subr.bf16.mxu0 0
    %3269 = vmatpush1.bf16.msra.mxu0 0
    %3270 = vmatprep.subr.bf16.mxu0 0
    %3271 = vmatpush1.bf16.msra.mxu0 0
    %3272 = vmatprep.mubr.bf16.mxu0 0
    %3273 = vmatmul.mubr.bf16.gmra.mrb[0].mxu0 %v2813
    %v3274 = vpop.f32.mrb[0].mxu0
    %v3275 = vadd.f32 %v2883, %v3274
    %v3276 = vpop.f32.mrb[0].mxu0
    %v3277 = vadd.f32 %v2887, %v3276
    %v3278 = vpop.f32.mrb[0].mxu0
    %v3279 = vpop.f32.mrb[0].mxu0
    %3280 = vdwg.mxu0
    %3281 = vmatprep.subr.bf16.mxu0 %v3115
    %3282 = vmatpush1.bf16.msra.mxu0 %v3114
    %3283 = vmatprep.subr.bf16.mxu0 %v3123
    %3284 = vmatpush1.bf16.msra.mxu0 %v3122
    %3285 = vmatprep.subr.bf16.mxu0 %v3131
    %3286 = vmatpush1.bf16.msra.mxu0 %v3130
    %3287 = vmatprep.subr.bf16.mxu0 %v3139
    %3288 = vmatpush1.bf16.msra.mxu0 %v3138
    %3289 = vmatprep.subr.bf16.mxu0 %v3147
    %3290 = vmatpush1.bf16.msra.mxu0 %v3146
    %3291 = vmatprep.subr.bf16.mxu0 %v3155
    %3292 = vmatpush1.bf16.msra.mxu0 %v3154
    %3293 = vmatprep.subr.bf16.mxu0 %v3163
    %3294 = vmatpush1.bf16.msra.mxu0 %v3162
    %3295 = vmatprep.subr.bf16.mxu0 %v3171
    %3296 = vmatpush1.bf16.msra.mxu0 %v3170
    %3297 = vmatprep.subr.bf16.mxu0 0
    %3298 = vmatpush1.bf16.msra.mxu0 0
    %3299 = vmatprep.subr.bf16.mxu0 0
    %3300 = vmatpush1.bf16.msra.mxu0 0
    %3301 = vmatprep.subr.bf16.mxu0 0
    %3302 = vmatpush1.bf16.msra.mxu0 0
    %3303 = vmatprep.subr.bf16.mxu0 0
    %3304 = vmatpush1.bf16.msra.mxu0 0
    %3305 = vmatprep.subr.bf16.mxu0 0
    %3306 = vmatpush1.bf16.msra.mxu0 0
    %3307 = vmatprep.subr.bf16.mxu0 0
    %3308 = vmatpush1.bf16.msra.mxu0 0
    %3309 = vmatprep.subr.bf16.mxu0 0
    %3310 = vmatpush1.bf16.msra.mxu0 0
    %3311 = vmatprep.subr.bf16.mxu0 0
    %3312 = vmatpush1.bf16.msra.mxu0 0
    %3313 = vmatprep.mubr.bf16.mxu0 0
    %3314 = vmatmul.mubr.bf16.gmra.mrb[0].mxu0 %v2813
    %v3315 = vpop.f32.mrb[0].mxu0
    %v3316 = vadd.f32 %v2891, %v3315
    %v3317 = vpop.f32.mrb[0].mxu0
    %v3318 = vadd.f32 %v2895, %v3317
    %v3319 = vpop.f32.mrb[0].mxu0
    %v3320 = vpop.f32.mrb[0].mxu0
    %3321 = vdwg.mxu0
    %3322 = vmatprep.subr.bf16.mxu0 %v3117
    %3323 = vmatpush1.bf16.msra.mxu0 %v3116
    %3324 = vmatprep.subr.bf16.mxu0 %v3125
    %3325 = vmatpush1.bf16.msra.mxu0 %v3124
    %3326 = vmatprep.subr.bf16.mxu0 %v3133
    %3327 = vmatpush1.bf16.msra.mxu0 %v3132
    %3328 = vmatprep.subr.bf16.mxu0 %v3141
    %3329 = vmatpush1.bf16.msra.mxu0 %v3140
    %3330 = vmatprep.subr.bf16.mxu0 %v3149
    %3331 = vmatpush1.bf16.msra.mxu0 %v3148
    %3332 = vmatprep.subr.bf16.mxu0 %v3157
    %3333 = vmatpush1.bf16.msra.mxu0 %v3156
    %3334 = vmatprep.subr.bf16.mxu0 %v3165
    %3335 = vmatpush1.bf16.msra.mxu0 %v3164
    %3336 = vmatprep.subr.bf16.mxu0 %v3173
    %3337 = vmatpush1.bf16.msra.mxu0 %v3172
    %3338 = vmatprep.subr.bf16.mxu0 0
    %3339 = vmatpush1.bf16.msra.mxu0 0
    %3340 = vmatprep.subr.bf16.mxu0 0
    %3341 = vmatpush1.bf16.msra.mxu0 0
    %3342 = vmatprep.subr.bf16.mxu0 0
    %3343 = vmatpush1.bf16.msra.mxu0 0
    %3344 = vmatprep.subr.bf16.mxu0 0
    %3345 = vmatpush1.bf16.msra.mxu0 0
    %3346 = vmatprep.subr.bf16.mxu0 0
    %3347 = vmatpush1.bf16.msra.mxu0 0
    %3348 = vmatprep.subr.bf16.mxu0 0
    %3349 = vmatpush1.bf16.msra.mxu0 0
    %3350 = vmatprep.subr.bf16.mxu0 0
    %3351 = vmatpush1.bf16.msra.mxu0 0
    %3352 = vmatprep.subr.bf16.mxu0 0
    %3353 = vmatpush1.bf16.msra.mxu0 0
    %3354 = vmatprep.mubr.bf16.mxu0 0
    %3355 = vmatmul.mubr.bf16.gmra.mrb[0].mxu0 %v2813
    %v3356 = vpop.f32.mrb[0].mxu0
    %v3357 = vadd.f32 %v2899, %v3356
    %v3358 = vpop.f32.mrb[0].mxu0
    %v3359 = vadd.f32 %v2903, %v3358
    %v3360 = vpop.f32.mrb[0].mxu0
    %v3361 = vpop.f32.mrb[0].mxu0
    %3362 = vdwg.mxu0
    %3363 = vmatprep.subr.bf16.mxu0 %v3119
    %3364 = vmatpush1.bf16.msra.mxu0 %v3118
    %3365 = vmatprep.subr.bf16.mxu0 %v3127
    %3366 = vmatpush1.bf16.msra.mxu0 %v3126
    %3367 = vmatprep.subr.bf16.mxu0 %v3135
    %3368 = vmatpush1.bf16.msra.mxu0 %v3134
    %3369 = vmatprep.subr.bf16.mxu0 %v3143
    %3370 = vmatpush1.bf16.msra.mxu0 %v3142
    %3371 = vmatprep.subr.bf16.mxu0 %v3151
    %3372 = vmatpush1.bf16.msra.mxu0 %v3150
    %3373 = vmatprep.subr.bf16.mxu0 %v3159
    %3374 = vmatpush1.bf16.msra.mxu0 %v3158
    %3375 = vmatprep.subr.bf16.mxu0 %v3167
    %3376 = vmatpush1.bf16.msra.mxu0 %v3166
    %3377 = vmatprep.subr.bf16.mxu0 %v3175
    %3378 = vmatpush1.bf16.msra.mxu0 %v3174
    %3379 = vmatprep.subr.bf16.mxu0 0
    %3380 = vmatpush1.bf16.msra.mxu0 0
    %3381 = vmatprep.subr.bf16.mxu0 0
    %3382 = vmatpush1.bf16.msra.mxu0 0
    %3383 = vmatprep.subr.bf16.mxu0 0
    %3384 = vmatpush1.bf16.msra.mxu0 0
    %3385 = vmatprep.subr.bf16.mxu0 0
    %3386 = vmatpush1.bf16.msra.mxu0 0
    %3387 = vmatprep.subr.bf16.mxu0 0
    %3388 = vmatpush1.bf16.msra.mxu0 0
    %3389 = vmatprep.subr.bf16.mxu0 0
    %3390 = vmatpush1.bf16.msra.mxu0 0
    %3391 = vmatprep.subr.bf16.mxu0 0
    %3392 = vmatpush1.bf16.msra.mxu0 0
    %3393 = vmatprep.subr.bf16.mxu0 0
    %3394 = vmatpush1.bf16.msra.mxu0 0
    %3395 = vmatprep.mubr.bf16.mxu0 0
    %3396 = vmatmul.mubr.bf16.gmra.mrb[0].mxu0 %v2813
    %v3397 = vpop.f32.mrb[0].mxu0
    %v3398 = vadd.f32 %v2907, %v3397
    %v3399 = vpop.f32.mrb[0].mxu0
    %v3400 = vadd.f32 %v2911, %v3399
    %v3401 = vpop.f32.mrb[0].mxu0
    %v3402 = vpop.f32.mrb[0].mxu0
    %3403 = vdwg.mxu0
    %v3404 = vld [vmem:[%s9] sm:$0xf]
    %v3405 = vld [vmem:[%s9 + $0x4] sm:$0xf]
    %v3406 = vld [vmem:[%s9 + $0x8] sm:$0xf]
    %v3407 = vld [vmem:[%s9 + $0xc] sm:$0xf]
    %v3408 = vld [vmem:[%s10] sm:$0xf]
    %v3409 = vld [vmem:[%s10 + $0x4] sm:$0xf]
    %v3410 = vld [vmem:[%s10 + $0x8] sm:$0xf]
    %v3411 = vld [vmem:[%s10 + $0xc] sm:$0xf]
    %v3412 = vadd.f32 %v3275, %v3400
    %v3417 = vunpack.c.l.b16 %v3404
    %v3418 = vunpack.c.l.b16 %v3405
    %v3419 = vunpack.c.l.b16 %v3406
    %v3420 = vunpack.c.l.b16 %v3407
    %v3421 = vpack.c.b16 %v3418, %v3417
    %v3422 = vpack.c.b16 %v3420, %v3419
    %vm3425 = vcmask 261120
    %v3427 = vsel %vm3425, 0, 0
    %3429 = vmatprep.subr.bf16.mxu0 0
    %3430 = vmatpush1.bf16.msra.mxu0 %v3421
    %3431 = vmatprep.subr.bf16.mxu0 0
    %3432 = vmatpush1.bf16.msra.mxu0 %v3422
    %3433 = vmatprep.subr.bf16.mxu0 0
    %3434 = vmatpush1.bf16.msra.mxu0 0
    %3435 = vmatprep.subr.bf16.mxu0 0
    %3436 = vmatpush1.bf16.msra.mxu0 0
    %3437 = vmatprep.subr.bf16.mxu0 0
    %3438 = vmatpush1.bf16.msra.mxu0 0
    %3439 = vmatprep.subr.bf16.mxu0 0
    %3440 = vmatpush1.bf16.msra.mxu0 0
    %3441 = vmatprep.subr.bf16.mxu0 0
    %3442 = vmatpush1.bf16.msra.mxu0 0
    %3443 = vmatprep.subr.bf16.mxu0 0
    %3444 = vmatpush1.bf16.msra.mxu0 0
    %3445 = vmatprep.subr.bf16.mxu0 0
    %3446 = vmatpush1.bf16.msra.mxu0 0
    %3447 = vmatprep.subr.bf16.mxu0 0
    %3448 = vmatpush1.bf16.msra.mxu0 0
    %3449 = vmatprep.subr.bf16.mxu0 0
    %3450 = vmatpush1.bf16.msra.mxu0 0
    %3451 = vmatprep.subr.bf16.mxu0 0
    %3452 = vmatpush1.bf16.msra.mxu0 0
    %3453 = vmatprep.subr.bf16.mxu0 0
    %3454 = vmatpush1.bf16.msra.mxu0 0
    %3455 = vmatprep.subr.bf16.mxu0 0
    %3456 = vmatpush1.bf16.msra.mxu0 0
    %3457 = vmatprep.subr.bf16.mxu0 0
    %3458 = vmatpush1.bf16.msra.mxu0 0
    %3459 = vmatprep.subr.bf16.mxu0 0
    %3460 = vmatpush1.bf16.msra.mxu0 0
    %3461 = vmatprep.mubr.bf16.mxu0 0
    %3462 = vmatmul.mubr.bf16.gmra.mrb[0].mxu0 %v3427
    %v3463 = vpop.f32.mrb[0].mxu0
    %v3464 = vadd.f32 0.0, %v3463
    %v3465 = vpop.f32.mrb[0].mxu0
    %v3466 = vpop.f32.mrb[0].mxu0
    %v3467 = vpop.f32.mrb[0].mxu0
    %3468 = vdwg.mxu0
    %v3469 = vadd.f32 %v3412, %v3464
    %v3470 = vxor.u32 %v3469, 2147483648
    %v3471 = vmul.f32 %v3470, 1.442695
    %v3472 = vpow.pop %v3471
    %v3473 = vadd.f32 %v3472, 1.0
    %v3474 = vrcp.pop %v3473
    %v3475 = vmul.f32 1.0, %v3474
    %v3476 = vtanh.pop %v3469
    %v3477 = vmul.f32 %v3475, 0.0
    %3479 = vrot.lane.b32.xlu0 %v3476, 64
    %v3480 = vpop.permute.xlu0 %3479
    %v3482 = vmul.f32 %v3475, %v3480
    %3484 = vrot.lane.b32.xlu0 %v3482, 32
    %v3485 = vpop.permute.xlu0 %3484
    %v3487 = vadd.f32 %v3477, %v3485
    %v3488 = vtanh.pop %v3487
    %3490 = vrot.lane.b32.xlu0 %v3488, 64
    %v3491 = vpop.permute.xlu0 %3490
    %v3493 = vmul.f32 %v3475, %v3491
    %v3494 = vpack.c.bf16 %v3493, %v3493
    %3496 = vrot.lane.b32.xlu0 %v3494, 32
    %v3497 = vpop.permute.xlu0 %3496
    %v3502 = vunpack.c.l.b16 %v3408
    %v3503 = vunpack.c.l.b16 %v3409
    %v3504 = vunpack.c.l.b16 %v3410
    %v3505 = vunpack.c.l.b16 %v3411
    %v3506 = vpack.c.b16 %v3503, %v3502
    %v3507 = vpack.c.b16 %v3505, %v3504
    %v3511 = vsel %vm3425, %v3497, 0
    %3513 = vmatprep.subr.bf16.mxu0 0
    %3514 = vmatpush1.bf16.msra.mxu0 %v3506
    %3515 = vmatprep.subr.bf16.mxu0 0
    %3516 = vmatpush1.bf16.msra.mxu0 %v3507
    %3517 = vmatprep.subr.bf16.mxu0 0
    %3518 = vmatpush1.bf16.msra.mxu0 0
    %3519 = vmatprep.subr.bf16.mxu0 0
    %3520 = vmatpush1.bf16.msra.mxu0 0
    %3521 = vmatprep.subr.bf16.mxu0 0
    %3522 = vmatpush1.bf16.msra.mxu0 0
    %3523 = vmatprep.subr.bf16.mxu0 0
    %3524 = vmatpush1.bf16.msra.mxu0 0
    %3525 = vmatprep.subr.bf16.mxu0 0
    %3526 = vmatpush1.bf16.msra.mxu0 0
    %3527 = vmatprep.subr.bf16.mxu0 0
    %3528 = vmatpush1.bf16.msra.mxu0 0
    %3529 = vmatprep.subr.bf16.mxu0 0
    %3530 = vmatpush1.bf16.msra.mxu0 0
    %3531 = vmatprep.subr.bf16.mxu0 0
    %3532 = vmatpush1.bf16.msra.mxu0 0
    %3533 = vmatprep.subr.bf16.mxu0 0
    %3534 = vmatpush1.bf16.msra.mxu0 0
    %3535 = vmatprep.subr.bf16.mxu0 0
    %3536 = vmatpush1.bf16.msra.mxu0 0
    %3537 = vmatprep.subr.bf16.mxu0 0
    %3538 = vmatpush1.bf16.msra.mxu0 0
    %3539 = vmatprep.subr.bf16.mxu0 0
    %3540 = vmatpush1.bf16.msra.mxu0 0
    %3541 = vmatprep.subr.bf16.mxu0 0
    %3542 = vmatpush1.bf16.msra.mxu0 0
    %3543 = vmatprep.subr.bf16.mxu0 0
    %3544 = vmatpush1.bf16.msra.mxu0 0
    %3545 = vmatprep.mubr.bf16.mxu0 0
    %3546 = vmatmul.mubr.bf16.gmra.mrb[0].mxu0 %v3511
    %v3547 = vpop.f32.mrb[0].mxu0
    %v3548 = vadd.f32 0.0, %v3547
    %v3549 = vpop.f32.mrb[0].mxu0
    %v3550 = vpop.f32.mrb[0].mxu0
    %v3551 = vpop.f32.mrb[0].mxu0
    %3552 = vdwg.mxu0
    %v3553 = vadd.f32 %v3277, %v3398
    %3554 = vmatprep.subr.bf16.mxu0 0
    %3555 = vmatpush1.bf16.msra.mxu0 %v3421
    %3556 = vmatprep.subr.bf16.mxu0 0
    %3557 = vmatpush1.bf16.msra.mxu0 %v3422
    %3558 = vmatprep.subr.bf16.mxu0 0
    %3559 = vmatpush1.bf16.msra.mxu0 0
    %3560 = vmatprep.subr.bf16.mxu0 0
    %3561 = vmatpush1.bf16.msra.mxu0 0
    %3562 = vmatprep.subr.bf16.mxu0 0
    %3563 = vmatpush1.bf16.msra.mxu0 0
    %3564 = vmatprep.subr.bf16.mxu0 0
    %3565 = vmatpush1.bf16.msra.mxu0 0
    %3566 = vmatprep.subr.bf16.mxu0 0
    %3567 = vmatpush1.bf16.msra.mxu0 0
    %3568 = vmatprep.subr.bf16.mxu0 0
    %3569 = vmatpush1.bf16.msra.mxu0 0
    %3570 = vmatprep.subr.bf16.mxu0 0
    %3571 = vmatpush1.bf16.msra.mxu0 0
    %3572 = vmatprep.subr.bf16.mxu0 0
    %3573 = vmatpush1.bf16.msra.mxu0 0
    %3574 = vmatprep.subr.bf16.mxu0 0
    %3575 = vmatpush1.bf16.msra.mxu0 0
    %3576 = vmatprep.subr.bf16.mxu0 0
    %3577 = vmatpush1.bf16.msra.mxu0 0
    %3578 = vmatprep.subr.bf16.mxu0 0
    %3579 = vmatpush1.bf16.msra.mxu0 0
    %3580 = vmatprep.subr.bf16.mxu0 0
    %3581 = vmatpush1.bf16.msra.mxu0 0
    %3582 = vmatprep.subr.bf16.mxu0 0
    %3583 = vmatpush1.bf16.msra.mxu0 0
    %3584 = vmatprep.subr.bf16.mxu0 0
    %3585 = vmatpush1.bf16.msra.mxu0 0
    %3586 = vmatprep.mubr.bf16.mxu0 0
    %3587 = vmatmul.mubr.bf16.gmra.mrb[0].mxu0 %v3511
    %v3588 = vpop.f32.mrb[0].mxu0
    %v3589 = vadd.f32 0.0, %v3588
    %v3590 = vpop.f32.mrb[0].mxu0
    %v3591 = vpop.f32.mrb[0].mxu0
    %v3592 = vpop.f32.mrb[0].mxu0
    %3593 = vdwg.mxu0
    %v3594 = vadd.f32 %v3553, %v3589
    %v3595 = vxor.u32 %v3594, 2147483648
    %v3596 = vmul.f32 %v3595, 1.442695
    %v3597 = vpow.pop %v3596
    %v3598 = vadd.f32 %v3597, 1.0
    %v3599 = vrcp.pop %v3598
    %v3600 = vmul.f32 1.0, %v3599
    %v3601 = vtanh.pop %v3594
    %v3602 = vmul.f32 %v3600, %v3487
    %3604 = vrot.lane.b32.xlu0 %v3601, 64
    %v3605 = vpop.permute.xlu0 %3604
    %v3607 = vmul.f32 %v3600, %v3605
    %3609 = vrot.lane.b32.xlu0 %v3607, 32
    %v3610 = vpop.permute.xlu0 %3609
    %v3612 = vadd.f32 %v3602, %v3610
    %v3613 = vtanh.pop %v3612
    %3615 = vrot.lane.b32.xlu0 %v3613, 64
    %v3616 = vpop.permute.xlu0 %3615
    %v3618 = vmul.f32 %v3600, %v3616
    %v3619 = vpack.c.bf16 %v3618, %v3618
    %3621 = vrot.lane.b32.xlu0 %v3619, 32
    %v3622 = vpop.permute.xlu0 %3621
    %v3624 = vsel %vm3425, %v3622, 0
    %3626 = vmatprep.subr.bf16.mxu0 0
    %3627 = vmatpush1.bf16.msra.mxu0 %v3506
    %3628 = vmatprep.subr.bf16.mxu0 0
    %3629 = vmatpush1.bf16.msra.mxu0 %v3507
    %3630 = vmatprep.subr.bf16.mxu0 0
    %3631 = vmatpush1.bf16.msra.mxu0 0
    %3632 = vmatprep.subr.bf16.mxu0 0
    %3633 = vmatpush1.bf16.msra.mxu0 0
    %3634 = vmatprep.subr.bf16.mxu0 0
    %3635 = vmatpush1.bf16.msra.mxu0 0
    %3636 = vmatprep.subr.bf16.mxu0 0
    %3637 = vmatpush1.bf16.msra.mxu0 0
    %3638 = vmatprep.subr.bf16.mxu0 0
    %3639 = vmatpush1.bf16.msra.mxu0 0
    %3640 = vmatprep.subr.bf16.mxu0 0
    %3641 = vmatpush1.bf16.msra.mxu0 0
    %3642 = vmatprep.subr.bf16.mxu0 0
    %3643 = vmatpush1.bf16.msra.mxu0 0
    %3644 = vmatprep.subr.bf16.mxu0 0
    %3645 = vmatpush1.bf16.msra.mxu0 0
    %3646 = vmatprep.subr.bf16.mxu0 0
    %3647 = vmatpush1.bf16.msra.mxu0 0
    %3648 = vmatprep.subr.bf16.mxu0 0
    %3649 = vmatpush1.bf16.msra.mxu0 0
    %3650 = vmatprep.subr.bf16.mxu0 0
    %3651 = vmatpush1.bf16.msra.mxu0 0
    %3652 = vmatprep.subr.bf16.mxu0 0
    %3653 = vmatpush1.bf16.msra.mxu0 0
    %3654 = vmatprep.subr.bf16.mxu0 0
    %3655 = vmatpush1.bf16.msra.mxu0 0
    %3656 = vmatprep.subr.bf16.mxu0 0
    %3657 = vmatpush1.bf16.msra.mxu0 0
    %3658 = vmatprep.mubr.bf16.mxu0 0
    %3659 = vmatmul.mubr.bf16.gmra.mrb[0].mxu0 %v3624
    %v3660 = vpop.f32.mrb[0].mxu0
    %v3661 = vadd.f32 0.0, %v3660
    %v3662 = vpop.f32.mrb[0].mxu0
    %v3663 = vpop.f32.mrb[0].mxu0
    %v3664 = vpop.f32.mrb[0].mxu0
    %3665 = vdwg.mxu0
    %v3666 = vadd.f32 %v3316, %v3359
    %3667 = vmatprep.subr.bf16.mxu0 0
    %3668 = vmatpush1.bf16.msra.mxu0 %v3421
    %3669 = vmatprep.subr.bf16.mxu0 0
    %3670 = vmatpush1.bf16.msra.mxu0 %v3422
    %3671 = vmatprep.subr.bf16.mxu0 0
    %3672 = vmatpush1.bf16.msra.mxu0 0
    %3673 = vmatprep.subr.bf16.mxu0 0
    %3674 = vmatpush1.bf16.msra.mxu0 0
    %3675 = vmatprep.subr.bf16.mxu0 0
    %3676 = vmatpush1.bf16.msra.mxu0 0
    %3677 = vmatprep.subr.bf16.mxu0 0
    %3678 = vmatpush1.bf16.msra.mxu0 0
    %3679 = vmatprep.subr.bf16.mxu0 0
    %3680 = vmatpush1.bf16.msra.mxu0 0
    %3681 = vmatprep.subr.bf16.mxu0 0
    %3682 = vmatpush1.bf16.msra.mxu0 0
    %3683 = vmatprep.subr.bf16.mxu0 0
    %3684 = vmatpush1.bf16.msra.mxu0 0
    %3685 = vmatprep.subr.bf16.mxu0 0
    %3686 = vmatpush1.bf16.msra.mxu0 0
    %3687 = vmatprep.subr.bf16.mxu0 0
    %3688 = vmatpush1.bf16.msra.mxu0 0
    %3689 = vmatprep.subr.bf16.mxu0 0
    %3690 = vmatpush1.bf16.msra.mxu0 0
    %3691 = vmatprep.subr.bf16.mxu0 0
    %3692 = vmatpush1.bf16.msra.mxu0 0
    %3693 = vmatprep.subr.bf16.mxu0 0
    %3694 = vmatpush1.bf16.msra.mxu0 0
    %3695 = vmatprep.subr.bf16.mxu0 0
    %3696 = vmatpush1.bf16.msra.mxu0 0
    %3697 = vmatprep.subr.bf16.mxu0 0
    %3698 = vmatpush1.bf16.msra.mxu0 0
    %3699 = vmatprep.mubr.bf16.mxu0 0
    %3700 = vmatmul.mubr.bf16.gmra.mrb[0].mxu0 %v3624
    %v3701 = vpop.f32.mrb[0].mxu0
    %v3702 = vadd.f32 0.0, %v3701
    %v3703 = vpop.f32.mrb[0].mxu0
    %v3704 = vpop.f32.mrb[0].mxu0
    %v3705 = vpop.f32.mrb[0].mxu0
    %3706 = vdwg.mxu0
    %v3707 = vadd.f32 %v3666, %v3702
    %v3708 = vxor.u32 %v3707, 2147483648
    %v3709 = vmul.f32 %v3708, 1.442695
    %v3710 = vpow.pop %v3709
    %v3711 = vadd.f32 %v3710, 1.0
    %v3712 = vrcp.pop %v3711
    %v3713 = vmul.f32 1.0, %v3712
    %v3714 = vtanh.pop %v3707
    %v3715 = vmul.f32 %v3713, %v3612
    %3717 = vrot.lane.b32.xlu0 %v3714, 64
    %v3718 = vpop.permute.xlu0 %3717
    %v3720 = vmul.f32 %v3713, %v3718
    %3722 = vrot.lane.b32.xlu0 %v3720, 32
    %v3723 = vpop.permute.xlu0 %3722
    %v3725 = vadd.f32 %v3715, %v3723
    %v3726 = vtanh.pop %v3725
    %3728 = vrot.lane.b32.xlu0 %v3726, 64
    %v3729 = vpop.permute.xlu0 %3728
    %v3731 = vmul.f32 %v3713, %v3729
    %v3732 = vpack.c.bf16 %v3731, %v3731
    %3734 = vrot.lane.b32.xlu0 %v3732, 32
    %v3735 = vpop.permute.xlu0 %3734
    %v3737 = vsel %vm3425, %v3735, 0
    %3739 = vmatprep.subr.bf16.mxu0 0
    %3740 = vmatpush1.bf16.msra.mxu0 %v3506
    %3741 = vmatprep.subr.bf16.mxu0 0
    %3742 = vmatpush1.bf16.msra.mxu0 %v3507
    %3743 = vmatprep.subr.bf16.mxu0 0
    %3744 = vmatpush1.bf16.msra.mxu0 0
    %3745 = vmatprep.subr.bf16.mxu0 0
    %3746 = vmatpush1.bf16.msra.mxu0 0
    %3747 = vmatprep.subr.bf16.mxu0 0
    %3748 = vmatpush1.bf16.msra.mxu0 0
    %3749 = vmatprep.subr.bf16.mxu0 0
    %3750 = vmatpush1.bf16.msra.mxu0 0
    %3751 = vmatprep.subr.bf16.mxu0 0
    %3752 = vmatpush1.bf16.msra.mxu0 0
    %3753 = vmatprep.subr.bf16.mxu0 0
    %3754 = vmatpush1.bf16.msra.mxu0 0
    %3755 = vmatprep.subr.bf16.mxu0 0
    %3756 = vmatpush1.bf16.msra.mxu0 0
    %3757 = vmatprep.subr.bf16.mxu0 0
    %3758 = vmatpush1.bf16.msra.mxu0 0
    %3759 = vmatprep.subr.bf16.mxu0 0
    %3760 = vmatpush1.bf16.msra.mxu0 0
    %3761 = vmatprep.subr.bf16.mxu0 0
    %3762 = vmatpush1.bf16.msra.mxu0 0
    %3763 = vmatprep.subr.bf16.mxu0 0
    %3764 = vmatpush1.bf16.msra.mxu0 0
    %3765 = vmatprep.subr.bf16.mxu0 0
    %3766 = vmatpush1.bf16.msra.mxu0 0
    %3767 = vmatprep.subr.bf16.mxu0 0
    %3768 = vmatpush1.bf16.msra.mxu0 0
    %3769 = vmatprep.subr.bf16.mxu0 0
    %3770 = vmatpush1.bf16.msra.mxu0 0
    %3771 = vmatprep.mubr.bf16.mxu0 0
    %3772 = vmatmul.mubr.bf16.gmra.mrb[0].mxu0 %v3737
    %v3773 = vpop.f32.mrb[0].mxu0
    %v3774 = vadd.f32 0.0, %v3773
    %v3775 = vpop.f32.mrb[0].mxu0
    %v3776 = vpop.f32.mrb[0].mxu0
    %v3777 = vpop.f32.mrb[0].mxu0
    %3778 = vdwg.mxu0
    %v3779 = vadd.f32 %v3318, %v3357
    %3780 = vmatprep.subr.bf16.mxu0 0
    %3781 = vmatpush1.bf16.msra.mxu0 %v3421
    %3782 = vmatprep.subr.bf16.mxu0 0
    %3783 = vmatpush1.bf16.msra.mxu0 %v3422
    %3784 = vmatprep.subr.bf16.mxu0 0
    %3785 = vmatpush1.bf16.msra.mxu0 0
    %3786 = vmatprep.subr.bf16.mxu0 0
    %3787 = vmatpush1.bf16.msra.mxu0 0
    %3788 = vmatprep.subr.bf16.mxu0 0
    %3789 = vmatpush1.bf16.msra.mxu0 0
    %3790 = vmatprep.subr.bf16.mxu0 0
    %3791 = vmatpush1.bf16.msra.mxu0 0
    %3792 = vmatprep.subr.bf16.mxu0 0
    %3793 = vmatpush1.bf16.msra.mxu0 0
    %3794 = vmatprep.subr.bf16.mxu0 0
    %3795 = vmatpush1.bf16.msra.mxu0 0
    %3796 = vmatprep.subr.bf16.mxu0 0
    %3797 = vmatpush1.bf16.msra.mxu0 0
    %3798 = vmatprep.subr.bf16.mxu0 0
    %3799 = vmatpush1.bf16.msra.mxu0 0
    %3800 = vmatprep.subr.bf16.mxu0 0
    %3801 = vmatpush1.bf16.msra.mxu0 0
    %3802 = vmatprep.subr.bf16.mxu0 0
    %3803 = vmatpush1.bf16.msra.mxu0 0
    %3804 = vmatprep.subr.bf16.mxu0 0
    %3805 = vmatpush1.bf16.msra.mxu0 0
    %3806 = vmatprep.subr.bf16.mxu0 0
    %3807 = vmatpush1.bf16.msra.mxu0 0
    %3808 = vmatprep.subr.bf16.mxu0 0
    %3809 = vmatpush1.bf16.msra.mxu0 0
    %3810 = vmatprep.subr.bf16.mxu0 0
    %3811 = vmatpush1.bf16.msra.mxu0 0
    %3812 = vmatprep.mubr.bf16.mxu0 0
    %3813 = vmatmul.mubr.bf16.gmra.mrb[0].mxu0 %v3737
    %v3814 = vpop.f32.mrb[0].mxu0
    %v3815 = vadd.f32 0.0, %v3814
    %v3816 = vpop.f32.mrb[0].mxu0
    %v3817 = vpop.f32.mrb[0].mxu0
    %v3818 = vpop.f32.mrb[0].mxu0
    %3819 = vdwg.mxu0
    %v3820 = vadd.f32 %v3779, %v3815
    %v3821 = vxor.u32 %v3820, 2147483648
    %v3822 = vmul.f32 %v3821, 1.442695
    %v3823 = vpow.pop %v3822
    %v3824 = vadd.f32 %v3823, 1.0
    %v3825 = vrcp.pop %v3824
    %v3826 = vmul.f32 1.0, %v3825
    %v3827 = vtanh.pop %v3820
    %v3828 = vmul.f32 %v3826, %v3725
    %3830 = vrot.lane.b32.xlu0 %v3827, 64
    %v3831 = vpop.permute.xlu0 %3830
    %v3833 = vmul.f32 %v3826, %v3831
    %3835 = vrot.lane.b32.xlu0 %v3833, 32
    %v3836 = vpop.permute.xlu0 %3835
    %v3838 = vadd.f32 %v3828, %v3836
    %v3839 = vtanh.pop %v3838
    %3841 = vrot.lane.b32.xlu0 %v3839, 64
    %v3842 = vpop.permute.xlu0 %3841
    %v3844 = vmul.f32 %v3826, %v3842
    %v3845 = vpack.c.bf16 %v3844, %v3844
    %3847 = vrot.lane.b32.xlu0 %v3845, 32
    %v3848 = vpop.permute.xlu0 %3847
    %v3850 = vsel %vm3425, %v3848, 0
    %3852 = vmatprep.subr.bf16.mxu0 0
    %3853 = vmatpush1.bf16.msra.mxu0 %v3506
    %3854 = vmatprep.subr.bf16.mxu0 0
    %3855 = vmatpush1.bf16.msra.mxu0 %v3507
    %3856 = vmatprep.subr.bf16.mxu0 0
    %3857 = vmatpush1.bf16.msra.mxu0 0
    %3858 = vmatprep.subr.bf16.mxu0 0
    %3859 = vmatpush1.bf16.msra.mxu0 0
    %3860 = vmatprep.subr.bf16.mxu0 0
    %3861 = vmatpush1.bf16.msra.mxu0 0
    %3862 = vmatprep.subr.bf16.mxu0 0
    %3863 = vmatpush1.bf16.msra.mxu0 0
    %3864 = vmatprep.subr.bf16.mxu0 0
    %3865 = vmatpush1.bf16.msra.mxu0 0
    %3866 = vmatprep.subr.bf16.mxu0 0
    %3867 = vmatpush1.bf16.msra.mxu0 0
    %3868 = vmatprep.subr.bf16.mxu0 0
    %3869 = vmatpush1.bf16.msra.mxu0 0
    %3870 = vmatprep.subr.bf16.mxu0 0
    %3871 = vmatpush1.bf16.msra.mxu0 0
    %3872 = vmatprep.subr.bf16.mxu0 0
    %3873 = vmatpush1.bf16.msra.mxu0 0
    %3874 = vmatprep.subr.bf16.mxu0 0
    %3875 = vmatpush1.bf16.msra.mxu0 0
    %3876 = vmatprep.subr.bf16.mxu0 0
    %3877 = vmatpush1.bf16.msra.mxu0 0
    %3878 = vmatprep.subr.bf16.mxu0 0
    %3879 = vmatpush1.bf16.msra.mxu0 0
    %3880 = vmatprep.subr.bf16.mxu0 0
    %3881 = vmatpush1.bf16.msra.mxu0 0
    %3882 = vmatprep.subr.bf16.mxu0 0
    %3883 = vmatpush1.bf16.msra.mxu0 0
    %3884 = vmatprep.mubr.bf16.mxu0 0
    %3885 = vmatmul.mubr.bf16.gmra.mrb[0].mxu0 %v3850
    %v3886 = vpop.f32.mrb[0].mxu0
    %v3887 = vadd.f32 0.0, %v3886
    %v3888 = vpop.f32.mrb[0].mxu0
    %v3889 = vpop.f32.mrb[0].mxu0
    %v3890 = vpop.f32.mrb[0].mxu0
    %3891 = vdwg.mxu0
    %3893 = vrot.lane.b32.xlu0 %v3887, 127
    %v3894 = vpop.permute.xlu0 %3893
    %v3896 = vadd.f32 %v3548, %v3894
    %3898 = vrot.lane.b32.xlu0 %v3774, 127
    %v3899 = vpop.permute.xlu0 %3898
    %v3901 = vadd.f32 %v3661, %v3899
    %3903 = vrot.lane.b32.xlu0 %v3661, 127
    %v3904 = vpop.permute.xlu0 %3903
    %v3906 = vadd.f32 %v3774, %v3904
    %3908 = vrot.lane.b32.xlu0 %v3548, 127
    %v3909 = vpop.permute.xlu0 %3908
    %v3911 = vadd.f32 %v3887, %v3909
    %v3912 = vmax.f32 %v3896, %v3901
    %v3913 = vmax.f32 %v3912, %v3906
    %v3914 = vmax.f32 %v3913, %v3911
    %v3915 = vsub.f32 %v3896, %v3914
    %v3916 = vmul.f32 %v3915, 1.442695
    %v3917 = vpow.pop %v3916
    %v3918 = vsub.f32 %v3901, %v3914
    %v3919 = vmul.f32 %v3918, 1.442695
    %v3920 = vpow.pop %v3919
    %v3921 = vsub.f32 %v3906, %v3914
    %v3922 = vmul.f32 %v3921, 1.442695
    %v3923 = vpow.pop %v3922
    %v3924 = vsub.f32 %v3911, %v3914
    %v3925 = vmul.f32 %v3924, 1.442695
    %v3926 = vpow.pop %v3925
    %v3927 = vadd.f32 %v3917, %v3920
    %v3928 = vadd.f32 %v3927, %v3923
    %v3929 = vadd.f32 %v3928, %v3926
    %v3930 = vrcp.pop %v3929
    %v3931 = vmul.f32 1.0, %v3930
    %v3932 = vmul.f32 %v3917, %v3931
    %v3933 = vmul.f32 %v3920, %v3931
    %v3934 = vmul.f32 %v3923, %v3931
    %v3935 = vmul.f32 %v3926, %v3931
    %v3936 = vld [vmem:[%s11] sm:$0x3]
    %3938 = vset.pattern.permute.xlu0 0
    %3939 = vperm.xlu0 %3938, %v3932
    %v3940 = vpop.permute.xlu0 %3939
    %v3942 = vlaneseq
    %v3943 = vshrl.u32 %v3942, 7
    %v3944 = vsub.s32 0, %v3943
    %v3945 = vrot.slane %v3936, %v3944
    %v3946 = vmul.f32 %v3940, %v3945
    %3948 = vset.pattern.permute.xlu0 0
    %3949 = vperm.xlu0 %3948, %v3935
    %v3950 = vpop.permute.xlu0 %3949
    %v3952 = vlaneseq
    %v3953 = vshrl.u32 %v3952, 7
    %v3954 = vsub.s32 1, %v3953
    %v3955 = vrot.slane %v3936, %v3954
    %v3956 = vmul.f32 %v3950, %v3955
    %v3957 = vadd.f32 %v3946, %v3956
    %3959 = vrot.lane.b32.xlu0 %v3493, 32
    %v3960 = vpop.permute.xlu0 %3959
    %v3962 = vmul.f32 %v3957, %v3960
    %3964 = vset.pattern.permute.xlu0 0
    %3965 = vperm.xlu0 %3964, %v3933
    %v3966 = vpop.permute.xlu0 %3965
    %v3968 = vmul.f32 %v3966, %v3945
    %3970 = vset.pattern.permute.xlu0 0
    %3971 = vperm.xlu0 %3970, %v3934
    %v3972 = vpop.permute.xlu0 %3971
    %v3974 = vmul.f32 %v3972, %v3955
    %v3975 = vadd.f32 %v3968, %v3974
    %3977 = vrot.lane.b32.xlu0 %v3618, 32
    %v3978 = vpop.permute.xlu0 %3977
    %v3980 = vmul.f32 %v3975, %v3978
    %v3981 = vadd.f32 %v3962, %v3980
    %v3982 = vmul.f32 %v3972, %v3945
    %v3983 = vmul.f32 %v3966, %v3955
    %v3984 = vadd.f32 %v3982, %v3983
    %3986 = vrot.lane.b32.xlu0 %v3731, 32
    %v3987 = vpop.permute.xlu0 %3986
    %v3989 = vmul.f32 %v3984, %v3987
    %v3990 = vadd.f32 %v3981, %v3989
    %v3991 = vmul.f32 %v3950, %v3945
    %v3992 = vmul.f32 %v3940, %v3955
    %v3993 = vadd.f32 %v3991, %v3992
    %3995 = vrot.lane.b32.xlu0 %v3844, 32
    %v3996 = vpop.permute.xlu0 %3995
    %v3998 = vmul.f32 %v3993, %v3996
    %v3999 = vadd.f32 %v3990, %v3998
    %v4000 = vld [vmem:[%s12] sm:$0xff]
    %v4001 = vld [vmem:[%s12 + $0x8] sm:$0xff]
    %v4002 = vld [vmem:[%s12 + $0x10] sm:$0xff]
    %v4003 = vld [vmem:[%s12 + $0x18] sm:$0xff]
    %v4004 = vld [vmem:[#allocation2] sm:$0x1]
    %v4006 = vlaneseq
    %v4007 = vshrl.u32 %v4006, 7
    %v4008 = vsub.s32 0, %v4007
    %v4009 = vrot.slane %v4004, %v4008
    %v4012 = vsel %vm3425, %v3999, 0
    %4014 = vmatprep.subr.mxu0 0.0
    %4015 = vmatpush1.msra.mxu0 %v4000
    %4016 = vmatprep.subr.mxu0 0.0
    %4017 = vmatpush1.msra.mxu0 %v4001
    %4018 = vmatprep.subr.mxu0 0.0
    %4019 = vmatpush1.msra.mxu0 %v4002
    %4020 = vmatprep.subr.mxu0 0.0
    %4021 = vmatpush1.msra.mxu0 %v4003
    %4022 = vmatprep.subr.mxu0 0.0
    %4023 = vmatpush1.msra.mxu0 0.0
    %4024 = vmatprep.subr.mxu0 0.0
    %4025 = vmatpush1.msra.mxu0 0.0
    %4026 = vmatprep.subr.mxu0 0.0
    %4027 = vmatpush1.msra.mxu0 0.0
    %4028 = vmatprep.subr.mxu0 0.0
    %4029 = vmatpush1.msra.mxu0 0.0
    %4030 = vmatprep.subr.mxu0 0.0
    %4031 = vmatpush1.msra.mxu0 0.0
    %4032 = vmatprep.subr.mxu0 0.0
    %4033 = vmatpush1.msra.mxu0 0.0
    %4034 = vmatprep.subr.mxu0 0.0
    %4035 = vmatpush1.msra.mxu0 0.0
    %4036 = vmatprep.subr.mxu0 0.0
    %4037 = vmatpush1.msra.mxu0 0.0
    %4038 = vmatprep.subr.mxu0 0.0
    %4039 = vmatpush1.msra.mxu0 0.0
    %4040 = vmatprep.subr.mxu0 0.0
    %4041 = vmatpush1.msra.mxu0 0.0
    %4042 = vmatprep.subr.mxu0 0.0
    %4043 = vmatpush1.msra.mxu0 0.0
    %4044 = vmatprep.subr.mxu0 0.0
    %4045 = vmatpush1.msra.mxu0 0.0
    %4046 = vmatprep.subr.mxu0 0.0
    %4047 = vmatpush1.msra.mxu0 0.0
    %4048 = vmatprep.subr.mxu0 0.0
    %4049 = vmatpush1.msra.mxu0 0.0
    %4050 = vmatprep.subr.mxu0 0.0
    %4051 = vmatpush1.msra.mxu0 0.0
    %4052 = vmatprep.subr.mxu0 0.0
    %4053 = vmatpush1.msra.mxu0 0.0
    %4054 = vmatprep.subr.mxu0 0.0
    %4055 = vmatpush1.msra.mxu0 0.0
    %4056 = vmatprep.subr.mxu0 0.0
    %4057 = vmatpush1.msra.mxu0 0.0
    %4058 = vmatprep.subr.mxu0 0.0
    %4059 = vmatpush1.msra.mxu0 0.0
    %4060 = vmatprep.subr.mxu0 0.0
    %4061 = vmatpush1.msra.mxu0 0.0
    %4062 = vmatprep.subr.mxu0 0.0
    %4063 = vmatpush1.msra.mxu0 0.0
    %4064 = vmatprep.subr.mxu0 0.0
    %4065 = vmatpush1.msra.mxu0 0.0
    %4066 = vmatprep.subr.mxu0 0.0
    %4067 = vmatpush1.msra.mxu0 0.0
    %4068 = vmatprep.subr.mxu0 0.0
    %4069 = vmatpush1.msra.mxu0 0.0
    %4070 = vmatprep.subr.mxu0 0.0
    %4071 = vmatpush1.msra.mxu0 0.0
    %4072 = vmatprep.subr.mxu0 0.0
    %4073 = vmatpush1.msra.mxu0 0.0
    %4074 = vmatprep.subr.mxu0 0.0
    %4075 = vmatpush1.msra.mxu0 0.0
    %4076 = vmatprep.subr.mxu0 0.0
    %4077 = vmatpush1.msra.mxu0 0.0
    %4078 = vmatprep.mubr.f32.mxu0 0.0
    %4079 = vmatmul.mubr.f32.gmra.mrb[0].mxu0 %v4012
    %v4080 = vpop.f32.mrb[0].mxu0
    %v4081 = vadd.f32 %v4009, %v4080
    %v4082 = vpop.f32.mrb[0].mxu0
    %4083 = vdwg.mxu0
    %4084 = vst [vmem:[%s14] sm:$0x3] 0.0
    %vm4085 = vcmask 25600
    %4086 = vst.msk [vmem:[%s14] sm:$0x3] %vm4085, %v2507
    %4087 = vrot.lane.b32.xlu0 %v2508, 4
    %v4088 = vpop.permute.xlu0 %4087
    %vm4090 = vcmask 58400
    %4091 = vst.msk [vmem:[%s14] sm:$0x3] %vm4090, %v4088
    %4092 = vrot.lane.b32.xlu0 %v2509, 8
    %v4093 = vpop.permute.xlu0 %4092
    %vm4095 = vcmask 91200
    %4096 = vst.msk [vmem:[%s14] sm:$0x3] %vm4095, %v4093
    %4097 = vrot.lane.b32.xlu0 %v2510, 12
    %v4098 = vpop.permute.xlu0 %4097
    %vm4100 = vcmask 124000
    %4101 = vst.msk [vmem:[%s14] sm:$0x3] %vm4100, %v4098
    %4102 = vrot.lane.b32.xlu0 %v2511, 16
    %v4103 = vpop.permute.xlu0 %4102
    %vm4105 = vcmask 156800
    %4106 = vst.msk [vmem:[%s14] sm:$0x3] %vm4105, %v4103
    %4107 = vrot.lane.b32.xlu0 %v2512, 20
    %v4108 = vpop.permute.xlu0 %4107
    %vm4110 = vcmask 189600
    %4111 = vst.msk [vmem:[%s14] sm:$0x3] %vm4110, %v4108
    %4112 = vrot.lane.b32.xlu0 %v2513, 24
    %v4113 = vpop.permute.xlu0 %4112
    %vm4115 = vcmask 222400
    %4116 = vst.msk [vmem:[%s14] sm:$0x3] %vm4115, %v4113
    %4117 = vrot.lane.b32.xlu0 %v2514, 28
    %v4118 = vpop.permute.xlu0 %4117
    %vm4120 = vcmask 255200
    %4121 = vst.msk [vmem:[%s14] sm:$0x3] %vm4120, %v4118
    %4122 = vrot.lane.b32.xlu0 %v3932, 32
    %v4123 = vpop.permute.xlu0 %4122
    %vm4125 = vcmask 263424
    %4126 = vst.msk [vmem:[%s14] sm:$0x3] %vm4125, %v4123
    %4127 = vrot.lane.b32.xlu0 %v3933, 33
    %v4128 = vpop.permute.xlu0 %4127
    %vm4130 = vcmask 271624
    %4131 = vst.msk [vmem:[%s14] sm:$0x3] %vm4130, %v4128
    %4132 = vrot.lane.b32.xlu0 %v3934, 34
    %v4133 = vpop.permute.xlu0 %4132
    %vm4135 = vcmask 279824
    %4136 = vst.msk [vmem:[%s14] sm:$0x3] %vm4135, %v4133
    %4137 = vrot.lane.b32.xlu0 %v3935, 35
    %v4138 = vpop.permute.xlu0 %4137
    %vm4140 = vcmask 288024
    %4141 = vst.msk [vmem:[%s14] sm:$0x3] %vm4140, %v4138
    %4143 = vrot.lane.b32.xlu0 %v4081, 36
    %v4144 = vpop.permute.xlu0 %4143
    %vm4146 = vcmask 296224
    %4147 = vst.msk [vmem:[%s14] sm:$0x3] %vm4146, %v4144
    // Predicated region
    $region66: #{raw_d_forward.1} parent=1 // pred_check
      _
    $region67: #{raw_d_forward.1} parent=1 // pred_check_branch
      %4149 = sbr.rel (0) target = $region69
    $region68: #{raw_d_forward.1} parent=1 // pred_region
      _
    $region69: #{raw_d_forward.1} parent=1 // pred_fallthru
      _
    // Predicated region
    $region70: #{raw_d_forward.1} parent=1 // pred_check
      _
    $region71: #{raw_d_forward.1} parent=1 // pred_check_branch
      %4151 = sbr.rel (0) target = $region73
    $region72: #{raw_d_forward.1} parent=1 // pred_region
      _
    $region73: #{raw_d_forward.1} parent=1 // pred_fallthru
      _
    %4152 = vsyncpa [#allocation4], 1
    %4153 = vsyncpa [#allocation6], 1

</llo_original>
